<compile_context>
chip_gen: v6e
topology: v6e:2x2x1
jax: 0.10.0
libtpu: 0.0.40
codegen_flags: <defaults>
</compile_context>

<pallas_src>
import jax
import jax.numpy as jnp
from jax import lax
from jax.experimental import pallas as pl
from jax.experimental.pallas import tpu as pltpu

# ----------------------------- configuration --------------------------------
INIT_CHANNELS = 64          # hardcoded in SharedNet.__init__
NUM_CLASSES = 4             # args.num_classes
IMG_CHANNELS = 3            # args.img_channels
MAXDISPLIST = (12, 3, 3)    # args.maxdisplist (AnyNet default)

_LANE = 128


def _round_up(x, m):
    return -(-x // m) * m


# ----------------------------- Pallas kernels --------------------------------
def conv1x1(x_nhwc, w, b, relu=False):
    """1x1 convolution as a row-tiled Pallas matmul.

    (B*H*W, Cin) @ (Cin, Cout) + bias; bf16 MXU operands, f32 accumulation.
    Cout is zero-padded to a multiple of 128 so output stores are lane-dense
    (matters for the Cout=4 deal heads); the pad is sliced off in the wrapper.
    """
    B, H, W, Cin = x_nhwc.shape
    Cout = w.shape[1]
    M = B * H * W

    cout_p = _round_up(Cout, _LANE)
    if cout_p != Cout:
        w = jnp.pad(w, ((0, 0), (0, cout_p - Cout)))
        b = jnp.pad(b, ((0, cout_p - Cout),))

    x2d = x_nhwc.reshape(M, Cin).astype(jnp.bfloat16)
    w_bf = w.astype(jnp.bfloat16)
    b2d = b.reshape(1, cout_p).astype(jnp.float32)

    # <=1024 rows: single full block (always layout-legal); else 8-aligned tiles
    # small enough to double-buffer within v7x's reduced VMEM.
    tm = M if M <= 1024 else 1024

    def kernel(x_ref, w_ref, b_ref, o_ref):
        y = jnp.dot(x_ref[...], w_ref[...], preferred_element_type=jnp.float32)
        y = y + b_ref[...]
        if relu:
            y = jnp.maximum(y, 0.0)
        o_ref[...] = y

    out = pl.pallas_call(
        kernel,
        out_shape=jax.ShapeDtypeStruct((M, cout_p), jnp.float32),
        grid=(pl.cdiv(M, tm),),
        in_specs=[
            pl.BlockSpec((tm, Cin), lambda i: (i, 0)),
            pl.BlockSpec((Cin, cout_p), lambda i: (0, 0)),
            pl.BlockSpec((1, cout_p), lambda i: (0, 0)),
        ],
        out_specs=pl.BlockSpec((tm, cout_p), lambda i: (i, 0)),
        compiler_params=pltpu.CompilerParams(dimension_semantics=("parallel",)),
    )(x2d, w_bf, b2d)
    if cout_p != Cout:
        out = out[:, :Cout]
    return out.reshape(B, H, W, Cout)


def build_volume_2d(feat_l, feat_r, maxdisp):
    """SharedNet._build_volume_2d (stride=1). feats are NHWC; returns (B, maxdisp, H, W).

    feat_r is pre-padded on the left with maxdisp-1 zero columns so that for
    every disparity d the kernel compares feat_l with a full-width shifted
    window and writes one unmasked (TH, W) row. The zero pad reproduces the
    reference's `feat_l.abs().sum(1)` fill for the invalid columns exactly
    (|a - 0| summed over channels), so no masked/partial stores are needed.
    """
    B, H, W, C = feat_l.shape
    fr_pad = jnp.pad(feat_r, ((0, 0), (0, 0), (maxdisp - 1, 0), (0, 0)))
    Wp = W + maxdisp - 1
    th = H if H <= 16 else 16   # bounded block height; keeps v7x VMEM safe

    def kernel(fl_ref, frp_ref, o_ref):
        a = fl_ref[0]                                    # (TH, W, C)
        for d in range(maxdisp):
            off = maxdisp - 1 - d
            b_d = frp_ref[0, :, off:off + W, :]          # (TH, W, C); zeros where col < d
            o_ref[0, d] = jnp.sum(jnp.abs(a - b_d), axis=-1)

    return pl.pallas_call(
        kernel,
        out_shape=jax.ShapeDtypeStruct((B, maxdisp, H, W), jnp.float32),
        grid=(B, pl.cdiv(H, th)),
        in_specs=[
            pl.BlockSpec((1, th, W, C), lambda b, h: (b, h, 0, 0)),
            pl.BlockSpec((1, th, Wp, C), lambda b, h: (b, h, 0, 0)),
        ],
        out_specs=pl.BlockSpec((1, maxdisp, th, W), lambda b, h: (b, 0, h, 0)),
        compiler_params=pltpu.CompilerParams(
            dimension_semantics=("parallel", "parallel")),
    )(feat_l, fr_pad)


def l1_channel_reduce_bd(feat_l, warped):
    """torch.norm(feat_l - warped_d, 1, dim=channel) for every disparity d.

    feat_l: (B, H, W, C); warped: (B, D, H, W, C) -> cost (B, D, H, W).
    feat_l is broadcast across D via its index_map (no B*D duplication in HBM);
    D is the innermost grid axis so the feat_l block stays resident across it.
    """
    B, H, W, C = feat_l.shape
    D = warped.shape[1]
    th = H if H <= 16 else 16

    def kernel(a_ref, b_ref, o_ref):
        o_ref[0, 0] = jnp.sum(jnp.abs(a_ref[0] - b_ref[0, 0]), axis=-1)

    return pl.pallas_call(
        kernel,
        out_shape=jax.ShapeDtypeStruct((B, D, H, W), jnp.float32),
        grid=(B, pl.cdiv(H, th), D),
        in_specs=[
            pl.BlockSpec((1, th, W, C), lambda b, h, d: (b, h, 0, 0)),
            pl.BlockSpec((1, 1, th, W, C), lambda b, h, d: (b, d, h, 0, 0)),
        ],
        out_specs=pl.BlockSpec((1, 1, th, W), lambda b, h, d: (b, d, h, 0)),
        compiler_params=pltpu.CompilerParams(
            dimension_semantics=("parallel", "parallel", "arbitrary")),
    )(feat_l, warped)


def softmax_disparity_regression(cost, start):
    """Fused softmax(-cost, dim=1) + disparityregression2(start, ...) -> (B, 1, H, W)."""
    B, D, H, W = cost.shape
    HW = H * W
    c3 = cost.reshape(B, D, HW)
    t = HW if HW <= 2048 else 2048   # lane-dense HW tiles at real resolutions

    def kernel(c_ref, o_ref):
        x = -c_ref[0]                                      # (D, T)
        m = jnp.max(x, axis=0, keepdims=True)
        e = jnp.exp(x - m)
        s = jnp.sum(e, axis=0, keepdims=True)
        disp = lax.broadcasted_iota(jnp.int32, (D, 1), 0).astype(jnp.float32) + float(start)
        num = jnp.sum(e * disp, axis=0, keepdims=True)
        o_ref[0] = num * pl.reciprocal(s, approx=True)     # divide -> EUP slot

    out = pl.pallas_call(
        kernel,
        out_shape=jax.ShapeDtypeStruct((B, 1, HW), jnp.float32),
        grid=(B, pl.cdiv(HW, t)),
        in_specs=[pl.BlockSpec((1, D, t), lambda b, i: (b, 0, i))],
        out_specs=pl.BlockSpec((1, 1, t), lambda b, i: (b, 0, i)),
        compiler_params=pltpu.CompilerParams(
            dimension_semantics=("parallel", "parallel")),
    )(c3)
    return out.reshape(B, 1, H, W)


# ------------------------------- JAX glue ------------------------------------
def _src_coords(out_size, in_size, align_corners):
    if align_corners:
        if out_size == 1:
            src = jnp.zeros((out_size,), jnp.float32)
        else:
            src = jnp.arange(out_size, dtype=jnp.float32) * ((in_size - 1) / (out_size - 1))
    else:
        scale = in_size / out_size
        src = (jnp.arange(out_size, dtype=jnp.float32) + 0.5) * scale - 0.5
        src = jnp.maximum(src, 0.0)   # PyTorch clamps negative source indices
    i0 = jnp.clip(jnp.floor(src).astype(jnp.int32), 0, in_size - 1)
    i1 = jnp.minimum(i0 + 1, in_size - 1)
    w1 = src - i0.astype(jnp.float32)
    w0 = 1.0 - w1
    return i0, i1, w0, w1


def bilinear_resize_nchw(x, out_h, out_w, align_corners):
    """PyTorch-style bilinear interpolate on NCHW tensors."""
    B, C, H, W = x.shape
    y0, y1, wy0, wy1 = _src_coords(out_h, H, align_corners)
    x0, x1, wx0, wx1 = _src_coords(out_w, W, align_corners)
    r = (x[:, :, y0, :] * wy0[None, None, :, None]
         + x[:, :, y1, :] * wy1[None, None, :, None])
    return (r[:, :, :, x0] * wx0[None, None, None, :]
            + r[:, :, :, x1] * wx1[None, None, None, :])


def bilinear_resize_nhwc(x, out_h, out_w, align_corners):
    """PyTorch-style bilinear interpolate on NHWC tensors."""
    B, H, W, C = x.shape
    y0, y1, wy0, wy1 = _src_coords(out_h, H, align_corners)
    x0, x1, wx0, wx1 = _src_coords(out_w, W, align_corners)
    r = (x[:, y0, :, :] * wy0[None, :, None, None]
         + x[:, y1, :, :] * wy1[None, :, None, None])
    return (r[:, :, x0, :] * wx0[None, None, :, None]
            + r[:, :, x1, :] * wx1[None, None, :, None])


def warp_nhwc_multi(x, disp):
    """SharedNet.warp on NHWC features, batched over disparity shifts.

    x: (B, H, W, C); disp: (B, D, H, W) horizontal disparities.
    Returns (B, D, H, W, C): grid_sample(bilinear, zeros, align_corners=False)
    of x at grid shifted by -disp_d, without materializing D copies of x.
    """
    # TODO(synk): data-dependent bilinear gather stays in plain JAX (no clean
    # Pallas TPU equivalent without one-hot matmul gathers).
    B, H, W, C = x.shape
    D = disp.shape[1]
    xx = jnp.arange(W, dtype=jnp.float32)
    yy = jnp.arange(H, dtype=jnp.float32)
    vx = xx[None, None, None, :] - disp                   # (B, D, H, W)
    # reference warp() normalizes with (W-1)/(H-1); grid_sample un-normalizes
    # with align_corners=False.
    xn = 2.0 * vx / max(W - 1, 1) - 1.0
    yn = 2.0 * yy / max(H - 1, 1) - 1.0
    ix = ((xn + 1.0) * W - 1.0) / 2.0                     # (B, D, H, W)
    iy = jnp.broadcast_to((((yn + 1.0) * H - 1.0) / 2.0)[None, None, :, None],
                          (B, D, H, W))

    x0 = jnp.floor(ix); x1 = x0 + 1.0
    y0 = jnp.floor(iy); y1 = y0 + 1.0
    wx1 = ix - x0; wx0 = 1.0 - wx1
    wy1 = iy - y0; wy0 = 1.0 - wy1
    xf = x.reshape(B, H * W, C)

    def gather(xi, yi):
        valid = ((xi >= 0) & (xi <= W - 1) & (yi >= 0) & (yi <= H - 1)).astype(x.dtype)
        xc = jnp.clip(xi, 0, W - 1).astype(jnp.int32)
        yc = jnp.clip(yi, 0, H - 1).astype(jnp.int32)
        flat = (yc * W + xc).reshape(B, D * H * W, 1)
        g = jnp.take_along_axis(xf, flat, axis=1).reshape(B, D, H, W, C)
        return g * valid[..., None]

    return (gather(x0, y0) * (wx0 * wy0)[..., None]
            + gather(x1, y0) * (wx1 * wy0)[..., None]
            + gather(x0, y1) * (wx0 * wy1)[..., None]
            + gather(x1, y1) * (wx1 * wy1)[..., None])


def build_volume_2d3(feat_l, feat_r, maxdisp, disp, stride=1):
    """SharedNet._build_volume_2d3 on NHWC feats: warped L1 cost volume, D = 2*maxdisp-1."""
    B, H, W, C = feat_l.shape
    shifts = jnp.arange(-maxdisp + 1, maxdisp, dtype=jnp.float32) * stride      # (D,)
    batch_disp = disp[:, 0][:, None, :, :] - shifts[None, :, None, None]        # (B, D, H, W)
    warped = warp_nhwc_multi(feat_r, batch_disp)                                # (B, D, H, W, C)
    return l1_channel_reduce_bd(feat_l, warped)                                 # (B, D, H, W)


def avgpool2(x_nhwc):
    B, H, W, C = x_nhwc.shape
    return x_nhwc.reshape(B, H // 2, 2, W // 2, 2, C).mean(axis=(2, 4))


def feature_extraction(x_nchw, p):
    # TODO(synk): shared_feature_extraction_conv is not defined in the provided
    # source; stand-in: avgpool2 + Pallas 1x1-conv + ReLU pyramid producing the
    # same contract ([8C @ 1/8, 4C @ 1/4, 2C @ 1/2] feature maps, C = init_channels),
    # kept NHWC end-to-end so no intermediate transposes are materialized.
    x = jnp.transpose(x_nchw, (0, 2, 3, 1))                          # NHWC
    f2 = conv1x1(avgpool2(x), p['fe1_w'], p['fe1_b'], relu=True)     # 1/2, 2C
    f4 = conv1x1(avgpool2(f2), p['fe2_w'], p['fe2_b'], relu=True)    # 1/4, 4C
    f8 = conv1x1(avgpool2(f4), p['fe3_w'], p['fe3_b'], relu=True)    # 1/8, 8C
    return [f8, f4, f2]                                              # NHWC pyramid


def out_conv(x_nhwc, w, b):
    """OutConv = nn.Conv2d(Cin, Cout, kernel_size=1) -> Pallas 1x1 conv (NHWC)."""
    return conv1x1(x_nhwc, w, b, relu=False)


# ------------------------------ SharedNet forward ----------------------------
def shared_net_forward(p, left, right, maxdisplist=MAXDISPLIST):
    B, _, IH, IW = left.shape
    feats_l = feature_extraction(left, p)     # NHWC [1/8, 1/4, 1/2]
    feats_r = feature_extraction(right, p)

    # segmentation head (NHWC; class dim is tiny, one transpose at the end)
    sem_tmp1 = out_conv(feats_l[0], p['deal1_w'], p['deal1_b'])
    sem_tmp2 = out_conv(feats_l[1], p['deal2_w'], p['deal2_b']) + bilinear_resize_nhwc(
        sem_tmp1, feats_l[1].shape[1], feats_l[1].shape[2], align_corners=True)
    sem_res = out_conv(feats_l[2], p['deal3_w'], p['deal3_b']) + bilinear_resize_nhwc(
        sem_tmp2, feats_l[2].shape[1], feats_l[2].shape[2], align_corners=True)
    sem_res = jnp.transpose(sem_res, (0, 3, 1, 2))   # -> NCHW

    # disparity pyramid
    pred = []
    for scale in range(len(feats_l)):
        fl, fr = feats_l[scale], feats_r[scale]
        H, W = fl.shape[1], fl.shape[2]
        if scale > 0:
            wflow = bilinear_resize_nchw(pred[scale - 1], H, W, align_corners=False) * H / IH
            cost = build_volume_2d3(fl, fr, maxdisplist[scale], wflow, stride=1)
        else:
            cost = build_volume_2d(fl, fr, maxdisplist[0])
        # TODO(synk): self.volume_postprocess (3D conv stack) is used in forward but
        # never defined in the provided module; applied as identity here.
        if scale == 0:
            pred_low_res = softmax_disparity_regression(cost, start=0)
        else:
            pred_low_res = softmax_disparity_regression(cost, start=-maxdisplist[scale] + 1)
        pred_low_res = pred_low_res * IH / pred_low_res.shape[2]
        disp_up = bilinear_resize_nchw(pred_low_res, IH, IW, align_corners=False)
        if scale == 0:
            pred.append(disp_up)
        else:
            pred.append(disp_up + pred[scale - 1])
    return sem_res, pred


# ------------------------------- parameters ----------------------------------
def init_params(key, img_channels=IMG_CHANNELS, num_classes=NUM_CLASSES,
                init_channels=INIT_CHANNELS):
    C = init_channels
    ks = jax.random.split(key, 9)
    w = lambda k, s: (0.05 * jax.random.normal(k, s, jnp.float32))
    return {
        'fe1_w': w(ks[0], (img_channels, 2 * C)), 'fe1_b': jnp.zeros((2 * C,), jnp.float32),
        'fe2_w': w(ks[1], (2 * C, 4 * C)),        'fe2_b': jnp.zeros((4 * C,), jnp.float32),
        'fe3_w': w(ks[2], (4 * C, 8 * C)),        'fe3_b': jnp.zeros((8 * C,), jnp.float32),
        'deal1_w': w(ks[3], (8 * C, num_classes)), 'deal1_b': w(ks[6], (num_classes,)),
        'deal2_w': w(ks[4], (4 * C, num_classes)), 'deal2_b': w(ks[7], (num_classes,)),
        'deal3_w': w(ks[5], (2 * C, num_classes)), 'deal3_b': w(ks[8], (num_classes,)),
    }


# ---------------------------------- main --------------------------------------
if __name__ == "__main__":
    key = jax.random.PRNGKey(0)
    k_l, k_r, k_p = jax.random.split(key, 3)
    B, H, W = 2, 16, 16
    left = jax.random.normal(k_l, (B, IMG_CHANNELS, H, W), jnp.float32)
    right = jax.random.normal(k_r, (B, IMG_CHANNELS, H, W), jnp.float32)
    params = init_params(k_p)

    fwd = jax.jit(shared_net_forward)
    sem_res, pred = fwd(params, left, right)
    jax.block_until_ready(sem_res)
    for p_ in pred:
        jax.block_until_ready(p_)

    assert sem_res.shape == (B, NUM_CLASSES, H // 2, W // 2)
    assert all(p_.shape == (B, 1, H, W) for p_ in pred)
    print("KERNEL_OK")
</pallas_src>

<mosaic_0001>
module attributes {stable_mosaic.version = 11 : i64} {
  func.func @kernel(%arg0: i32, %arg1: memref<128x3xbf16, #tpu.memory_space<vmem>>, %arg2: memref<3x128xbf16, #tpu.memory_space<vmem>>, %arg3: memref<1x128xf32, #tpu.memory_space<vmem>>, %arg4: memref<128x128xf32, #tpu.memory_space<vmem>>) attributes {dimension_semantics = [#tpu.dimension_semantics<parallel>], iteration_bounds = array<i64: 1>, scalar_prefetch = 0 : i64, scratch_operands = 0 : i64, tpu.core_type = #tpu.core_type<tc>, window_params = [{transform_indices = @transform_0, window_bounds = array<i64: 128, 3>}, {pipeline_mode = #tpu.pipeline_mode<synchronous>, transform_indices = @transform_1, window_bounds = array<i64: 3, 128>}, {pipeline_mode = #tpu.pipeline_mode<synchronous>, transform_indices = @transform_2, window_bounds = array<i64: 1, 128>}, {transform_indices = @transform_3, window_bounds = array<i64: 128, 128>}]} {
    %c0 = arith.constant 0 : index
    %c0_0 = arith.constant 0 : index
    %0 = vector.load %arg1[%c0, %c0_0] : memref<128x3xbf16, #tpu.memory_space<vmem>>, vector<128x3xbf16>
    %c0_1 = arith.constant 0 : index
    %c0_2 = arith.constant 0 : index
    %1 = vector.load %arg2[%c0_1, %c0_2] : memref<3x128xbf16, #tpu.memory_space<vmem>>, vector<3x128xbf16>
    %cst = arith.constant dense<0.000000e+00> : vector<128x128xf32>
    %2 = tpu.matmul %0, %1, %cst {dimension_numbers = #tpu.dot_dimension_numbers<[1], [0], [0], [1], [0, 0, 1, 1], [], []>} : vector<128x3xbf16>, vector<3x128xbf16>, vector<128x128xf32> -> vector<128x128xf32>
    %c0_3 = arith.constant 0 : index
    %c0_4 = arith.constant 0 : index
    %3 = vector.load %arg3[%c0_3, %c0_4] : memref<1x128xf32, #tpu.memory_space<vmem>>, vector<1x128xf32>
    %4 = vector.broadcast %3 : vector<1x128xf32> to vector<128x128xf32>
    %5 = arith.addf %2, %4 : vector<128x128xf32>
    %cst_5 = arith.constant 0.000000e+00 : f32
    %6 = vector.broadcast %cst_5 : f32 to vector<128x128xf32>
    %7 = arith.maximumf %5, %6 : vector<128x128xf32>
    %c0_6 = arith.constant 0 : index
    %c0_7 = arith.constant 0 : index
    %8 = vector.load %arg4[%c0_6, %c0_7] : memref<128x128xf32, #tpu.memory_space<vmem>>, vector<128x128xf32>
    tpu.vector_store %arg4[%c0_6, %c0_7], %7 {strides = array<i32>} : memref<128x128xf32, #tpu.memory_space<vmem>>, vector<128x128xf32>,
    return
  }
  func.func @transform_0(%arg0: i32) -> (i32, i32) {
    %c0_i32 = arith.constant 0 : i32
    %c0_i32_0 = arith.constant 0 : i32
    return %arg0, %c0_i32 : i32, i32
  }
  func.func @transform_1(%arg0: i32) -> (i32, i32) {
    %c0_i32 = arith.constant 0 : i32
    %c0_i32_0 = arith.constant 0 : i32
    %c0_i32_1 = arith.constant 0 : i32
    return %c0_i32, %c0_i32_0 : i32, i32
  }
  func.func @transform_2(%arg0: i32) -> (i32, i32) {
    %c0_i32 = arith.constant 0 : i32
    %c0_i32_0 = arith.constant 0 : i32
    %c0_i32_1 = arith.constant 0 : i32
    return %c0_i32, %c0_i32_0 : i32, i32
  }
  func.func @transform_3(%arg0: i32) -> (i32, i32) {
    %c0_i32 = arith.constant 0 : i32
    %c0_i32_0 = arith.constant 0 : i32
    return %arg0, %c0_i32 : i32, i32
  }
}

module attributes {stable_mosaic.version = 11 : i64} {
  func.func @kernel(%arg0: i32, %arg1: memref<32x128xbf16, #tpu.memory_space<vmem>>, %arg2: memref<128x256xbf16, #tpu.memory_space<vmem>>, %arg3: memref<1x256xf32, #tpu.memory_space<vmem>>, %arg4: memref<32x256xf32, #tpu.memory_space<vmem>>) attributes {dimension_semantics = [#tpu.dimension_semantics<parallel>], iteration_bounds = array<i64: 1>, scalar_prefetch = 0 : i64, scratch_operands = 0 : i64, tpu.core_type = #tpu.core_type<tc>, window_params = [{transform_indices = @transform_0, window_bounds = array<i64: 32, 128>}, {pipeline_mode = #tpu.pipeline_mode<synchronous>, transform_indices = @transform_1, window_bounds = array<i64: 128, 256>}, {pipeline_mode = #tpu.pipeline_mode<synchronous>, transform_indices = @transform_2, window_bounds = array<i64: 1, 256>}, {transform_indices = @transform_3, window_bounds = array<i64: 32, 256>}]} {
    %c0 = arith.constant 0 : index
    %c0_0 = arith.constant 0 : index
    %0 = vector.load %arg1[%c0, %c0_0] : memref<32x128xbf16, #tpu.memory_space<vmem>>, vector<32x128xbf16>
    %c0_1 = arith.constant 0 : index
    %c0_2 = arith.constant 0 : index
    %1 = vector.load %arg2[%c0_1, %c0_2] : memref<128x256xbf16, #tpu.memory_space<vmem>>, vector<128x256xbf16>
    %cst = arith.constant dense<0.000000e+00> : vector<32x256xf32>
    %2 = tpu.matmul %0, %1, %cst {dimension_numbers = #tpu.dot_dimension_numbers<[1], [0], [0], [1], [0, 0, 1, 1], [], []>} : vector<32x128xbf16>, vector<128x256xbf16>, vector<32x256xf32> -> vector<32x256xf32>
    %c0_3 = arith.constant 0 : index
    %c0_4 = arith.constant 0 : index
    %3 = vector.load %arg3[%c0_3, %c0_4] : memref<1x256xf32, #tpu.memory_space<vmem>>, vector<1x256xf32>
    %4 = vector.broadcast %3 : vector<1x256xf32> to vector<32x256xf32>
    %5 = arith.addf %2, %4 : vector<32x256xf32>
    %cst_5 = arith.constant 0.000000e+00 : f32
    %6 = vector.broadcast %cst_5 : f32 to vector<32x256xf32>
    %7 = arith.maximumf %5, %6 : vector<32x256xf32>
    %c0_6 = arith.constant 0 : index
    %c0_7 = arith.constant 0 : index
    %8 = vector.load %arg4[%c0_6, %c0_7] : memref<32x256xf32, #tpu.memory_space<vmem>>, vector<32x256xf32>
    tpu.vector_store %arg4[%c0_6, %c0_7], %7 {strides = array<i32>} : memref<32x256xf32, #tpu.memory_space<vmem>>, vector<32x256xf32>,
    return
  }
  func.func @transform_0(%arg0: i32) -> (i32, i32) {
    %c0_i32 = arith.constant 0 : i32
    %c0_i32_0 = arith.constant 0 : i32
    return %arg0, %c0_i32 : i32, i32
  }
  func.func @transform_1(%arg0: i32) -> (i32, i32) {
    %c0_i32 = arith.constant 0 : i32
    %c0_i32_0 = arith.constant 0 : i32
    %c0_i32_1 = arith.constant 0 : i32
    return %c0_i32, %c0_i32_0 : i32, i32
  }
  func.func @transform_2(%arg0: i32) -> (i32, i32) {
    %c0_i32 = arith.constant 0 : i32
    %c0_i32_0 = arith.constant 0 : i32
    %c0_i32_1 = arith.constant 0 : i32
    return %c0_i32, %c0_i32_0 : i32, i32
  }
  func.func @transform_3(%arg0: i32) -> (i32, i32) {
    %c0_i32 = arith.constant 0 : i32
    %c0_i32_0 = arith.constant 0 : i32
    return %arg0, %c0_i32 : i32, i32
  }
}

module attributes {stable_mosaic.version = 11 : i64} {
  func.func @kernel(%arg0: i32, %arg1: memref<8x256xbf16, #tpu.memory_space<vmem>>, %arg2: memref<256x512xbf16, #tpu.memory_space<vmem>>, %arg3: memref<1x512xf32, #tpu.memory_space<vmem>>, %arg4: memref<8x512xf32, #tpu.memory_space<vmem>>) attributes {dimension_semantics = [#tpu.dimension_semantics<parallel>], iteration_bounds = array<i64: 1>, scalar_prefetch = 0 : i64, scratch_operands = 0 : i64, tpu.core_type = #tpu.core_type<tc>, window_params = [{transform_indices = @transform_0, window_bounds = array<i64: 8, 256>}, {pipeline_mode = #tpu.pipeline_mode<synchronous>, transform_indices = @transform_1, window_bounds = array<i64: 256, 512>}, {pipeline_mode = #tpu.pipeline_mode<synchronous>, transform_indices = @transform_2, window_bounds = array<i64: 1, 512>}, {transform_indices = @transform_3, window_bounds = array<i64: 8, 512>}]} {
    %c0 = arith.constant 0 : index
    %c0_0 = arith.constant 0 : index
    %0 = vector.load %arg1[%c0, %c0_0] : memref<8x256xbf16, #tpu.memory_space<vmem>>, vector<8x256xbf16>
    %c0_1 = arith.constant 0 : index
    %c0_2 = arith.constant 0 : index
    %1 = vector.load %arg2[%c0_1, %c0_2] : memref<256x512xbf16, #tpu.memory_space<vmem>>, vector<256x512xbf16>
    %cst = arith.constant dense<0.000000e+00> : vector<8x512xf32>
    %2 = tpu.matmul %0, %1, %cst {dimension_numbers = #tpu.dot_dimension_numbers<[1], [0], [0], [1], [0, 0, 1, 1], [], []>} : vector<8x256xbf16>, vector<256x512xbf16>, vector<8x512xf32> -> vector<8x512xf32>
    %c0_3 = arith.constant 0 : index
    %c0_4 = arith.constant 0 : index
    %3 = vector.load %arg3[%c0_3, %c0_4] : memref<1x512xf32, #tpu.memory_space<vmem>>, vector<1x512xf32>
    %4 = vector.broadcast %3 : vector<1x512xf32> to vector<8x512xf32>
    %5 = arith.addf %2, %4 : vector<8x512xf32>
    %cst_5 = arith.constant 0.000000e+00 : f32
    %6 = vector.broadcast %cst_5 : f32 to vector<8x512xf32>
    %7 = arith.maximumf %5, %6 : vector<8x512xf32>
    %c0_6 = arith.constant 0 : index
    %c0_7 = arith.constant 0 : index
    %8 = vector.load %arg4[%c0_6, %c0_7] : memref<8x512xf32, #tpu.memory_space<vmem>>, vector<8x512xf32>
    tpu.vector_store %arg4[%c0_6, %c0_7], %7 {strides = array<i32>} : memref<8x512xf32, #tpu.memory_space<vmem>>, vector<8x512xf32>,
    return
  }
  func.func @transform_0(%arg0: i32) -> (i32, i32) {
    %c0_i32 = arith.constant 0 : i32
    %c0_i32_0 = arith.constant 0 : i32
    return %arg0, %c0_i32 : i32, i32
  }
  func.func @transform_1(%arg0: i32) -> (i32, i32) {
    %c0_i32 = arith.constant 0 : i32
    %c0_i32_0 = arith.constant 0 : i32
    %c0_i32_1 = arith.constant 0 : i32
    return %c0_i32, %c0_i32_0 : i32, i32
  }
  func.func @transform_2(%arg0: i32) -> (i32, i32) {
    %c0_i32 = arith.constant 0 : i32
    %c0_i32_0 = arith.constant 0 : i32
    %c0_i32_1 = arith.constant 0 : i32
    return %c0_i32, %c0_i32_0 : i32, i32
  }
  func.func @transform_3(%arg0: i32) -> (i32, i32) {
    %c0_i32 = arith.constant 0 : i32
    %c0_i32_0 = arith.constant 0 : i32
    return %arg0, %c0_i32 : i32, i32
  }
}

module attributes {stable_mosaic.version = 11 : i64} {
  func.func @kernel(%arg0: i32, %arg1: i32, %arg2: memref<1x2x2x512xf32, #tpu.memory_space<vmem>>, %arg3: memref<1x2x13x512xf32, #tpu.memory_space<vmem>>, %arg4: memref<1x12x2x2xf32, #tpu.memory_space<vmem>>) attributes {dimension_semantics = [#tpu.dimension_semantics<parallel>, #tpu.dimension_semantics<parallel>], iteration_bounds = array<i64: 2, 1>, scalar_prefetch = 0 : i64, scratch_operands = 0 : i64, tpu.core_type = #tpu.core_type<tc>, window_params = [{transform_indices = @transform_0, window_bounds = array<i64: 1, 2, 2, 512>}, {transform_indices = @transform_1, window_bounds = array<i64: 1, 2, 13, 512>}, {transform_indices = @transform_2, window_bounds = array<i64: 1, 12, 2, 2>}]} {
    %c0 = arith.constant 0 : index
    %c0_0 = arith.constant 0 : index
    %c0_1 = arith.constant 0 : index
    %c0_2 = arith.constant 0 : index
    %0 = vector.load %arg2[%c0, %c0_0, %c0_1, %c0_2] : memref<1x2x2x512xf32, #tpu.memory_space<vmem>>, vector<1x2x2x512xf32>
    %1 = vector.shape_cast %0 : vector<1x2x2x512xf32> to vector<2x2x512xf32>
    %c0_3 = arith.constant 0 : index
    %c0_4 = arith.constant 0 : index
    %c11 = arith.constant 11 : index
    %c0_5 = arith.constant 0 : index
    %2 = vector.load %arg3[%c0_3, %c0_4, %c11, %c0_5] : memref<1x2x13x512xf32, #tpu.memory_space<vmem>>, vector<1x2x2x512xf32>
    %3 = vector.shape_cast %2 : vector<1x2x2x512xf32> to vector<2x2x512xf32>
    %4 = arith.subf %1, %3 : vector<2x2x512xf32>
    %5 = math.absf %4 : vector<2x2x512xf32>
    %cst = arith.constant dense<0.000000e+00> : vector<2x2xf32>
    %6 = vector.multi_reduction <add>, %5, %cst [2] : vector<2x2x512xf32> to vector<2x2xf32>
    %c0_6 = arith.constant 0 : index
    %c0_7 = arith.constant 0 : index
    %c0_8 = arith.constant 0 : index
    %c0_9 = arith.constant 0 : index
    %7 = vector.load %arg4[%c0_6, %c0_7, %c0_8, %c0_9] : memref<1x12x2x2xf32, #tpu.memory_space<vmem>>, vector<1x1x2x2xf32>
    %8 = vector.shape_cast %7 : vector<1x1x2x2xf32> to vector<2x2xf32>
    %9 = vector.shape_cast %6 : vector<2x2xf32> to vector<1x1x2x2xf32>
    tpu.vector_store %arg4[%c0_6, %c0_7, %c0_8, %c0_9], %9 {strides = array<i32>} : memref<1x12x2x2xf32, #tpu.memory_space<vmem>>, vector<1x1x2x2xf32>,
    %c0_10 = arith.constant 0 : index
    %c0_11 = arith.constant 0 : index
    %c10 = arith.constant 10 : index
    %c0_12 = arith.constant 0 : index
    %10 = vector.load %arg3[%c0_10, %c0_11, %c10, %c0_12] : memref<1x2x13x512xf32, #tpu.memory_space<vmem>>, vector<1x2x2x512xf32>
    %11 = vector.shape_cast %10 : vector<1x2x2x512xf32> to vector<2x2x512xf32>
    %12 = arith.subf %1, %11 : vector<2x2x512xf32>
    %13 = math.absf %12 : vector<2x2x512xf32>
    %cst_13 = arith.constant dense<0.000000e+00> : vector<2x2xf32>
    %14 = vector.multi_reduction <add>, %13, %cst_13 [2] : vector<2x2x512xf32> to vector<2x2xf32>
    %c0_14 = arith.constant 0 : index
    %c1 = arith.constant 1 : index
    %c0_15 = arith.constant 0 : index
    %c0_16 = arith.constant 0 : index
    %15 = vector.load %arg4[%c0_14, %c1, %c0_15, %c0_16] : memref<1x12x2x2xf32, #tpu.memory_space<vmem>>, vector<1x1x2x2xf32>
    %16 = vector.shape_cast %15 : vector<1x1x2x2xf32> to vector<2x2xf32>
    %17 = vector.shape_cast %14 : vector<2x2xf32> to vector<1x1x2x2xf32>
    tpu.vector_store %arg4[%c0_14, %c1, %c0_15, %c0_16], %17 {strides = array<i32>} : memref<1x12x2x2xf32, #tpu.memory_space<vmem>>, vector<1x1x2x2xf32>,
    %c0_17 = arith.constant 0 : index
    %c0_18 = arith.constant 0 : index
    %c9 = arith.constant 9 : index
    %c0_19 = arith.constant 0 : index
    %18 = vector.load %arg3[%c0_17, %c0_18, %c9, %c0_19] : memref<1x2x13x512xf32, #tpu.memory_space<vmem>>, vector<1x2x2x512xf32>
    %19 = vector.shape_cast %18 : vector<1x2x2x512xf32> to vector<2x2x512xf32>
    %20 = arith.subf %1, %19 : vector<2x2x512xf32>
    %21 = math.absf %20 : vector<2x2x512xf32>
    %cst_20 = arith.constant dense<0.000000e+00> : vector<2x2xf32>
    %22 = vector.multi_reduction <add>, %21, %cst_20 [2] : vector<2x2x512xf32> to vector<2x2xf32>
    %c0_21 = arith.constant 0 : index
    %c2 = arith.constant 2 : index
    %c0_22 = arith.constant 0 : index
    %c0_23 = arith.constant 0 : index
    %23 = vector.load %arg4[%c0_21, %c2, %c0_22, %c0_23] : memref<1x12x2x2xf32, #tpu.memory_space<vmem>>, vector<1x1x2x2xf32>
    %24 = vector.shape_cast %23 : vector<1x1x2x2xf32> to vector<2x2xf32>
    %25 = vector.shape_cast %22 : vector<2x2xf32> to vector<1x1x2x2xf32>
    tpu.vector_store %arg4[%c0_21, %c2, %c0_22, %c0_23], %25 {strides = array<i32>} : memref<1x12x2x2xf32, #tpu.memory_space<vmem>>, vector<1x1x2x2xf32>,
    %c0_24 = arith.constant 0 : index
    %c0_25 = arith.constant 0 : index
    %c8 = arith.constant 8 : index
    %c0_26 = arith.constant 0 : index
    %26 = vector.load %arg3[%c0_24, %c0_25, %c8, %c0_26] : memref<1x2x13x512xf32, #tpu.memory_space<vmem>>, vector<1x2x2x512xf32>
    %27 = vector.shape_cast %26 : vector<1x2x2x512xf32> to vector<2x2x512xf32>
    %28 = arith.subf %1, %27 : vector<2x2x512xf32>
    %29 = math.absf %28 : vector<2x2x512xf32>
    %cst_27 = arith.constant dense<0.000000e+00> : vector<2x2xf32>
    %30 = vector.multi_reduction <add>, %29, %cst_27 [2] : vector<2x2x512xf32> to vector<2x2xf32>
    %c0_28 = arith.constant 0 : index
    %c3 = arith.constant 3 : index
    %c0_29 = arith.constant 0 : index
    %c0_30 = arith.constant 0 : index
    %31 = vector.load %arg4[%c0_28, %c3, %c0_29, %c0_30] : memref<1x12x2x2xf32, #tpu.memory_space<vmem>>, vector<1x1x2x2xf32>
    %32 = vector.shape_cast %31 : vector<1x1x2x2xf32> to vector<2x2xf32>
    %33 = vector.shape_cast %30 : vector<2x2xf32> to vector<1x1x2x2xf32>
    tpu.vector_store %arg4[%c0_28, %c3, %c0_29, %c0_30], %33 {strides = array<i32>} : memref<1x12x2x2xf32, #tpu.memory_space<vmem>>, vector<1x1x2x2xf32>,
    %c0_31 = arith.constant 0 : index
    %c0_32 = arith.constant 0 : index
    %c7 = arith.constant 7 : index
    %c0_33 = arith.constant 0 : index
    %34 = vector.load %arg3[%c0_31, %c0_32, %c7, %c0_33] : memref<1x2x13x512xf32, #tpu.memory_space<vmem>>, vector<1x2x2x512xf32>
    %35 = vector.shape_cast %34 : vector<1x2x2x512xf32> to vector<2x2x512xf32>
    %36 = arith.subf %1, %35 : vector<2x2x512xf32>
    %37 = math.absf %36 : vector<2x2x512xf32>
    %cst_34 = arith.constant dense<0.000000e+00> : vector<2x2xf32>
    %38 = vector.multi_reduction <add>, %37, %cst_34 [2] : vector<2x2x512xf32> to vector<2x2xf32>
    %c0_35 = arith.constant 0 : index
    %c4 = arith.constant 4 : index
    %c0_36 = arith.constant 0 : index
    %c0_37 = arith.constant 0 : index
    %39 = vector.load %arg4[%c0_35, %c4, %c0_36, %c0_37] : memref<1x12x2x2xf32, #tpu.memory_space<vmem>>, vector<1x1x2x2xf32>
    %40 = vector.shape_cast %39 : vector<1x1x2x2xf32> to vector<2x2xf32>
    %41 = vector.shape_cast %38 : vector<2x2xf32> to vector<1x1x2x2xf32>
    tpu.vector_store %arg4[%c0_35, %c4, %c0_36, %c0_37], %41 {strides = array<i32>} : memref<1x12x2x2xf32, #tpu.memory_space<vmem>>, vector<1x1x2x2xf32>,
    %c0_38 = arith.constant 0 : index
    %c0_39 = arith.constant 0 : index
    %c6 = arith.constant 6 : index
    %c0_40 = arith.constant 0 : index
    %42 = vector.load %arg3[%c0_38, %c0_39, %c6, %c0_40] : memref<1x2x13x512xf32, #tpu.memory_space<vmem>>, vector<1x2x2x512xf32>
    %43 = vector.shape_cast %42 : vector<1x2x2x512xf32> to vector<2x2x512xf32>
    %44 = arith.subf %1, %43 : vector<2x2x512xf32>
    %45 = math.absf %44 : vector<2x2x512xf32>
    %cst_41 = arith.constant dense<0.000000e+00> : vector<2x2xf32>
    %46 = vector.multi_reduction <add>, %45, %cst_41 [2] : vector<2x2x512xf32> to vector<2x2xf32>
    %c0_42 = arith.constant 0 : index
    %c5 = arith.constant 5 : index
    %c0_43 = arith.constant 0 : index
    %c0_44 = arith.constant 0 : index
    %47 = vector.load %arg4[%c0_42, %c5, %c0_43, %c0_44] : memref<1x12x2x2xf32, #tpu.memory_space<vmem>>, vector<1x1x2x2xf32>
    %48 = vector.shape_cast %47 : vector<1x1x2x2xf32> to vector<2x2xf32>
    %49 = vector.shape_cast %46 : vector<2x2xf32> to vector<1x1x2x2xf32>
    tpu.vector_store %arg4[%c0_42, %c5, %c0_43, %c0_44], %49 {strides = array<i32>} : memref<1x12x2x2xf32, #tpu.memory_space<vmem>>, vector<1x1x2x2xf32>,
    %c0_45 = arith.constant 0 : index
    %c0_46 = arith.constant 0 : index
    %c5_47 = arith.constant 5 : index
    %c0_48 = arith.constant 0 : index
    %50 = vector.load %arg3[%c0_45, %c0_46, %c5_47, %c0_48] : memref<1x2x13x512xf32, #tpu.memory_space<vmem>>, vector<1x2x2x512xf32>
    %51 = vector.shape_cast %50 : vector<1x2x2x512xf32> to vector<2x2x512xf32>
    %52 = arith.subf %1, %51 : vector<2x2x512xf32>
    %53 = math.absf %52 : vector<2x2x512xf32>
    %cst_49 = arith.constant dense<0.000000e+00> : vector<2x2xf32>
    %54 = vector.multi_reduction <add>, %53, %cst_49 [2] : vector<2x2x512xf32> to vector<2x2xf32>
    %c0_50 = arith.constant 0 : index
    %c6_51 = arith.constant 6 : index
    %c0_52 = arith.constant 0 : index
    %c0_53 = arith.constant 0 : index
    %55 = vector.load %arg4[%c0_50, %c6_51, %c0_52, %c0_53] : memref<1x12x2x2xf32, #tpu.memory_space<vmem>>, vector<1x1x2x2xf32>
    %56 = vector.shape_cast %55 : vector<1x1x2x2xf32> to vector<2x2xf32>
    %57 = vector.shape_cast %54 : vector<2x2xf32> to vector<1x1x2x2xf32>
    tpu.vector_store %arg4[%c0_50, %c6_51, %c0_52, %c0_53], %57 {strides = array<i32>} : memref<1x12x2x2xf32, #tpu.memory_space<vmem>>, vector<1x1x2x2xf32>,
    %c0_54 = arith.constant 0 : index
    %c0_55 = arith.constant 0 : index
    %c4_56 = arith.constant 4 : index
    %c0_57 = arith.constant 0 : index
    %58 = vector.load %arg3[%c0_54, %c0_55, %c4_56, %c0_57] : memref<1x2x13x512xf32, #tpu.memory_space<vmem>>, vector<1x2x2x512xf32>
    %59 = vector.shape_cast %58 : vector<1x2x2x512xf32> to vector<2x2x512xf32>
    %60 = arith.subf %1, %59 : vector<2x2x512xf32>
    %61 = math.absf %60 : vector<2x2x512xf32>
    %cst_58 = arith.constant dense<0.000000e+00> : vector<2x2xf32>
    %62 = vector.multi_reduction <add>, %61, %cst_58 [2] : vector<2x2x512xf32> to vector<2x2xf32>
    %c0_59 = arith.constant 0 : index
    %c7_60 = arith.constant 7 : index
    %c0_61 = arith.constant 0 : index
    %c0_62 = arith.constant 0 : index
    %63 = vector.load %arg4[%c0_59, %c7_60, %c0_61, %c0_62] : memref<1x12x2x2xf32, #tpu.memory_space<vmem>>, vector<1x1x2x2xf32>
    %64 = vector.shape_cast %63 : vector<1x1x2x2xf32> to vector<2x2xf32>
    %65 = vector.shape_cast %62 : vector<2x2xf32> to vector<1x1x2x2xf32>
    tpu.vector_store %arg4[%c0_59, %c7_60, %c0_61, %c0_62], %65 {strides = array<i32>} : memref<1x12x2x2xf32, #tpu.memory_space<vmem>>, vector<1x1x2x2xf32>,
    %c0_63 = arith.constant 0 : index
    %c0_64 = arith.constant 0 : index
    %c3_65 = arith.constant 3 : index
    %c0_66 = arith.constant 0 : index
    %66 = vector.load %arg3[%c0_63, %c0_64, %c3_65, %c0_66] : memref<1x2x13x512xf32, #tpu.memory_space<vmem>>, vector<1x2x2x512xf32>
    %67 = vector.shape_cast %66 : vector<1x2x2x512xf32> to vector<2x2x512xf32>
    %68 = arith.subf %1, %67 : vector<2x2x512xf32>
    %69 = math.absf %68 : vector<2x2x512xf32>
    %cst_67 = arith.constant dense<0.000000e+00> : vector<2x2xf32>
    %70 = vector.multi_reduction <add>, %69, %cst_67 [2] : vector<2x2x512xf32> to vector<2x2xf32>
    %c0_68 = arith.constant 0 : index
    %c8_69 = arith.constant 8 : index
    %c0_70 = arith.constant 0 : index
    %c0_71 = arith.constant 0 : index
    %71 = vector.load %arg4[%c0_68, %c8_69, %c0_70, %c0_71] : memref<1x12x2x2xf32, #tpu.memory_space<vmem>>, vector<1x1x2x2xf32>
    %72 = vector.shape_cast %71 : vector<1x1x2x2xf32> to vector<2x2xf32>
    %73 = vector.shape_cast %70 : vector<2x2xf32> to vector<1x1x2x2xf32>
    tpu.vector_store %arg4[%c0_68, %c8_69, %c0_70, %c0_71], %73 {strides = array<i32>} : memref<1x12x2x2xf32, #tpu.memory_space<vmem>>, vector<1x1x2x2xf32>,
    %c0_72 = arith.constant 0 : index
    %c0_73 = arith.constant 0 : index
    %c2_74 = arith.constant 2 : index
    %c0_75 = arith.constant 0 : index
    %74 = vector.load %arg3[%c0_72, %c0_73, %c2_74, %c0_75] : memref<1x2x13x512xf32, #tpu.memory_space<vmem>>, vector<1x2x2x512xf32>
    %75 = vector.shape_cast %74 : vector<1x2x2x512xf32> to vector<2x2x512xf32>
    %76 = arith.subf %1, %75 : vector<2x2x512xf32>
    %77 = math.absf %76 : vector<2x2x512xf32>
    %cst_76 = arith.constant dense<0.000000e+00> : vector<2x2xf32>
    %78 = vector.multi_reduction <add>, %77, %cst_76 [2] : vector<2x2x512xf32> to vector<2x2xf32>
    %c0_77 = arith.constant 0 : index
    %c9_78 = arith.constant 9 : index
    %c0_79 = arith.constant 0 : index
    %c0_80 = arith.constant 0 : index
    %79 = vector.load %arg4[%c0_77, %c9_78, %c0_79, %c0_80] : memref<1x12x2x2xf32, #tpu.memory_space<vmem>>, vector<1x1x2x2xf32>
    %80 = vector.shape_cast %79 : vector<1x1x2x2xf32> to vector<2x2xf32>
    %81 = vector.shape_cast %78 : vector<2x2xf32> to vector<1x1x2x2xf32>
    tpu.vector_store %arg4[%c0_77, %c9_78, %c0_79, %c0_80], %81 {strides = array<i32>} : memref<1x12x2x2xf32, #tpu.memory_space<vmem>>, vector<1x1x2x2xf32>,
    %c0_81 = arith.constant 0 : index
    %c0_82 = arith.constant 0 : index
    %c1_83 = arith.constant 1 : index
    %c0_84 = arith.constant 0 : index
    %82 = vector.load %arg3[%c0_81, %c0_82, %c1_83, %c0_84] : memref<1x2x13x512xf32, #tpu.memory_space<vmem>>, vector<1x2x2x512xf32>
    %83 = vector.shape_cast %82 : vector<1x2x2x512xf32> to vector<2x2x512xf32>
    %84 = arith.subf %1, %83 : vector<2x2x512xf32>
    %85 = math.absf %84 : vector<2x2x512xf32>
    %cst_85 = arith.constant dense<0.000000e+00> : vector<2x2xf32>
    %86 = vector.multi_reduction <add>, %85, %cst_85 [2] : vector<2x2x512xf32> to vector<2x2xf32>
    %c0_86 = arith.constant 0 : index
    %c10_87 = arith.constant 10 : index
    %c0_88 = arith.constant 0 : index
    %c0_89 = arith.constant 0 : index
    %87 = vector.load %arg4[%c0_86, %c10_87, %c0_88, %c0_89] : memref<1x12x2x2xf32, #tpu.memory_space<vmem>>, vector<1x1x2x2xf32>
    %88 = vector.shape_cast %87 : vector<1x1x2x2xf32> to vector<2x2xf32>
    %89 = vector.shape_cast %86 : vector<2x2xf32> to vector<1x1x2x2xf32>
    tpu.vector_store %arg4[%c0_86, %c10_87, %c0_88, %c0_89], %89 {strides = array<i32>} : memref<1x12x2x2xf32, #tpu.memory_space<vmem>>, vector<1x1x2x2xf32>,
    %c0_90 = arith.constant 0 : index
    %c0_91 = arith.constant 0 : index
    %c0_92 = arith.constant 0 : index
    %c0_93 = arith.constant 0 : index
    %90 = vector.load %arg3[%c0_90, %c0_91, %c0_92, %c0_93] : memref<1x2x13x512xf32, #tpu.memory_space<vmem>>, vector<1x2x2x512xf32>
    %91 = vector.shape_cast %90 : vector<1x2x2x512xf32> to vector<2x2x512xf32>
    %92 = arith.subf %1, %91 : vector<2x2x512xf32>
    %93 = math.absf %92 : vector<2x2x512xf32>
    %cst_94 = arith.constant dense<0.000000e+00> : vector<2x2xf32>
    %94 = vector.multi_reduction <add>, %93, %cst_94 [2] : vector<2x2x512xf32> to vector<2x2xf32>
    %c0_95 = arith.constant 0 : index
    %c11_96 = arith.constant 11 : index
    %c0_97 = arith.constant 0 : index
    %c0_98 = arith.constant 0 : index
    %95 = vector.load %arg4[%c0_95, %c11_96, %c0_97, %c0_98] : memref<1x12x2x2xf32, #tpu.memory_space<vmem>>, vector<1x1x2x2xf32>
    %96 = vector.shape_cast %95 : vector<1x1x2x2xf32> to vector<2x2xf32>
    %97 = vector.shape_cast %94 : vector<2x2xf32> to vector<1x1x2x2xf32>
    tpu.vector_store %arg4[%c0_95, %c11_96, %c0_97, %c0_98], %97 {strides = array<i32>} : memref<1x12x2x2xf32, #tpu.memory_space<vmem>>, vector<1x1x2x2xf32>,
    return
  }
  func.func @transform_0(%arg0: i32, %arg1: i32) -> (i32, i32, i32, i32) {
    %c0_i32 = arith.constant 0 : i32
    %c0_i32_0 = arith.constant 0 : i32
    %c0_i32_1 = arith.constant 0 : i32
    return %arg0, %arg1, %c0_i32, %c0_i32_0 : i32, i32, i32, i32
  }
  func.func @transform_1(%arg0: i32, %arg1: i32) -> (i32, i32, i32, i32) {
    %c0_i32 = arith.constant 0 : i32
    %c0_i32_0 = arith.constant 0 : i32
    %c0_i32_1 = arith.constant 0 : i32
    return %arg0, %arg1, %c0_i32, %c0_i32_0 : i32, i32, i32, i32
  }
  func.func @transform_2(%arg0: i32, %arg1: i32) -> (i32, i32, i32, i32) {
    %c0_i32 = arith.constant 0 : i32
    %c0_i32_0 = arith.constant 0 : i32
    %c0_i32_1 = arith.constant 0 : i32
    return %arg0, %c0_i32, %arg1, %c0_i32_0 : i32, i32, i32, i32
  }
}

module attributes {stable_mosaic.version = 11 : i64} {
  func.func @kernel(%arg0: i32, %arg1: i32, %arg2: memref<1x12x4xf32, #tpu.memory_space<vmem>>, %arg3: memref<1x1x4xf32, #tpu.memory_space<vmem>>) attributes {dimension_semantics = [#tpu.dimension_semantics<parallel>, #tpu.dimension_semantics<parallel>], iteration_bounds = array<i64: 2, 1>, scalar_prefetch = 0 : i64, scratch_operands = 0 : i64, tpu.core_type = #tpu.core_type<tc>, window_params = [{transform_indices = @transform_0, window_bounds = array<i64: 1, 12, 4>}, {transform_indices = @transform_1, window_bounds = array<i64: 1, 1, 4>}]} {
    %c0 = arith.constant 0 : index
    %c0_0 = arith.constant 0 : index
    %c0_1 = arith.constant 0 : index
    %0 = vector.load %arg2[%c0, %c0_0, %c0_1] : memref<1x12x4xf32, #tpu.memory_space<vmem>>, vector<1x12x4xf32>
    %1 = vector.shape_cast %0 : vector<1x12x4xf32> to vector<12x4xf32>
    %cst = arith.constant 0.000000e+00 : f32
    %2 = vector.broadcast %cst : f32 to vector<12x4xf32>
    %3 = arith.subf %2, %1 : vector<12x4xf32>
    %cst_2 = arith.constant dense<0xFF800000> : vector<4xf32>
    %4 = vector.multi_reduction <maximumf>, %3, %cst_2 [0] : vector<12x4xf32> to vector<4xf32>
    %5 = vector.shape_cast %4 : vector<4xf32> to vector<1x4xf32>
    %6 = vector.broadcast %5 : vector<1x4xf32> to vector<12x4xf32>
    %7 = arith.subf %3, %6 : vector<12x4xf32>
    %8 = math.exp %7 : vector<12x4xf32>
    %cst_3 = arith.constant dense<0.000000e+00> : vector<4xf32>
    %9 = vector.multi_reduction <add>, %8, %cst_3 [0] : vector<12x4xf32> to vector<4xf32>
    %10 = vector.shape_cast %9 : vector<4xf32> to vector<1x4xf32>
    %11 = tpu.iota {dimensions = array<i32: 0>} : vector<12x1xi32>
    %12 = arith.sitofp %11 : vector<12x1xi32> to vector<12x1xf32>
    %cst_4 = arith.constant 0.000000e+00 : f32
    %13 = vector.broadcast %cst_4 : f32 to vector<12x1xf32>
    %14 = arith.addf %12, %13 : vector<12x1xf32>
    %15 = vector.broadcast %14 : vector<12x1xf32> to vector<12x4xf32>
    %16 = arith.mulf %8, %15 : vector<12x4xf32>
    %cst_5 = arith.constant dense<0.000000e+00> : vector<4xf32>
    %17 = vector.multi_reduction <add>, %16, %cst_5 [0] : vector<12x4xf32> to vector<4xf32>
    %18 = vector.shape_cast %17 : vector<4xf32> to vector<1x4xf32>
    %19 = tpu.reciprocal %10 {approx = true} : vector<1x4xf32> -> vector<1x4xf32>
    %20 = arith.mulf %18, %19 : vector<1x4xf32>
    %c0_6 = arith.constant 0 : index
    %c0_7 = arith.constant 0 : index
    %c0_8 = arith.constant 0 : index
    %21 = vector.load %arg3[%c0_6, %c0_7, %c0_8] : memref<1x1x4xf32, #tpu.memory_space<vmem>>, vector<1x1x4xf32>
    %22 = vector.shape_cast %21 : vector<1x1x4xf32> to vector<1x4xf32>
    %23 = vector.shape_cast %20 : vector<1x4xf32> to vector<1x1x4xf32>
    tpu.vector_store %arg3[%c0_6, %c0_7, %c0_8], %23 {strides = array<i32>} : memref<1x1x4xf32, #tpu.memory_space<vmem>>, vector<1x1x4xf32>,
    return
  }
  func.func @transform_0(%arg0: i32, %arg1: i32) -> (i32, i32, i32) {
    %c0_i32 = arith.constant 0 : i32
    %c0_i32_0 = arith.constant 0 : i32
    return %arg0, %c0_i32, %arg1 : i32, i32, i32
  }
  func.func @transform_1(%arg0: i32, %arg1: i32) -> (i32, i32, i32) {
    %c0_i32 = arith.constant 0 : i32
    %c0_i32_0 = arith.constant 0 : i32
    return %arg0, %c0_i32, %arg1 : i32, i32, i32
  }
}

module attributes {stable_mosaic.version = 11 : i64} {
  func.func @kernel(%arg0: i32, %arg1: i32, %arg2: i32, %arg3: memref<1x4x4x256xf32, #tpu.memory_space<vmem>>, %arg4: memref<1x1x4x4x256xf32, #tpu.memory_space<vmem>>, %arg5: memref<1x1x4x4xf32, #tpu.memory_space<vmem>>) attributes {dimension_semantics = [#tpu.dimension_semantics<parallel>, #tpu.dimension_semantics<parallel>, #tpu.dimension_semantics<arbitrary>], iteration_bounds = array<i64: 2, 1, 5>, scalar_prefetch = 0 : i64, scratch_operands = 0 : i64, tpu.core_type = #tpu.core_type<tc>, window_params = [{transform_indices = @transform_0, window_bounds = array<i64: 1, 4, 4, 256>}, {transform_indices = @transform_1, window_bounds = array<i64: 1, 1, 4, 4, 256>}, {transform_indices = @transform_2, window_bounds = array<i64: 1, 1, 4, 4>}]} {
    %c0 = arith.constant 0 : index
    %c0_0 = arith.constant 0 : index
    %c0_1 = arith.constant 0 : index
    %c0_2 = arith.constant 0 : index
    %0 = vector.load %arg3[%c0, %c0_0, %c0_1, %c0_2] : memref<1x4x4x256xf32, #tpu.memory_space<vmem>>, vector<1x4x4x256xf32>
    %1 = vector.shape_cast %0 : vector<1x4x4x256xf32> to vector<4x4x256xf32>
    %c0_3 = arith.constant 0 : index
    %c0_4 = arith.constant 0 : index
    %c0_5 = arith.constant 0 : index
    %c0_6 = arith.constant 0 : index
    %c0_7 = arith.constant 0 : index
    %2 = vector.load %arg4[%c0_3, %c0_4, %c0_5, %c0_6, %c0_7] : memref<1x1x4x4x256xf32, #tpu.memory_space<vmem>>, vector<1x1x4x4x256xf32>
    %3 = vector.shape_cast %2 : vector<1x1x4x4x256xf32> to vector<4x4x256xf32>
    %4 = arith.subf %1, %3 : vector<4x4x256xf32>
    %5 = math.absf %4 : vector<4x4x256xf32>
    %cst = arith.constant dense<0.000000e+00> : vector<4x4xf32>
    %6 = vector.multi_reduction <add>, %5, %cst [2] : vector<4x4x256xf32> to vector<4x4xf32>
    %c0_8 = arith.constant 0 : index
    %c0_9 = arith.constant 0 : index
    %c0_10 = arith.constant 0 : index
    %c0_11 = arith.constant 0 : index
    %7 = vector.load %arg5[%c0_8, %c0_9, %c0_10, %c0_11] : memref<1x1x4x4xf32, #tpu.memory_space<vmem>>, vector<1x1x4x4xf32>
    %8 = vector.shape_cast %7 : vector<1x1x4x4xf32> to vector<4x4xf32>
    %9 = vector.shape_cast %6 : vector<4x4xf32> to vector<1x1x4x4xf32>
    tpu.vector_store %arg5[%c0_8, %c0_9, %c0_10, %c0_11], %9 {strides = array<i32>} : memref<1x1x4x4xf32, #tpu.memory_space<vmem>>, vector<1x1x4x4xf32>,
    return
  }
  func.func @transform_0(%arg0: i32, %arg1: i32, %arg2: i32) -> (i32, i32, i32, i32) {
    %c0_i32 = arith.constant 0 : i32
    %c0_i32_0 = arith.constant 0 : i32
    %c0_i32_1 = arith.constant 0 : i32
    return %arg0, %arg1, %c0_i32, %c0_i32_0 : i32, i32, i32, i32
  }
  func.func @transform_1(%arg0: i32, %arg1: i32, %arg2: i32) -> (i32, i32, i32, i32, i32) {
    %c0_i32 = arith.constant 0 : i32
    %c0_i32_0 = arith.constant 0 : i32
    %c0_i32_1 = arith.constant 0 : i32
    return %arg0, %arg2, %arg1, %c0_i32, %c0_i32_0 : i32, i32, i32, i32, i32
  }
  func.func @transform_2(%arg0: i32, %arg1: i32, %arg2: i32) -> (i32, i32, i32, i32) {
    %c0_i32 = arith.constant 0 : i32
    %c0_i32_0 = arith.constant 0 : i32
    return %arg0, %arg2, %arg1, %c0_i32 : i32, i32, i32, i32
  }
}

module attributes {stable_mosaic.version = 11 : i64} {
  func.func @kernel(%arg0: i32, %arg1: i32, %arg2: memref<1x5x16xf32, #tpu.memory_space<vmem>>, %arg3: memref<1x1x16xf32, #tpu.memory_space<vmem>>) attributes {dimension_semantics = [#tpu.dimension_semantics<parallel>, #tpu.dimension_semantics<parallel>], iteration_bounds = array<i64: 2, 1>, scalar_prefetch = 0 : i64, scratch_operands = 0 : i64, tpu.core_type = #tpu.core_type<tc>, window_params = [{transform_indices = @transform_0, window_bounds = array<i64: 1, 5, 16>}, {transform_indices = @transform_1, window_bounds = array<i64: 1, 1, 16>}]} {
    %c0 = arith.constant 0 : index
    %c0_0 = arith.constant 0 : index
    %c0_1 = arith.constant 0 : index
    %0 = vector.load %arg2[%c0, %c0_0, %c0_1] : memref<1x5x16xf32, #tpu.memory_space<vmem>>, vector<1x5x16xf32>
    %1 = vector.shape_cast %0 : vector<1x5x16xf32> to vector<5x16xf32>
    %cst = arith.constant 0.000000e+00 : f32
    %2 = vector.broadcast %cst : f32 to vector<5x16xf32>
    %3 = arith.subf %2, %1 : vector<5x16xf32>
    %cst_2 = arith.constant dense<0xFF800000> : vector<16xf32>
    %4 = vector.multi_reduction <maximumf>, %3, %cst_2 [0] : vector<5x16xf32> to vector<16xf32>
    %5 = vector.shape_cast %4 : vector<16xf32> to vector<1x16xf32>
    %6 = vector.broadcast %5 : vector<1x16xf32> to vector<5x16xf32>
    %7 = arith.subf %3, %6 : vector<5x16xf32>
    %8 = math.exp %7 : vector<5x16xf32>
    %cst_3 = arith.constant dense<0.000000e+00> : vector<16xf32>
    %9 = vector.multi_reduction <add>, %8, %cst_3 [0] : vector<5x16xf32> to vector<16xf32>
    %10 = vector.shape_cast %9 : vector<16xf32> to vector<1x16xf32>
    %11 = tpu.iota {dimensions = array<i32: 0>} : vector<5x1xi32>
    %12 = arith.sitofp %11 : vector<5x1xi32> to vector<5x1xf32>
    %cst_4 = arith.constant -2.000000e+00 : f32
    %13 = vector.broadcast %cst_4 : f32 to vector<5x1xf32>
    %14 = arith.addf %12, %13 : vector<5x1xf32>
    %15 = vector.broadcast %14 : vector<5x1xf32> to vector<5x16xf32>
    %16 = arith.mulf %8, %15 : vector<5x16xf32>
    %cst_5 = arith.constant dense<0.000000e+00> : vector<16xf32>
    %17 = vector.multi_reduction <add>, %16, %cst_5 [0] : vector<5x16xf32> to vector<16xf32>
    %18 = vector.shape_cast %17 : vector<16xf32> to vector<1x16xf32>
    %19 = tpu.reciprocal %10 {approx = true} : vector<1x16xf32> -> vector<1x16xf32>
    %20 = arith.mulf %18, %19 : vector<1x16xf32>
    %c0_6 = arith.constant 0 : index
    %c0_7 = arith.constant 0 : index
    %c0_8 = arith.constant 0 : index
    %21 = vector.load %arg3[%c0_6, %c0_7, %c0_8] : memref<1x1x16xf32, #tpu.memory_space<vmem>>, vector<1x1x16xf32>
    %22 = vector.shape_cast %21 : vector<1x1x16xf32> to vector<1x16xf32>
    %23 = vector.shape_cast %20 : vector<1x16xf32> to vector<1x1x16xf32>
    tpu.vector_store %arg3[%c0_6, %c0_7, %c0_8], %23 {strides = array<i32>} : memref<1x1x16xf32, #tpu.memory_space<vmem>>, vector<1x1x16xf32>,
    return
  }
  func.func @transform_0(%arg0: i32, %arg1: i32) -> (i32, i32, i32) {
    %c0_i32 = arith.constant 0 : i32
    %c0_i32_0 = arith.constant 0 : i32
    return %arg0, %c0_i32, %arg1 : i32, i32, i32
  }
  func.func @transform_1(%arg0: i32, %arg1: i32) -> (i32, i32, i32) {
    %c0_i32 = arith.constant 0 : i32
    %c0_i32_0 = arith.constant 0 : i32
    return %arg0, %c0_i32, %arg1 : i32, i32, i32
  }
}

module attributes {stable_mosaic.version = 11 : i64} {
  func.func @kernel(%arg0: i32, %arg1: i32, %arg2: i32, %arg3: memref<1x8x8x128xf32, #tpu.memory_space<vmem>>, %arg4: memref<1x1x8x8x128xf32, #tpu.memory_space<vmem>>, %arg5: memref<1x1x8x8xf32, #tpu.memory_space<vmem>>) attributes {dimension_semantics = [#tpu.dimension_semantics<parallel>, #tpu.dimension_semantics<parallel>, #tpu.dimension_semantics<arbitrary>], iteration_bounds = array<i64: 2, 1, 5>, scalar_prefetch = 0 : i64, scratch_operands = 0 : i64, tpu.core_type = #tpu.core_type<tc>, window_params = [{transform_indices = @transform_0, window_bounds = array<i64: 1, 8, 8, 128>}, {transform_indices = @transform_1, window_bounds = array<i64: 1, 1, 8, 8, 128>}, {transform_indices = @transform_2, window_bounds = array<i64: 1, 1, 8, 8>}]} {
    %c0 = arith.constant 0 : index
    %c0_0 = arith.constant 0 : index
    %c0_1 = arith.constant 0 : index
    %c0_2 = arith.constant 0 : index
    %0 = vector.load %arg3[%c0, %c0_0, %c0_1, %c0_2] : memref<1x8x8x128xf32, #tpu.memory_space<vmem>>, vector<1x8x8x128xf32>
    %1 = vector.shape_cast %0 : vector<1x8x8x128xf32> to vector<8x8x128xf32>
    %c0_3 = arith.constant 0 : index
    %c0_4 = arith.constant 0 : index
    %c0_5 = arith.constant 0 : index
    %c0_6 = arith.constant 0 : index
    %c0_7 = arith.constant 0 : index
    %2 = vector.load %arg4[%c0_3, %c0_4, %c0_5, %c0_6, %c0_7] : memref<1x1x8x8x128xf32, #tpu.memory_space<vmem>>, vector<1x1x8x8x128xf32>
    %3 = vector.shape_cast %2 : vector<1x1x8x8x128xf32> to vector<8x8x128xf32>
    %4 = arith.subf %1, %3 : vector<8x8x128xf32>
    %5 = math.absf %4 : vector<8x8x128xf32>
    %cst = arith.constant dense<0.000000e+00> : vector<8x8xf32>
    %6 = vector.multi_reduction <add>, %5, %cst [2] : vector<8x8x128xf32> to vector<8x8xf32>
    %c0_8 = arith.constant 0 : index
    %c0_9 = arith.constant 0 : index
    %c0_10 = arith.constant 0 : index
    %c0_11 = arith.constant 0 : index
    %7 = vector.load %arg5[%c0_8, %c0_9, %c0_10, %c0_11] : memref<1x1x8x8xf32, #tpu.memory_space<vmem>>, vector<1x1x8x8xf32>
    %8 = vector.shape_cast %7 : vector<1x1x8x8xf32> to vector<8x8xf32>
    %9 = vector.shape_cast %6 : vector<8x8xf32> to vector<1x1x8x8xf32>
    tpu.vector_store %arg5[%c0_8, %c0_9, %c0_10, %c0_11], %9 {strides = array<i32>} : memref<1x1x8x8xf32, #tpu.memory_space<vmem>>, vector<1x1x8x8xf32>,
    return
  }
  func.func @transform_0(%arg0: i32, %arg1: i32, %arg2: i32) -> (i32, i32, i32, i32) {
    %c0_i32 = arith.constant 0 : i32
    %c0_i32_0 = arith.constant 0 : i32
    %c0_i32_1 = arith.constant 0 : i32
    return %arg0, %arg1, %c0_i32, %c0_i32_0 : i32, i32, i32, i32
  }
  func.func @transform_1(%arg0: i32, %arg1: i32, %arg2: i32) -> (i32, i32, i32, i32, i32) {
    %c0_i32 = arith.constant 0 : i32
    %c0_i32_0 = arith.constant 0 : i32
    %c0_i32_1 = arith.constant 0 : i32
    return %arg0, %arg2, %arg1, %c0_i32, %c0_i32_0 : i32, i32, i32, i32, i32
  }
  func.func @transform_2(%arg0: i32, %arg1: i32, %arg2: i32) -> (i32, i32, i32, i32) {
    %c0_i32 = arith.constant 0 : i32
    %c0_i32_0 = arith.constant 0 : i32
    return %arg0, %arg2, %arg1, %c0_i32 : i32, i32, i32, i32
  }
}

module attributes {stable_mosaic.version = 11 : i64} {
  func.func @kernel(%arg0: i32, %arg1: i32, %arg2: memref<1x5x64xf32, #tpu.memory_space<vmem>>, %arg3: memref<1x1x64xf32, #tpu.memory_space<vmem>>) attributes {dimension_semantics = [#tpu.dimension_semantics<parallel>, #tpu.dimension_semantics<parallel>], iteration_bounds = array<i64: 2, 1>, scalar_prefetch = 0 : i64, scratch_operands = 0 : i64, tpu.core_type = #tpu.core_type<tc>, window_params = [{transform_indices = @transform_0, window_bounds = array<i64: 1, 5, 64>}, {transform_indices = @transform_1, window_bounds = array<i64: 1, 1, 64>}]} {
    %c0 = arith.constant 0 : index
    %c0_0 = arith.constant 0 : index
    %c0_1 = arith.constant 0 : index
    %0 = vector.load %arg2[%c0, %c0_0, %c0_1] : memref<1x5x64xf32, #tpu.memory_space<vmem>>, vector<1x5x64xf32>
    %1 = vector.shape_cast %0 : vector<1x5x64xf32> to vector<5x64xf32>
    %cst = arith.constant 0.000000e+00 : f32
    %2 = vector.broadcast %cst : f32 to vector<5x64xf32>
    %3 = arith.subf %2, %1 : vector<5x64xf32>
    %cst_2 = arith.constant dense<0xFF800000> : vector<64xf32>
    %4 = vector.multi_reduction <maximumf>, %3, %cst_2 [0] : vector<5x64xf32> to vector<64xf32>
    %5 = vector.shape_cast %4 : vector<64xf32> to vector<1x64xf32>
    %6 = vector.broadcast %5 : vector<1x64xf32> to vector<5x64xf32>
    %7 = arith.subf %3, %6 : vector<5x64xf32>
    %8 = math.exp %7 : vector<5x64xf32>
    %cst_3 = arith.constant dense<0.000000e+00> : vector<64xf32>
    %9 = vector.multi_reduction <add>, %8, %cst_3 [0] : vector<5x64xf32> to vector<64xf32>
    %10 = vector.shape_cast %9 : vector<64xf32> to vector<1x64xf32>
    %11 = tpu.iota {dimensions = array<i32: 0>} : vector<5x1xi32>
    %12 = arith.sitofp %11 : vector<5x1xi32> to vector<5x1xf32>
    %cst_4 = arith.constant -2.000000e+00 : f32
    %13 = vector.broadcast %cst_4 : f32 to vector<5x1xf32>
    %14 = arith.addf %12, %13 : vector<5x1xf32>
    %15 = vector.broadcast %14 : vector<5x1xf32> to vector<5x64xf32>
    %16 = arith.mulf %8, %15 : vector<5x64xf32>
    %cst_5 = arith.constant dense<0.000000e+00> : vector<64xf32>
    %17 = vector.multi_reduction <add>, %16, %cst_5 [0] : vector<5x64xf32> to vector<64xf32>
    %18 = vector.shape_cast %17 : vector<64xf32> to vector<1x64xf32>
    %19 = tpu.reciprocal %10 {approx = true} : vector<1x64xf32> -> vector<1x64xf32>
    %20 = arith.mulf %18, %19 : vector<1x64xf32>
    %c0_6 = arith.constant 0 : index
    %c0_7 = arith.constant 0 : index
    %c0_8 = arith.constant 0 : index
    %21 = vector.load %arg3[%c0_6, %c0_7, %c0_8] : memref<1x1x64xf32, #tpu.memory_space<vmem>>, vector<1x1x64xf32>
    %22 = vector.shape_cast %21 : vector<1x1x64xf32> to vector<1x64xf32>
    %23 = vector.shape_cast %20 : vector<1x64xf32> to vector<1x1x64xf32>
    tpu.vector_store %arg3[%c0_6, %c0_7, %c0_8], %23 {strides = array<i32>} : memref<1x1x64xf32, #tpu.memory_space<vmem>>, vector<1x1x64xf32>,
    return
  }
  func.func @transform_0(%arg0: i32, %arg1: i32) -> (i32, i32, i32) {
    %c0_i32 = arith.constant 0 : i32
    %c0_i32_0 = arith.constant 0 : i32
    return %arg0, %c0_i32, %arg1 : i32, i32, i32
  }
  func.func @transform_1(%arg0: i32, %arg1: i32) -> (i32, i32, i32) {
    %c0_i32 = arith.constant 0 : i32
    %c0_i32_0 = arith.constant 0 : i32
    return %arg0, %c0_i32, %arg1 : i32, i32, i32
  }
}

module attributes {stable_mosaic.version = 11 : i64} {
  func.func @kernel(%arg0: i32, %arg1: memref<8x512xbf16, #tpu.memory_space<vmem>>, %arg2: memref<512x128xbf16, #tpu.memory_space<vmem>>, %arg3: memref<1x128xf32, #tpu.memory_space<vmem>>, %arg4: memref<8x128xf32, #tpu.memory_space<vmem>>) attributes {dimension_semantics = [#tpu.dimension_semantics<parallel>], iteration_bounds = array<i64: 1>, scalar_prefetch = 0 : i64, scratch_operands = 0 : i64, tpu.core_type = #tpu.core_type<tc>, window_params = [{transform_indices = @transform_0, window_bounds = array<i64: 8, 512>}, {pipeline_mode = #tpu.pipeline_mode<synchronous>, transform_indices = @transform_1, window_bounds = array<i64: 512, 128>}, {pipeline_mode = #tpu.pipeline_mode<synchronous>, transform_indices = @transform_2, window_bounds = array<i64: 1, 128>}, {transform_indices = @transform_3, window_bounds = array<i64: 8, 128>}]} {
    %c0 = arith.constant 0 : index
    %c0_0 = arith.constant 0 : index
    %0 = vector.load %arg1[%c0, %c0_0] : memref<8x512xbf16, #tpu.memory_space<vmem>>, vector<8x512xbf16>
    %c0_1 = arith.constant 0 : index
    %c0_2 = arith.constant 0 : index
    %1 = vector.load %arg2[%c0_1, %c0_2] : memref<512x128xbf16, #tpu.memory_space<vmem>>, vector<512x128xbf16>
    %cst = arith.constant dense<0.000000e+00> : vector<8x128xf32>
    %2 = tpu.matmul %0, %1, %cst {dimension_numbers = #tpu.dot_dimension_numbers<[1], [0], [0], [1], [0, 0, 1, 1], [], []>} : vector<8x512xbf16>, vector<512x128xbf16>, vector<8x128xf32> -> vector<8x128xf32>
    %c0_3 = arith.constant 0 : index
    %c0_4 = arith.constant 0 : index
    %3 = vector.load %arg3[%c0_3, %c0_4] : memref<1x128xf32, #tpu.memory_space<vmem>>, vector<1x128xf32>
    %4 = vector.broadcast %3 : vector<1x128xf32> to vector<8x128xf32>
    %5 = arith.addf %2, %4 : vector<8x128xf32>
    %c0_5 = arith.constant 0 : index
    %c0_6 = arith.constant 0 : index
    %6 = vector.load %arg4[%c0_5, %c0_6] : memref<8x128xf32, #tpu.memory_space<vmem>>, vector<8x128xf32>
    tpu.vector_store %arg4[%c0_5, %c0_6], %5 {strides = array<i32>} : memref<8x128xf32, #tpu.memory_space<vmem>>, vector<8x128xf32>,
    return
  }
  func.func @transform_0(%arg0: i32) -> (i32, i32) {
    %c0_i32 = arith.constant 0 : i32
    %c0_i32_0 = arith.constant 0 : i32
    return %arg0, %c0_i32 : i32, i32
  }
  func.func @transform_1(%arg0: i32) -> (i32, i32) {
    %c0_i32 = arith.constant 0 : i32
    %c0_i32_0 = arith.constant 0 : i32
    %c0_i32_1 = arith.constant 0 : i32
    return %c0_i32, %c0_i32_0 : i32, i32
  }
  func.func @transform_2(%arg0: i32) -> (i32, i32) {
    %c0_i32 = arith.constant 0 : i32
    %c0_i32_0 = arith.constant 0 : i32
    %c0_i32_1 = arith.constant 0 : i32
    return %c0_i32, %c0_i32_0 : i32, i32
  }
  func.func @transform_3(%arg0: i32) -> (i32, i32) {
    %c0_i32 = arith.constant 0 : i32
    %c0_i32_0 = arith.constant 0 : i32
    return %arg0, %c0_i32 : i32, i32
  }
}

module attributes {stable_mosaic.version = 11 : i64} {
  func.func @kernel(%arg0: i32, %arg1: memref<32x256xbf16, #tpu.memory_space<vmem>>, %arg2: memref<256x128xbf16, #tpu.memory_space<vmem>>, %arg3: memref<1x128xf32, #tpu.memory_space<vmem>>, %arg4: memref<32x128xf32, #tpu.memory_space<vmem>>) attributes {dimension_semantics = [#tpu.dimension_semantics<parallel>], iteration_bounds = array<i64: 1>, scalar_prefetch = 0 : i64, scratch_operands = 0 : i64, tpu.core_type = #tpu.core_type<tc>, window_params = [{transform_indices = @transform_0, window_bounds = array<i64: 32, 256>}, {pipeline_mode = #tpu.pipeline_mode<synchronous>, transform_indices = @transform_1, window_bounds = array<i64: 256, 128>}, {pipeline_mode = #tpu.pipeline_mode<synchronous>, transform_indices = @transform_2, window_bounds = array<i64: 1, 128>}, {transform_indices = @transform_3, window_bounds = array<i64: 32, 128>}]} {
    %c0 = arith.constant 0 : index
    %c0_0 = arith.constant 0 : index
    %0 = vector.load %arg1[%c0, %c0_0] : memref<32x256xbf16, #tpu.memory_space<vmem>>, vector<32x256xbf16>
    %c0_1 = arith.constant 0 : index
    %c0_2 = arith.constant 0 : index
    %1 = vector.load %arg2[%c0_1, %c0_2] : memref<256x128xbf16, #tpu.memory_space<vmem>>, vector<256x128xbf16>
    %cst = arith.constant dense<0.000000e+00> : vector<32x128xf32>
    %2 = tpu.matmul %0, %1, %cst {dimension_numbers = #tpu.dot_dimension_numbers<[1], [0], [0], [1], [0, 0, 1, 1], [], []>} : vector<32x256xbf16>, vector<256x128xbf16>, vector<32x128xf32> -> vector<32x128xf32>
    %c0_3 = arith.constant 0 : index
    %c0_4 = arith.constant 0 : index
    %3 = vector.load %arg3[%c0_3, %c0_4] : memref<1x128xf32, #tpu.memory_space<vmem>>, vector<1x128xf32>
    %4 = vector.broadcast %3 : vector<1x128xf32> to vector<32x128xf32>
    %5 = arith.addf %2, %4 : vector<32x128xf32>
    %c0_5 = arith.constant 0 : index
    %c0_6 = arith.constant 0 : index
    %6 = vector.load %arg4[%c0_5, %c0_6] : memref<32x128xf32, #tpu.memory_space<vmem>>, vector<32x128xf32>
    tpu.vector_store %arg4[%c0_5, %c0_6], %5 {strides = array<i32>} : memref<32x128xf32, #tpu.memory_space<vmem>>, vector<32x128xf32>,
    return
  }
  func.func @transform_0(%arg0: i32) -> (i32, i32) {
    %c0_i32 = arith.constant 0 : i32
    %c0_i32_0 = arith.constant 0 : i32
    return %arg0, %c0_i32 : i32, i32
  }
  func.func @transform_1(%arg0: i32) -> (i32, i32) {
    %c0_i32 = arith.constant 0 : i32
    %c0_i32_0 = arith.constant 0 : i32
    %c0_i32_1 = arith.constant 0 : i32
    return %c0_i32, %c0_i32_0 : i32, i32
  }
  func.func @transform_2(%arg0: i32) -> (i32, i32) {
    %c0_i32 = arith.constant 0 : i32
    %c0_i32_0 = arith.constant 0 : i32
    %c0_i32_1 = arith.constant 0 : i32
    return %c0_i32, %c0_i32_0 : i32, i32
  }
  func.func @transform_3(%arg0: i32) -> (i32, i32) {
    %c0_i32 = arith.constant 0 : i32
    %c0_i32_0 = arith.constant 0 : i32
    return %arg0, %c0_i32 : i32, i32
  }
}

module attributes {stable_mosaic.version = 11 : i64} {
  func.func @kernel(%arg0: i32, %arg1: memref<128x128xbf16, #tpu.memory_space<vmem>>, %arg2: memref<128x128xbf16, #tpu.memory_space<vmem>>, %arg3: memref<1x128xf32, #tpu.memory_space<vmem>>, %arg4: memref<128x128xf32, #tpu.memory_space<vmem>>) attributes {dimension_semantics = [#tpu.dimension_semantics<parallel>], iteration_bounds = array<i64: 1>, scalar_prefetch = 0 : i64, scratch_operands = 0 : i64, tpu.core_type = #tpu.core_type<tc>, window_params = [{transform_indices = @transform_0, window_bounds = array<i64: 128, 128>}, {pipeline_mode = #tpu.pipeline_mode<synchronous>, transform_indices = @transform_1, window_bounds = array<i64: 128, 128>}, {pipeline_mode = #tpu.pipeline_mode<synchronous>, transform_indices = @transform_2, window_bounds = array<i64: 1, 128>}, {transform_indices = @transform_3, window_bounds = array<i64: 128, 128>}]} {
    %c0 = arith.constant 0 : index
    %c0_0 = arith.constant 0 : index
    %0 = vector.load %arg1[%c0, %c0_0] : memref<128x128xbf16, #tpu.memory_space<vmem>>, vector<128x128xbf16>
    %c0_1 = arith.constant 0 : index
    %c0_2 = arith.constant 0 : index
    %1 = vector.load %arg2[%c0_1, %c0_2] : memref<128x128xbf16, #tpu.memory_space<vmem>>, vector<128x128xbf16>
    %cst = arith.constant dense<0.000000e+00> : vector<128x128xf32>
    %2 = tpu.matmul %0, %1, %cst {dimension_numbers = #tpu.dot_dimension_numbers<[1], [0], [0], [1], [0, 0, 1, 1], [], []>} : vector<128x128xbf16>, vector<128x128xbf16>, vector<128x128xf32> -> vector<128x128xf32>
    %c0_3 = arith.constant 0 : index
    %c0_4 = arith.constant 0 : index
    %3 = vector.load %arg3[%c0_3, %c0_4] : memref<1x128xf32, #tpu.memory_space<vmem>>, vector<1x128xf32>
    %4 = vector.broadcast %3 : vector<1x128xf32> to vector<128x128xf32>
    %5 = arith.addf %2, %4 : vector<128x128xf32>
    %c0_5 = arith.constant 0 : index
    %c0_6 = arith.constant 0 : index
    %6 = vector.load %arg4[%c0_5, %c0_6] : memref<128x128xf32, #tpu.memory_space<vmem>>, vector<128x128xf32>
    tpu.vector_store %arg4[%c0_5, %c0_6], %5 {strides = array<i32>} : memref<128x128xf32, #tpu.memory_space<vmem>>, vector<128x128xf32>,
    return
  }
  func.func @transform_0(%arg0: i32) -> (i32, i32) {
    %c0_i32 = arith.constant 0 : i32
    %c0_i32_0 = arith.constant 0 : i32
    return %arg0, %c0_i32 : i32, i32
  }
  func.func @transform_1(%arg0: i32) -> (i32, i32) {
    %c0_i32 = arith.constant 0 : i32
    %c0_i32_0 = arith.constant 0 : i32
    %c0_i32_1 = arith.constant 0 : i32
    return %c0_i32, %c0_i32_0 : i32, i32
  }
  func.func @transform_2(%arg0: i32) -> (i32, i32) {
    %c0_i32 = arith.constant 0 : i32
    %c0_i32_0 = arith.constant 0 : i32
    %c0_i32_1 = arith.constant 0 : i32
    return %c0_i32, %c0_i32_0 : i32, i32
  }
  func.func @transform_3(%arg0: i32) -> (i32, i32) {
    %c0_i32 = arith.constant 0 : i32
    %c0_i32_0 = arith.constant 0 : i32
    return %arg0, %c0_i32 : i32, i32
  }
}

</mosaic_0001>

<llo_original>
// kernel: shared_net_forward.16
$region0: #{shared_net_forward.16}
  #allocation0 [shape = 'u32[]', space=smem, size = 0x4, offset = 0x4, fixed_abs, tag = 'smem constant byte address 0x4 - core index']
  #allocation1 [shape = 'u32[144,128]{1,0:T(1,128)}', space=vmem, size = 0x12000, scoped, tag = 'internal scratch']
  %s0 = inlined_call_operand.vmem [shape: bf16[32,128], index: 0, kind: input, shape index: {}]
  %s1 = inlined_call_operand.vmem [shape: bf16[128,256], index: 1, kind: input, shape index: {}]
  %s2 = inlined_call_operand.vmem [shape: f32[1,256], index: 2, kind: input, shape index: {}]
  %s3 = inlined_call_operand.vmem [shape: f32[32,256], index: 3, kind: output, shape index: {}]
  %s4 = sld [smem:[#allocation0]]
  $region22: #{shared_net_forward.16} parent=0
    _
  %s6 = ssub.s32 1, %s4
  %s7 = scalar_select 0, %s6, %s4
  // Predicated region
  $region2: #{shared_net_forward.16} parent=0 // pred_check
    _
  $region3: #{shared_net_forward.16} parent=0 // pred_check_branch
    %9 = sbr.rel (0) target = $region5
  $region4: #{shared_net_forward.16} parent=0 // pred_region
    _
  $region5: #{shared_net_forward.16} parent=0 // pred_fallthru
    _
  // Predicated region
  $region6: #{shared_net_forward.16} parent=0 // pred_check
    _
  $region7: #{shared_net_forward.16} parent=0 // pred_check_branch
    %11 = sbr.rel (0) target = $region9
  $region8: #{shared_net_forward.16} parent=0 // pred_region
    _
  $region9: #{shared_net_forward.16} parent=0 // pred_fallthru
    _
  // Predicated region
  $region10: #{shared_net_forward.16} parent=0 // pred_check
    _
  $region11: #{shared_net_forward.16} parent=0 // pred_check_branch
    %13 = sbr.rel (0) target = $region13
  $region12: #{shared_net_forward.16} parent=0 // pred_region
    _
  $region13: #{shared_net_forward.16} parent=0 // pred_fallthru
    _
  %v15 = vld [vmem:[%s0] sm:$0xf]
  %v16 = vld [vmem:[%s0 + $0x4] sm:$0xf]
  %v17 = vld [vmem:[%s0 + $0x8] sm:$0xf]
  %v18 = vld [vmem:[%s0 + $0xc] sm:$0xf]
  %v19 = vld [vmem:[%s1] sm:$0xff]
  %v20 = vld [vmem:[%s1 + $0x8] sm:$0xff]
  %v21 = vld [vmem:[%s1 + $0x10] sm:$0xff]
  %v22 = vld [vmem:[%s1 + $0x18] sm:$0xff]
  %v23 = vld [vmem:[%s1 + $0x20] sm:$0xff]
  %v24 = vld [vmem:[%s1 + $0x28] sm:$0xff]
  %v25 = vld [vmem:[%s1 + $0x30] sm:$0xff]
  %v26 = vld [vmem:[%s1 + $0x38] sm:$0xff]
  %v27 = vld [vmem:[%s1 + $0x40] sm:$0xff]
  %v28 = vld [vmem:[%s1 + $0x48] sm:$0xff]
  %v29 = vld [vmem:[%s1 + $0x50] sm:$0xff]
  %v30 = vld [vmem:[%s1 + $0x58] sm:$0xff]
  %v31 = vld [vmem:[%s1 + $0x60] sm:$0xff]
  %v32 = vld [vmem:[%s1 + $0x68] sm:$0xff]
  %v33 = vld [vmem:[%s1 + $0x70] sm:$0xff]
  %v34 = vld [vmem:[%s1 + $0x78] sm:$0xff]
  %v35 = vld [vmem:[%s2] sm:$0x3]
  %v37 = vlaneseq
  %v38 = vshrl.u32 %v37, 7
  %v39 = vsub.s32 0, %v38
  %v40 = vrot.slane %v35, %v39
  %v41 = vlaneseq
  %v42 = vshrl.u32 %v41, 7
  %v43 = vsub.s32 1, %v42
  %v44 = vrot.slane %v35, %v43
  %v51 = vunpack.c.l.b16 %v15
  %v52 = vunpack.c.l.b16 %v16
  %v53 = vunpack.c.l.b16 %v17
  %v54 = vunpack.c.l.b16 %v18
  %v55 = vpack.c.b16 %v52, %v51
  %v56 = vpack.c.b16 %v54, %v53
  %v75 = vunpack.c.l.b16 %v19
  %v76 = vunpack.c.h.b16 %v19
  %v77 = vunpack.c.l.b16 %v20
  %v78 = vunpack.c.h.b16 %v20
  %v79 = vunpack.c.l.b16 %v21
  %v80 = vunpack.c.h.b16 %v21
  %v81 = vunpack.c.l.b16 %v22
  %v82 = vunpack.c.h.b16 %v22
  %v83 = vunpack.c.l.b16 %v23
  %v84 = vunpack.c.h.b16 %v23
  %v85 = vunpack.c.l.b16 %v24
  %v86 = vunpack.c.h.b16 %v24
  %v87 = vunpack.c.l.b16 %v25
  %v88 = vunpack.c.h.b16 %v25
  %v89 = vunpack.c.l.b16 %v26
  %v90 = vunpack.c.h.b16 %v26
  %v91 = vunpack.c.l.b16 %v27
  %v92 = vunpack.c.h.b16 %v27
  %v93 = vunpack.c.l.b16 %v28
  %v94 = vunpack.c.h.b16 %v28
  %v95 = vunpack.c.l.b16 %v29
  %v96 = vunpack.c.h.b16 %v29
  %v97 = vunpack.c.l.b16 %v30
  %v98 = vunpack.c.h.b16 %v30
  %v99 = vunpack.c.l.b16 %v31
  %v100 = vunpack.c.h.b16 %v31
  %v101 = vunpack.c.l.b16 %v32
  %v102 = vunpack.c.h.b16 %v32
  %v103 = vunpack.c.l.b16 %v33
  %v104 = vunpack.c.h.b16 %v33
  %v105 = vunpack.c.l.b16 %v34
  %v106 = vunpack.c.h.b16 %v34
  %v107 = vpack.c.b16 %v77, %v75
  %v108 = vpack.c.b16 %v78, %v76
  %v109 = vpack.c.b16 %v81, %v79
  %v110 = vpack.c.b16 %v82, %v80
  %v111 = vpack.c.b16 %v85, %v83
  %v112 = vpack.c.b16 %v86, %v84
  %v113 = vpack.c.b16 %v89, %v87
  %v114 = vpack.c.b16 %v90, %v88
  %v115 = vpack.c.b16 %v93, %v91
  %v116 = vpack.c.b16 %v94, %v92
  %v117 = vpack.c.b16 %v97, %v95
  %v118 = vpack.c.b16 %v98, %v96
  %v119 = vpack.c.b16 %v101, %v99
  %v120 = vpack.c.b16 %v102, %v100
  %v121 = vpack.c.b16 %v105, %v103
  %v122 = vpack.c.b16 %v106, %v104
  %139 = vmatprep.subr.bf16.mxu0 %v122
  %140 = vmatpush1.bf16.msra.mxu0 %v121
  %141 = vmatprep.subr.bf16.mxu0 %v120
  %142 = vmatpush1.bf16.msra.mxu0 %v119
  %143 = vmatprep.subr.bf16.mxu0 %v118
  %144 = vmatpush1.bf16.msra.mxu0 %v117
  %145 = vmatprep.subr.bf16.mxu0 %v116
  %146 = vmatpush1.bf16.msra.mxu0 %v115
  %147 = vmatprep.subr.bf16.mxu0 %v114
  %148 = vmatpush1.bf16.msra.mxu0 %v113
  %149 = vmatprep.subr.bf16.mxu0 %v112
  %150 = vmatpush1.bf16.msra.mxu0 %v111
  %151 = vmatprep.subr.bf16.mxu0 %v110
  %152 = vmatpush1.bf16.msra.mxu0 %v109
  %153 = vmatprep.subr.bf16.mxu0 %v108
  %154 = vmatpush1.bf16.msra.mxu0 %v107
  %155 = vmatprep.subr.bf16.mxu0 0
  %156 = vmatpush2.bf16.msra.mxu0 0
  %157 = vmatprep.subr.bf16.mxu0 0
  %158 = vmatpush2.bf16.msra.mxu0 0
  %159 = vmatprep.subr.bf16.mxu0 0
  %160 = vmatpush2.bf16.msra.mxu0 0
  %161 = vmatprep.subr.bf16.mxu0 0
  %162 = vmatpush2.bf16.msra.mxu0 0
  %163 = vmatprep.subr.bf16.mxu0 0
  %164 = vmatpush2.bf16.msra.mxu0 0
  %165 = vmatprep.subr.bf16.mxu0 0
  %166 = vmatpush2.bf16.msra.mxu0 0
  %167 = vmatprep.subr.bf16.mxu0 0
  %168 = vmatpush2.bf16.msra.mxu0 0
  %169 = vmatprep.subr.bf16.mxu0 0
  %170 = vmatpush2.bf16.msra.mxu0 0
  %171 = vmatprep.mubr.bf16.mxu0 0
  %172 = vmatmul.mubr.bf16.gmra.mxu0 %v55
  %v173 = vpop.f32.mrf.mxu0
  %v174 = vadd.f32 %v40, %v173
  %v175 = vpop.f32.mrf.mxu0
  %v176 = vadd.f32 %v44, %v175
  %v177 = vpop.f32.mrf.mxu0
  %v178 = vadd.f32 %v40, %v177
  %v179 = vpop.f32.mrf.mxu0
  %v180 = vadd.f32 %v44, %v179
  %181 = vmatprep.mubr.bf16.mxu0 0
  %182 = vmatmul.mubr.bf16.gmra.mxu0 %v56
  %v183 = vpop.f32.mrf.mxu0
  %v184 = vadd.f32 %v40, %v183
  %v185 = vpop.f32.mrf.mxu0
  %v186 = vadd.f32 %v44, %v185
  %v187 = vpop.f32.mrf.mxu0
  %v188 = vadd.f32 %v40, %v187
  %v189 = vpop.f32.mrf.mxu0
  %v190 = vadd.f32 %v44, %v189
  %191 = vdwg.mxu0
  %v192 = vmax.f32 %v174, 0.0
  %v193 = vmax.f32 %v176, 0.0
  %v194 = vmax.f32 %v178, 0.0
  %v195 = vmax.f32 %v180, 0.0
  %v196 = vmax.f32 %v184, 0.0
  %v197 = vmax.f32 %v186, 0.0
  %v198 = vmax.f32 %v188, 0.0
  %v199 = vmax.f32 %v190, 0.0
  %200 = vst [vmem:[%s3] sm:$0xff] %v192
  %201 = vst [vmem:[%s3 + $0x8] sm:$0xff] %v193
  %202 = vst [vmem:[%s3 + $0x10] sm:$0xff] %v194
  %203 = vst [vmem:[%s3 + $0x18] sm:$0xff] %v195
  %204 = vst [vmem:[%s3 + $0x20] sm:$0xff] %v196
  %205 = vst [vmem:[%s3 + $0x28] sm:$0xff] %v197
  %206 = vst [vmem:[%s3 + $0x30] sm:$0xff] %v198
  %207 = vst [vmem:[%s3 + $0x38] sm:$0xff] %v199
  // Predicated region
  $region14: #{shared_net_forward.16} parent=0 // pred_check
    _
  $region15: #{shared_net_forward.16} parent=0 // pred_check_branch
    %209 = sbr.rel (0) target = $region17
  $region16: #{shared_net_forward.16} parent=0 // pred_region
    _
  $region17: #{shared_net_forward.16} parent=0 // pred_fallthru
    _
  // Predicated region
  $region18: #{shared_net_forward.16} parent=0 // pred_check
    _
  $region19: #{shared_net_forward.16} parent=0 // pred_check_branch
    %211 = sbr.rel (0) target = $region21
  $region20: #{shared_net_forward.16} parent=0 // pred_region
    _
  $region21: #{shared_net_forward.16} parent=0 // pred_fallthru
    _

// kernel: shared_net_forward.15
$region0: #{shared_net_forward.15}
  #allocation0 [shape = 'u32[]', space=smem, size = 0x4, offset = 0x4, fixed_abs, tag = 'smem constant byte address 0x4 - core index']
  #allocation1 [shape = 'u32[144,128]{1,0:T(1,128)}', space=vmem, size = 0x12000, scoped, tag = 'internal scratch']
  %s0 = inlined_call_operand.vmem [shape: bf16[128,3], index: 0, kind: input, shape index: {}]
  %s1 = inlined_call_operand.vmem [shape: bf16[3,128], index: 1, kind: input, shape index: {}]
  %s2 = inlined_call_operand.vmem [shape: f32[1,128], index: 2, kind: input, shape index: {}]
  %s3 = inlined_call_operand.vmem [shape: f32[128,128], index: 3, kind: output, shape index: {}]
  %s4 = sld [smem:[#allocation0]]
  $region22: #{shared_net_forward.15} parent=0
    _
  %s6 = ssub.s32 1, %s4
  %s7 = scalar_select 0, %s6, %s4
  // Predicated region
  $region2: #{shared_net_forward.15} parent=0 // pred_check
    _
  $region3: #{shared_net_forward.15} parent=0 // pred_check_branch
    %9 = sbr.rel (0) target = $region5
  $region4: #{shared_net_forward.15} parent=0 // pred_region
    _
  $region5: #{shared_net_forward.15} parent=0 // pred_fallthru
    _
  // Predicated region
  $region6: #{shared_net_forward.15} parent=0 // pred_check
    _
  $region7: #{shared_net_forward.15} parent=0 // pred_check_branch
    %11 = sbr.rel (0) target = $region9
  $region8: #{shared_net_forward.15} parent=0 // pred_region
    _
  $region9: #{shared_net_forward.15} parent=0 // pred_fallthru
    _
  // Predicated region
  $region10: #{shared_net_forward.15} parent=0 // pred_check
    _
  $region11: #{shared_net_forward.15} parent=0 // pred_check_branch
    %13 = sbr.rel (0) target = $region13
  $region12: #{shared_net_forward.15} parent=0 // pred_region
    _
  $region13: #{shared_net_forward.15} parent=0 // pred_fallthru
    _
  %v15 = vld [vmem:[%s0] sm:$0xf]
  %v16 = vld [vmem:[%s0 + $0x4] sm:$0xf]
  %v17 = vld [vmem:[%s0 + $0x8] sm:$0xf]
  %v18 = vld [vmem:[%s0 + $0xc] sm:$0xf]
  %v19 = vld [vmem:[%s0 + $0x10] sm:$0xf]
  %v20 = vld [vmem:[%s0 + $0x14] sm:$0xf]
  %v21 = vld [vmem:[%s0 + $0x18] sm:$0xf]
  %v22 = vld [vmem:[%s0 + $0x1c] sm:$0xf]
  %v23 = vld [vmem:[%s0 + $0x20] sm:$0xf]
  %v24 = vld [vmem:[%s0 + $0x24] sm:$0xf]
  %v25 = vld [vmem:[%s0 + $0x28] sm:$0xf]
  %v26 = vld [vmem:[%s0 + $0x2c] sm:$0xf]
  %v27 = vld [vmem:[%s0 + $0x30] sm:$0xf]
  %v28 = vld [vmem:[%s0 + $0x34] sm:$0xf]
  %v29 = vld [vmem:[%s0 + $0x38] sm:$0xf]
  %v30 = vld [vmem:[%s0 + $0x3c] sm:$0xf]
  %v31 = vld [vmem:[%s1] sm:$0x3]
  %v32 = vld [vmem:[%s2] sm:$0x1]
  %v34 = vlaneseq
  %v35 = vshrl.u32 %v34, 7
  %v36 = vsub.s32 0, %v35
  %v37 = vrot.slane %v32, %v36
  %v55 = vunpack.c.l.b16 %v15
  %v56 = vunpack.c.l.b16 %v16
  %v57 = vunpack.c.l.b16 %v17
  %v58 = vunpack.c.l.b16 %v18
  %v59 = vunpack.c.l.b16 %v19
  %v60 = vunpack.c.l.b16 %v20
  %v61 = vunpack.c.l.b16 %v21
  %v62 = vunpack.c.l.b16 %v22
  %v63 = vunpack.c.l.b16 %v23
  %v64 = vunpack.c.l.b16 %v24
  %v65 = vunpack.c.l.b16 %v25
  %v66 = vunpack.c.l.b16 %v26
  %v67 = vunpack.c.l.b16 %v27
  %v68 = vunpack.c.l.b16 %v28
  %v69 = vunpack.c.l.b16 %v29
  %v70 = vunpack.c.l.b16 %v30
  %v71 = vpack.c.b16 %v56, %v55
  %v72 = vpack.c.b16 %v58, %v57
  %v73 = vpack.c.b16 %v60, %v59
  %v74 = vpack.c.b16 %v62, %v61
  %v75 = vpack.c.b16 %v64, %v63
  %v76 = vpack.c.b16 %v66, %v65
  %v77 = vpack.c.b16 %v68, %v67
  %v78 = vpack.c.b16 %v70, %v69
  %vm79 = vcmask 23552
  %v81 = vsel %vm79, %v71, 0
  %v84 = vsel %vm79, %v72, 0
  %v87 = vsel %vm79, %v73, 0
  %v90 = vsel %vm79, %v74, 0
  %v93 = vsel %vm79, %v75, 0
  %v96 = vsel %vm79, %v76, 0
  %v99 = vsel %vm79, %v77, 0
  %v102 = vsel %vm79, %v78, 0
  %vm104 = vcmask 1040384
  %vm105 = vcmask 1041408
  %v106 = vsel %vm104, 4294967295, 65535
  %v107 = vsel %vm105, %v106, 0
  %v109 = vand.u32 %v31, %v107
  %111 = vmatprep.subr.bf16.mxu0 0
  %112 = vmatpush1.bf16.msra.mxu0 0
  %113 = vmatprep.subr.bf16.mxu0 0
  %114 = vmatpush1.bf16.msra.mxu0 0
  %115 = vmatprep.subr.bf16.mxu0 0
  %116 = vmatpush1.bf16.msra.mxu0 0
  %117 = vmatprep.subr.bf16.mxu0 0
  %118 = vmatpush1.bf16.msra.mxu0 0
  %119 = vmatprep.subr.bf16.mxu0 0
  %120 = vmatpush1.bf16.msra.mxu0 0
  %121 = vmatprep.subr.bf16.mxu0 0
  %122 = vmatpush1.bf16.msra.mxu0 0
  %123 = vmatprep.subr.bf16.mxu0 0
  %124 = vmatpush1.bf16.msra.mxu0 0
  %125 = vmatprep.subr.bf16.mxu0 0
  %126 = vmatpush1.bf16.msra.mxu0 %v109
  %127 = vmatprep.subr.bf16.mxu0 0
  %128 = vmatpush2.bf16.msra.mxu0 0
  %129 = vmatprep.subr.bf16.mxu0 0
  %130 = vmatpush2.bf16.msra.mxu0 0
  %131 = vmatprep.subr.bf16.mxu0 0
  %132 = vmatpush2.bf16.msra.mxu0 0
  %133 = vmatprep.subr.bf16.mxu0 0
  %134 = vmatpush2.bf16.msra.mxu0 0
  %135 = vmatprep.subr.bf16.mxu0 0
  %136 = vmatpush2.bf16.msra.mxu0 0
  %137 = vmatprep.subr.bf16.mxu0 0
  %138 = vmatpush2.bf16.msra.mxu0 0
  %139 = vmatprep.subr.bf16.mxu0 0
  %140 = vmatpush2.bf16.msra.mxu0 0
  %141 = vmatprep.subr.bf16.mxu0 0
  %142 = vmatpush2.bf16.msra.mxu0 0
  %143 = vmatprep.mubr.bf16.mxu0 0
  %144 = vmatmul.mubr.bf16.gmra.mxu0 %v81
  %v145 = vpop.f32.mrf.mxu0
  %v146 = vadd.f32 %v37, %v145
  %v147 = vpop.f32.mrf.mxu0
  %v148 = vpop.f32.mrf.mxu0
  %v149 = vadd.f32 %v37, %v148
  %v150 = vpop.f32.mrf.mxu0
  %151 = vmatprep.mubr.bf16.mxu0 0
  %152 = vmatmul.mubr.bf16.gmra.mxu0 %v84
  %v153 = vpop.f32.mrf.mxu0
  %v154 = vadd.f32 %v37, %v153
  %v155 = vpop.f32.mrf.mxu0
  %v156 = vpop.f32.mrf.mxu0
  %v157 = vadd.f32 %v37, %v156
  %v158 = vpop.f32.mrf.mxu0
  %159 = vmatprep.mubr.bf16.mxu0 0
  %160 = vmatmul.mubr.bf16.gmra.mxu0 %v87
  %v161 = vpop.f32.mrf.mxu0
  %v162 = vadd.f32 %v37, %v161
  %v163 = vpop.f32.mrf.mxu0
  %v164 = vpop.f32.mrf.mxu0
  %v165 = vadd.f32 %v37, %v164
  %v166 = vpop.f32.mrf.mxu0
  %167 = vmatprep.mubr.bf16.mxu0 0
  %168 = vmatmul.mubr.bf16.gmra.mxu0 %v90
  %v169 = vpop.f32.mrf.mxu0
  %v170 = vadd.f32 %v37, %v169
  %v171 = vpop.f32.mrf.mxu0
  %v172 = vpop.f32.mrf.mxu0
  %v173 = vadd.f32 %v37, %v172
  %v174 = vpop.f32.mrf.mxu0
  %175 = vmatprep.mubr.bf16.mxu0 0
  %176 = vmatmul.mubr.bf16.gmra.mxu0 %v93
  %v177 = vpop.f32.mrf.mxu0
  %v178 = vadd.f32 %v37, %v177
  %v179 = vpop.f32.mrf.mxu0
  %v180 = vpop.f32.mrf.mxu0
  %v181 = vadd.f32 %v37, %v180
  %v182 = vpop.f32.mrf.mxu0
  %183 = vmatprep.mubr.bf16.mxu0 0
  %184 = vmatmul.mubr.bf16.gmra.mxu0 %v96
  %v185 = vpop.f32.mrf.mxu0
  %v186 = vadd.f32 %v37, %v185
  %v187 = vpop.f32.mrf.mxu0
  %v188 = vpop.f32.mrf.mxu0
  %v189 = vadd.f32 %v37, %v188
  %v190 = vpop.f32.mrf.mxu0
  %191 = vmatprep.mubr.bf16.mxu0 0
  %192 = vmatmul.mubr.bf16.gmra.mxu0 %v99
  %v193 = vpop.f32.mrf.mxu0
  %v194 = vadd.f32 %v37, %v193
  %v195 = vpop.f32.mrf.mxu0
  %v196 = vpop.f32.mrf.mxu0
  %v197 = vadd.f32 %v37, %v196
  %v198 = vpop.f32.mrf.mxu0
  %199 = vmatprep.mubr.bf16.mxu0 0
  %200 = vmatmul.mubr.bf16.gmra.mxu0 %v102
  %v201 = vpop.f32.mrf.mxu0
  %v202 = vadd.f32 %v37, %v201
  %v203 = vpop.f32.mrf.mxu0
  %v204 = vpop.f32.mrf.mxu0
  %v205 = vadd.f32 %v37, %v204
  %v206 = vpop.f32.mrf.mxu0
  %207 = vdwg.mxu0
  %v208 = vmax.f32 %v146, 0.0
  %v209 = vmax.f32 %v149, 0.0
  %v210 = vmax.f32 %v154, 0.0
  %v211 = vmax.f32 %v157, 0.0
  %v212 = vmax.f32 %v162, 0.0
  %v213 = vmax.f32 %v165, 0.0
  %v214 = vmax.f32 %v170, 0.0
  %v215 = vmax.f32 %v173, 0.0
  %v216 = vmax.f32 %v178, 0.0
  %v217 = vmax.f32 %v181, 0.0
  %v218 = vmax.f32 %v186, 0.0
  %v219 = vmax.f32 %v189, 0.0
  %v220 = vmax.f32 %v194, 0.0
  %v221 = vmax.f32 %v197, 0.0
  %v222 = vmax.f32 %v202, 0.0
  %v223 = vmax.f32 %v205, 0.0
  %224 = vst [vmem:[%s3] sm:$0xff] %v208
  %225 = vst [vmem:[%s3 + $0x8] sm:$0xff] %v209
  %226 = vst [vmem:[%s3 + $0x10] sm:$0xff] %v210
  %227 = vst [vmem:[%s3 + $0x18] sm:$0xff] %v211
  %228 = vst [vmem:[%s3 + $0x20] sm:$0xff] %v212
  %229 = vst [vmem:[%s3 + $0x28] sm:$0xff] %v213
  %230 = vst [vmem:[%s3 + $0x30] sm:$0xff] %v214
  %231 = vst [vmem:[%s3 + $0x38] sm:$0xff] %v215
  %232 = vst [vmem:[%s3 + $0x40] sm:$0xff] %v216
  %233 = vst [vmem:[%s3 + $0x48] sm:$0xff] %v217
  %234 = vst [vmem:[%s3 + $0x50] sm:$0xff] %v218
  %235 = vst [vmem:[%s3 + $0x58] sm:$0xff] %v219
  %236 = vst [vmem:[%s3 + $0x60] sm:$0xff] %v220
  %237 = vst [vmem:[%s3 + $0x68] sm:$0xff] %v221
  %238 = vst [vmem:[%s3 + $0x70] sm:$0xff] %v222
  %239 = vst [vmem:[%s3 + $0x78] sm:$0xff] %v223
  // Predicated region
  $region14: #{shared_net_forward.15} parent=0 // pred_check
    _
  $region15: #{shared_net_forward.15} parent=0 // pred_check_branch
    %241 = sbr.rel (0) target = $region17
  $region16: #{shared_net_forward.15} parent=0 // pred_region
    _
  $region17: #{shared_net_forward.15} parent=0 // pred_fallthru
    _
  // Predicated region
  $region18: #{shared_net_forward.15} parent=0 // pred_check
    _
  $region19: #{shared_net_forward.15} parent=0 // pred_check_branch
    %243 = sbr.rel (0) target = $region21
  $region20: #{shared_net_forward.15} parent=0 // pred_region
    _
  $region21: #{shared_net_forward.15} parent=0 // pred_fallthru
    _

// kernel: shared_net_forward.17
$region0: #{shared_net_forward.17}
  #allocation0 [shape = 'u32[]', space=smem, size = 0x4, offset = 0x4, fixed_abs, tag = 'smem constant byte address 0x4 - core index']
  #allocation1 [shape = 'u32[144,128]{1,0:T(1,128)}', space=vmem, size = 0x12000, scoped, tag = 'internal scratch']
  %s0 = inlined_call_operand.vmem [shape: bf16[8,256], index: 0, kind: input, shape index: {}]
  %s1 = inlined_call_operand.vmem [shape: bf16[256,512], index: 1, kind: input, shape index: {}]
  %s2 = inlined_call_operand.vmem [shape: f32[1,512], index: 2, kind: input, shape index: {}]
  %s3 = inlined_call_operand.vmem [shape: f32[8,512], index: 3, kind: output, shape index: {}]
  %s4 = sld [smem:[#allocation0]]
  $region22: #{shared_net_forward.17} parent=0
    _
  %s6 = ssub.s32 1, %s4
  %s7 = scalar_select 0, %s6, %s4
  // Predicated region
  $region2: #{shared_net_forward.17} parent=0 // pred_check
    _
  $region3: #{shared_net_forward.17} parent=0 // pred_check_branch
    %9 = sbr.rel (0) target = $region5
  $region4: #{shared_net_forward.17} parent=0 // pred_region
    _
  $region5: #{shared_net_forward.17} parent=0 // pred_fallthru
    _
  // Predicated region
  $region6: #{shared_net_forward.17} parent=0 // pred_check
    _
  $region7: #{shared_net_forward.17} parent=0 // pred_check_branch
    %11 = sbr.rel (0) target = $region9
  $region8: #{shared_net_forward.17} parent=0 // pred_region
    _
  $region9: #{shared_net_forward.17} parent=0 // pred_fallthru
    _
  // Predicated region
  $region10: #{shared_net_forward.17} parent=0 // pred_check
    _
  $region11: #{shared_net_forward.17} parent=0 // pred_check_branch
    %13 = sbr.rel (0) target = $region13
  $region12: #{shared_net_forward.17} parent=0 // pred_region
    _
  $region13: #{shared_net_forward.17} parent=0 // pred_fallthru
    _
  %v14 = vld [vmem:[%s0] sm:$0xff]
  %v15 = vld [vmem:[%s1] sm:$0xff]
  %v16 = vld [vmem:[%s1 + $0x8] sm:$0xff]
  %v17 = vld [vmem:[%s1 + $0x10] sm:$0xff]
  %v18 = vld [vmem:[%s1 + $0x18] sm:$0xff]
  %v19 = vld [vmem:[%s1 + $0x20] sm:$0xff]
  %v20 = vld [vmem:[%s1 + $0x28] sm:$0xff]
  %v21 = vld [vmem:[%s1 + $0x30] sm:$0xff]
  %v22 = vld [vmem:[%s1 + $0x38] sm:$0xff]
  %v23 = vld [vmem:[%s1 + $0x40] sm:$0xff]
  %v24 = vld [vmem:[%s1 + $0x48] sm:$0xff]
  %v25 = vld [vmem:[%s1 + $0x50] sm:$0xff]
  %v26 = vld [vmem:[%s1 + $0x58] sm:$0xff]
  %v27 = vld [vmem:[%s1 + $0x60] sm:$0xff]
  %v28 = vld [vmem:[%s1 + $0x68] sm:$0xff]
  %v29 = vld [vmem:[%s1 + $0x70] sm:$0xff]
  %v30 = vld [vmem:[%s1 + $0x78] sm:$0xff]
  %v31 = vld [vmem:[%s1 + $0x80] sm:$0xff]
  %v32 = vld [vmem:[%s1 + $0x88] sm:$0xff]
  %v33 = vld [vmem:[%s1 + $0x90] sm:$0xff]
  %v34 = vld [vmem:[%s1 + $0x98] sm:$0xff]
  %v35 = vld [vmem:[%s1 + $0xa0] sm:$0xff]
  %v36 = vld [vmem:[%s1 + $0xa8] sm:$0xff]
  %v37 = vld [vmem:[%s1 + $0xb0] sm:$0xff]
  %v38 = vld [vmem:[%s1 + $0xb8] sm:$0xff]
  %v39 = vld [vmem:[%s1 + $0xc0] sm:$0xff]
  %v40 = vld [vmem:[%s1 + $0xc8] sm:$0xff]
  %v41 = vld [vmem:[%s1 + $0xd0] sm:$0xff]
  %v42 = vld [vmem:[%s1 + $0xd8] sm:$0xff]
  %v43 = vld [vmem:[%s1 + $0xe0] sm:$0xff]
  %v44 = vld [vmem:[%s1 + $0xe8] sm:$0xff]
  %v45 = vld [vmem:[%s1 + $0xf0] sm:$0xff]
  %v46 = vld [vmem:[%s1 + $0xf8] sm:$0xff]
  %v47 = vld [vmem:[%s1 + $0x100] sm:$0xff]
  %v48 = vld [vmem:[%s1 + $0x108] sm:$0xff]
  %v49 = vld [vmem:[%s1 + $0x110] sm:$0xff]
  %v50 = vld [vmem:[%s1 + $0x118] sm:$0xff]
  %v51 = vld [vmem:[%s1 + $0x120] sm:$0xff]
  %v52 = vld [vmem:[%s1 + $0x128] sm:$0xff]
  %v53 = vld [vmem:[%s1 + $0x130] sm:$0xff]
  %v54 = vld [vmem:[%s1 + $0x138] sm:$0xff]
  %v55 = vld [vmem:[%s1 + $0x140] sm:$0xff]
  %v56 = vld [vmem:[%s1 + $0x148] sm:$0xff]
  %v57 = vld [vmem:[%s1 + $0x150] sm:$0xff]
  %v58 = vld [vmem:[%s1 + $0x158] sm:$0xff]
  %v59 = vld [vmem:[%s1 + $0x160] sm:$0xff]
  %v60 = vld [vmem:[%s1 + $0x168] sm:$0xff]
  %v61 = vld [vmem:[%s1 + $0x170] sm:$0xff]
  %v62 = vld [vmem:[%s1 + $0x178] sm:$0xff]
  %v63 = vld [vmem:[%s1 + $0x180] sm:$0xff]
  %v64 = vld [vmem:[%s1 + $0x188] sm:$0xff]
  %v65 = vld [vmem:[%s1 + $0x190] sm:$0xff]
  %v66 = vld [vmem:[%s1 + $0x198] sm:$0xff]
  %v67 = vld [vmem:[%s1 + $0x1a0] sm:$0xff]
  %v68 = vld [vmem:[%s1 + $0x1a8] sm:$0xff]
  %v69 = vld [vmem:[%s1 + $0x1b0] sm:$0xff]
  %v70 = vld [vmem:[%s1 + $0x1b8] sm:$0xff]
  %v71 = vld [vmem:[%s1 + $0x1c0] sm:$0xff]
  %v72 = vld [vmem:[%s1 + $0x1c8] sm:$0xff]
  %v73 = vld [vmem:[%s1 + $0x1d0] sm:$0xff]
  %v74 = vld [vmem:[%s1 + $0x1d8] sm:$0xff]
  %v75 = vld [vmem:[%s1 + $0x1e0] sm:$0xff]
  %v76 = vld [vmem:[%s1 + $0x1e8] sm:$0xff]
  %v77 = vld [vmem:[%s1 + $0x1f0] sm:$0xff]
  %v78 = vld [vmem:[%s1 + $0x1f8] sm:$0xff]
  %v79 = vld [vmem:[%s2] sm:$0xf]
  %v81 = vlaneseq
  %v82 = vshrl.u32 %v81, 7
  %v83 = vsub.s32 0, %v82
  %v84 = vrot.slane %v79, %v83
  %v85 = vlaneseq
  %v86 = vshrl.u32 %v85, 7
  %v87 = vsub.s32 1, %v86
  %v88 = vrot.slane %v79, %v87
  %v89 = vlaneseq
  %v90 = vshrl.u32 %v89, 7
  %v91 = vsub.s32 2, %v90
  %v92 = vrot.slane %v79, %v91
  %v93 = vlaneseq
  %v94 = vshrl.u32 %v93, 7
  %v95 = vsub.s32 3, %v94
  %v96 = vrot.slane %v79, %v95
  %v102 = vunpack.c.l.b16 %v14
  %v103 = vunpack.c.h.b16 %v14
  %v104 = vpack.c.b16 %v102, %v102
  %v105 = vpack.c.b16 %v103, %v103
  %v172 = vunpack.c.l.b16 %v15
  %v173 = vunpack.c.h.b16 %v15
  %v174 = vunpack.c.l.b16 %v16
  %v175 = vunpack.c.h.b16 %v16
  %v176 = vunpack.c.l.b16 %v17
  %v177 = vunpack.c.h.b16 %v17
  %v178 = vunpack.c.l.b16 %v18
  %v179 = vunpack.c.h.b16 %v18
  %v180 = vunpack.c.l.b16 %v19
  %v181 = vunpack.c.h.b16 %v19
  %v182 = vunpack.c.l.b16 %v20
  %v183 = vunpack.c.h.b16 %v20
  %v184 = vunpack.c.l.b16 %v21
  %v185 = vunpack.c.h.b16 %v21
  %v186 = vunpack.c.l.b16 %v22
  %v187 = vunpack.c.h.b16 %v22
  %v188 = vunpack.c.l.b16 %v23
  %v189 = vunpack.c.h.b16 %v23
  %v190 = vunpack.c.l.b16 %v24
  %v191 = vunpack.c.h.b16 %v24
  %v192 = vunpack.c.l.b16 %v25
  %v193 = vunpack.c.h.b16 %v25
  %v194 = vunpack.c.l.b16 %v26
  %v195 = vunpack.c.h.b16 %v26
  %v196 = vunpack.c.l.b16 %v27
  %v197 = vunpack.c.h.b16 %v27
  %v198 = vunpack.c.l.b16 %v28
  %v199 = vunpack.c.h.b16 %v28
  %v200 = vunpack.c.l.b16 %v29
  %v201 = vunpack.c.h.b16 %v29
  %v202 = vunpack.c.l.b16 %v30
  %v203 = vunpack.c.h.b16 %v30
  %v204 = vunpack.c.l.b16 %v31
  %v205 = vunpack.c.h.b16 %v31
  %v206 = vunpack.c.l.b16 %v32
  %v207 = vunpack.c.h.b16 %v32
  %v208 = vunpack.c.l.b16 %v33
  %v209 = vunpack.c.h.b16 %v33
  %v210 = vunpack.c.l.b16 %v34
  %v211 = vunpack.c.h.b16 %v34
  %v212 = vunpack.c.l.b16 %v35
  %v213 = vunpack.c.h.b16 %v35
  %v214 = vunpack.c.l.b16 %v36
  %v215 = vunpack.c.h.b16 %v36
  %v216 = vunpack.c.l.b16 %v37
  %v217 = vunpack.c.h.b16 %v37
  %v218 = vunpack.c.l.b16 %v38
  %v219 = vunpack.c.h.b16 %v38
  %v220 = vunpack.c.l.b16 %v39
  %v221 = vunpack.c.h.b16 %v39
  %v222 = vunpack.c.l.b16 %v40
  %v223 = vunpack.c.h.b16 %v40
  %v224 = vunpack.c.l.b16 %v41
  %v225 = vunpack.c.h.b16 %v41
  %v226 = vunpack.c.l.b16 %v42
  %v227 = vunpack.c.h.b16 %v42
  %v228 = vunpack.c.l.b16 %v43
  %v229 = vunpack.c.h.b16 %v43
  %v230 = vunpack.c.l.b16 %v44
  %v231 = vunpack.c.h.b16 %v44
  %v232 = vunpack.c.l.b16 %v45
  %v233 = vunpack.c.h.b16 %v45
  %v234 = vunpack.c.l.b16 %v46
  %v235 = vunpack.c.h.b16 %v46
  %v236 = vunpack.c.l.b16 %v47
  %v237 = vunpack.c.h.b16 %v47
  %v238 = vunpack.c.l.b16 %v48
  %v239 = vunpack.c.h.b16 %v48
  %v240 = vunpack.c.l.b16 %v49
  %v241 = vunpack.c.h.b16 %v49
  %v242 = vunpack.c.l.b16 %v50
  %v243 = vunpack.c.h.b16 %v50
  %v244 = vunpack.c.l.b16 %v51
  %v245 = vunpack.c.h.b16 %v51
  %v246 = vunpack.c.l.b16 %v52
  %v247 = vunpack.c.h.b16 %v52
  %v248 = vunpack.c.l.b16 %v53
  %v249 = vunpack.c.h.b16 %v53
  %v250 = vunpack.c.l.b16 %v54
  %v251 = vunpack.c.h.b16 %v54
  %v252 = vunpack.c.l.b16 %v55
  %v253 = vunpack.c.h.b16 %v55
  %v254 = vunpack.c.l.b16 %v56
  %v255 = vunpack.c.h.b16 %v56
  %v256 = vunpack.c.l.b16 %v57
  %v257 = vunpack.c.h.b16 %v57
  %v258 = vunpack.c.l.b16 %v58
  %v259 = vunpack.c.h.b16 %v58
  %v260 = vunpack.c.l.b16 %v59
  %v261 = vunpack.c.h.b16 %v59
  %v262 = vunpack.c.l.b16 %v60
  %v263 = vunpack.c.h.b16 %v60
  %v264 = vunpack.c.l.b16 %v61
  %v265 = vunpack.c.h.b16 %v61
  %v266 = vunpack.c.l.b16 %v62
  %v267 = vunpack.c.h.b16 %v62
  %v268 = vunpack.c.l.b16 %v63
  %v269 = vunpack.c.h.b16 %v63
  %v270 = vunpack.c.l.b16 %v64
  %v271 = vunpack.c.h.b16 %v64
  %v272 = vunpack.c.l.b16 %v65
  %v273 = vunpack.c.h.b16 %v65
  %v274 = vunpack.c.l.b16 %v66
  %v275 = vunpack.c.h.b16 %v66
  %v276 = vunpack.c.l.b16 %v67
  %v277 = vunpack.c.h.b16 %v67
  %v278 = vunpack.c.l.b16 %v68
  %v279 = vunpack.c.h.b16 %v68
  %v280 = vunpack.c.l.b16 %v69
  %v281 = vunpack.c.h.b16 %v69
  %v282 = vunpack.c.l.b16 %v70
  %v283 = vunpack.c.h.b16 %v70
  %v284 = vunpack.c.l.b16 %v71
  %v285 = vunpack.c.h.b16 %v71
  %v286 = vunpack.c.l.b16 %v72
  %v287 = vunpack.c.h.b16 %v72
  %v288 = vunpack.c.l.b16 %v73
  %v289 = vunpack.c.h.b16 %v73
  %v290 = vunpack.c.l.b16 %v74
  %v291 = vunpack.c.h.b16 %v74
  %v292 = vunpack.c.l.b16 %v75
  %v293 = vunpack.c.h.b16 %v75
  %v294 = vunpack.c.l.b16 %v76
  %v295 = vunpack.c.h.b16 %v76
  %v296 = vunpack.c.l.b16 %v77
  %v297 = vunpack.c.h.b16 %v77
  %v298 = vunpack.c.l.b16 %v78
  %v299 = vunpack.c.h.b16 %v78
  %v300 = vpack.c.b16 %v176, %v172
  %v301 = vpack.c.b16 %v177, %v173
  %v302 = vpack.c.b16 %v178, %v174
  %v303 = vpack.c.b16 %v179, %v175
  %v304 = vpack.c.b16 %v184, %v180
  %v305 = vpack.c.b16 %v185, %v181
  %v306 = vpack.c.b16 %v186, %v182
  %v307 = vpack.c.b16 %v187, %v183
  %v308 = vpack.c.b16 %v192, %v188
  %v309 = vpack.c.b16 %v193, %v189
  %v310 = vpack.c.b16 %v194, %v190
  %v311 = vpack.c.b16 %v195, %v191
  %v312 = vpack.c.b16 %v200, %v196
  %v313 = vpack.c.b16 %v201, %v197
  %v314 = vpack.c.b16 %v202, %v198
  %v315 = vpack.c.b16 %v203, %v199
  %v316 = vpack.c.b16 %v208, %v204
  %v317 = vpack.c.b16 %v209, %v205
  %v318 = vpack.c.b16 %v210, %v206
  %v319 = vpack.c.b16 %v211, %v207
  %v320 = vpack.c.b16 %v216, %v212
  %v321 = vpack.c.b16 %v217, %v213
  %v322 = vpack.c.b16 %v218, %v214
  %v323 = vpack.c.b16 %v219, %v215
  %v324 = vpack.c.b16 %v224, %v220
  %v325 = vpack.c.b16 %v225, %v221
  %v326 = vpack.c.b16 %v226, %v222
  %v327 = vpack.c.b16 %v227, %v223
  %v328 = vpack.c.b16 %v232, %v228
  %v329 = vpack.c.b16 %v233, %v229
  %v330 = vpack.c.b16 %v234, %v230
  %v331 = vpack.c.b16 %v235, %v231
  %v332 = vpack.c.b16 %v240, %v236
  %v333 = vpack.c.b16 %v241, %v237
  %v334 = vpack.c.b16 %v242, %v238
  %v335 = vpack.c.b16 %v243, %v239
  %v336 = vpack.c.b16 %v248, %v244
  %v337 = vpack.c.b16 %v249, %v245
  %v338 = vpack.c.b16 %v250, %v246
  %v339 = vpack.c.b16 %v251, %v247
  %v340 = vpack.c.b16 %v256, %v252
  %v341 = vpack.c.b16 %v257, %v253
  %v342 = vpack.c.b16 %v258, %v254
  %v343 = vpack.c.b16 %v259, %v255
  %v344 = vpack.c.b16 %v264, %v260
  %v345 = vpack.c.b16 %v265, %v261
  %v346 = vpack.c.b16 %v266, %v262
  %v347 = vpack.c.b16 %v267, %v263
  %v348 = vpack.c.b16 %v272, %v268
  %v349 = vpack.c.b16 %v273, %v269
  %v350 = vpack.c.b16 %v274, %v270
  %v351 = vpack.c.b16 %v275, %v271
  %v352 = vpack.c.b16 %v280, %v276
  %v353 = vpack.c.b16 %v281, %v277
  %v354 = vpack.c.b16 %v282, %v278
  %v355 = vpack.c.b16 %v283, %v279
  %v356 = vpack.c.b16 %v288, %v284
  %v357 = vpack.c.b16 %v289, %v285
  %v358 = vpack.c.b16 %v290, %v286
  %v359 = vpack.c.b16 %v291, %v287
  %v360 = vpack.c.b16 %v296, %v292
  %v361 = vpack.c.b16 %v297, %v293
  %v362 = vpack.c.b16 %v298, %v294
  %v363 = vpack.c.b16 %v299, %v295
  %428 = vmatprep.subr.bf16.mxu0 %v329
  %429 = vmatpush1.bf16.msra.mxu0 %v328
  %430 = vmatprep.subr.bf16.mxu0 %v325
  %431 = vmatpush1.bf16.msra.mxu0 %v324
  %432 = vmatprep.subr.bf16.mxu0 %v321
  %433 = vmatpush1.bf16.msra.mxu0 %v320
  %434 = vmatprep.subr.bf16.mxu0 %v317
  %435 = vmatpush1.bf16.msra.mxu0 %v316
  %436 = vmatprep.subr.bf16.mxu0 %v313
  %437 = vmatpush1.bf16.msra.mxu0 %v312
  %438 = vmatprep.subr.bf16.mxu0 %v309
  %439 = vmatpush1.bf16.msra.mxu0 %v308
  %440 = vmatprep.subr.bf16.mxu0 %v305
  %441 = vmatpush1.bf16.msra.mxu0 %v304
  %442 = vmatprep.subr.bf16.mxu0 %v301
  %443 = vmatpush1.bf16.msra.mxu0 %v300
  %444 = vmatprep.subr.bf16.mxu0 %v361
  %445 = vmatpush2.bf16.msra.mxu0 %v360
  %446 = vmatprep.subr.bf16.mxu0 %v357
  %447 = vmatpush2.bf16.msra.mxu0 %v356
  %448 = vmatprep.subr.bf16.mxu0 %v353
  %449 = vmatpush2.bf16.msra.mxu0 %v352
  %450 = vmatprep.subr.bf16.mxu0 %v349
  %451 = vmatpush2.bf16.msra.mxu0 %v348
  %452 = vmatprep.subr.bf16.mxu0 %v345
  %453 = vmatpush2.bf16.msra.mxu0 %v344
  %454 = vmatprep.subr.bf16.mxu0 %v341
  %455 = vmatpush2.bf16.msra.mxu0 %v340
  %456 = vmatprep.subr.bf16.mxu0 %v337
  %457 = vmatpush2.bf16.msra.mxu0 %v336
  %458 = vmatprep.subr.bf16.mxu0 %v333
  %459 = vmatpush2.bf16.msra.mxu0 %v332
  %460 = vmatprep.mubr.bf16.mxu0 %v105
  %461 = vmatmul.mubr.bf16.gmra.mxu0 %v104
  %v462 = vpop.f32.mrf.mxu0
  %v463 = vadd.f32 %v84, %v462
  %v464 = vpop.f32.mrf.mxu0
  %v465 = vadd.f32 %v88, %v464
  %v466 = vpop.f32.mrf.mxu0
  %v467 = vpop.f32.mrf.mxu0
  %468 = vdwg.mxu0
  %469 = vmatprep.subr.bf16.mxu0 %v331
  %470 = vmatpush1.bf16.msra.mxu0 %v330
  %471 = vmatprep.subr.bf16.mxu0 %v327
  %472 = vmatpush1.bf16.msra.mxu0 %v326
  %473 = vmatprep.subr.bf16.mxu0 %v323
  %474 = vmatpush1.bf16.msra.mxu0 %v322
  %475 = vmatprep.subr.bf16.mxu0 %v319
  %476 = vmatpush1.bf16.msra.mxu0 %v318
  %477 = vmatprep.subr.bf16.mxu0 %v315
  %478 = vmatpush1.bf16.msra.mxu0 %v314
  %479 = vmatprep.subr.bf16.mxu0 %v311
  %480 = vmatpush1.bf16.msra.mxu0 %v310
  %481 = vmatprep.subr.bf16.mxu0 %v307
  %482 = vmatpush1.bf16.msra.mxu0 %v306
  %483 = vmatprep.subr.bf16.mxu0 %v303
  %484 = vmatpush1.bf16.msra.mxu0 %v302
  %485 = vmatprep.subr.bf16.mxu0 %v363
  %486 = vmatpush2.bf16.msra.mxu0 %v362
  %487 = vmatprep.subr.bf16.mxu0 %v359
  %488 = vmatpush2.bf16.msra.mxu0 %v358
  %489 = vmatprep.subr.bf16.mxu0 %v355
  %490 = vmatpush2.bf16.msra.mxu0 %v354
  %491 = vmatprep.subr.bf16.mxu0 %v351
  %492 = vmatpush2.bf16.msra.mxu0 %v350
  %493 = vmatprep.subr.bf16.mxu0 %v347
  %494 = vmatpush2.bf16.msra.mxu0 %v346
  %495 = vmatprep.subr.bf16.mxu0 %v343
  %496 = vmatpush2.bf16.msra.mxu0 %v342
  %497 = vmatprep.subr.bf16.mxu0 %v339
  %498 = vmatpush2.bf16.msra.mxu0 %v338
  %499 = vmatprep.subr.bf16.mxu0 %v335
  %500 = vmatpush2.bf16.msra.mxu0 %v334
  %501 = vmatprep.mubr.bf16.mxu0 %v105
  %502 = vmatmul.mubr.bf16.gmra.mxu0 %v104
  %v503 = vpop.f32.mrf.mxu0
  %v504 = vadd.f32 %v92, %v503
  %v505 = vpop.f32.mrf.mxu0
  %v506 = vadd.f32 %v96, %v505
  %v507 = vpop.f32.mrf.mxu0
  %v508 = vpop.f32.mrf.mxu0
  %509 = vdwg.mxu0
  %v510 = vmax.f32 %v463, 0.0
  %v511 = vmax.f32 %v465, 0.0
  %v512 = vmax.f32 %v504, 0.0
  %v513 = vmax.f32 %v506, 0.0
  %514 = vst [vmem:[%s3] sm:$0xff] %v510
  %515 = vst [vmem:[%s3 + $0x8] sm:$0xff] %v511
  %516 = vst [vmem:[%s3 + $0x10] sm:$0xff] %v512
  %517 = vst [vmem:[%s3 + $0x18] sm:$0xff] %v513
  // Predicated region
  $region14: #{shared_net_forward.17} parent=0 // pred_check
    _
  $region15: #{shared_net_forward.17} parent=0 // pred_check_branch
    %519 = sbr.rel (0) target = $region17
  $region16: #{shared_net_forward.17} parent=0 // pred_region
    _
  $region17: #{shared_net_forward.17} parent=0 // pred_fallthru
    _
  // Predicated region
  $region18: #{shared_net_forward.17} parent=0 // pred_check
    _
  $region19: #{shared_net_forward.17} parent=0 // pred_check_branch
    %521 = sbr.rel (0) target = $region21
  $region20: #{shared_net_forward.17} parent=0 // pred_region
    _
  $region21: #{shared_net_forward.17} parent=0 // pred_fallthru
    _

// kernel: shared_net_forward.25
$region0: #{shared_net_forward.25}
  #allocation0 [shape = 'u32[]', space=smem, size = 0x4, offset = 0x4, fixed_abs, tag = 'smem constant byte address 0x4 - core index']
  #allocation1 [shape = 'u32[144,128]{1,0:T(1,128)}', space=vmem, size = 0x12000, scoped, tag = 'internal scratch']
  %s0 = inlined_call_operand.vmem [shape: f32[2,12,4], index: 0, kind: input, shape index: {}]
  %s1 = inlined_call_operand.vmem [shape: f32[2,1,4], index: 1, kind: output, shape index: {}]
  %s2 = sld [smem:[#allocation0]]
  $region37: #{shared_net_forward.25} parent=0
    _
  %s4 = ssub.s32 1, %s2
  %s5 = scalar_select 0, %s4, %s2
  loop: start=0, step=1, limit=4
  $region2: #{shared_net_forward.25} parent=0 // loop_pre_header
    _
  $region3: #{shared_net_forward.25} parent=0 // loop_header
    %s7 = sphi 0, %s11
    %p8 = scmp.ge.s32.totalorder %s7, 4
    %s14 = sphi 0, %s26
    %s15 = sphi 0, %s22
    %s16 = sphi 0, %s14
    %s17 = sphi 0, %s15
    %s18 = sphi 0, %s16
    %s19 = sphi 0, %s17
    %s31 = sphi 0, %s33
    %s34 = sphi 0, %s31
    %s35 = sphi 0, %s34
    %s51 = sphi 0, %s35
    %s59 = sphi 0, %s61
    %s62 = sphi 0, %s59
    %s63 = sphi 0, %s62
    %s79 = sphi 0, %s63
  $region4: #{shared_net_forward.25} parent=0 // loop_header_branch
    %10 = sbr.rel (%p8) target = $region8
  $region5: #{shared_net_forward.25} parent=0 // loop_body
    %s12 = ssub.s32 %s7, 1
    %s13 = ssub.s32 %s7, 2
    %s20 = sadd.s32 1, %s15
    %p21 = scmp.ge.s32.totalorder %s20, 1
    %s22 = scalar_select %p21, 0, %s20
    %s23 = sadd.s32 1, %s14
    %s24 = scalar_select %p21, %s23, %s14
    %p25 = scmp.ge.s32.totalorder %s24, 2
    %s26 = scalar_select %p25, 0, %s24
    %s27 = ssub.s32 %s14, %s26
    %s28 = ssub.s32 %s15, %s22
    %s29 = sor.u32 %s27, %s28
    %p30 = scmp.eq.s32.totalorder %s29, 0
    %s32 = sadd.s32 %s31, 1
    %s33 = scalar_select %p30, %s31, %s32
    %p36 = pneg %p30
    %p37 = scmp.eq.s32.totalorder %s7, 1
    %p38 = por %p36, %p37
    %p39 = scmp.ne.s32.totalorder %s31, %s34
    %p40 = scmp.eq.s32.totalorder %s7, 0
    %p41 = por %p39, %p40
    %p42 = scmp.ne.s32.totalorder %s31, %s34
    %p43 = scmp.eq.s32.totalorder %s12, 1
    %p44 = por %p42, %p43
    %p45 = scmp.ne.s32.totalorder %s34, %s35
    %p46 = scmp.eq.s32.totalorder %s12, 0
    %p47 = por %p45, %p46
    %p48 = scmp.ne.s32.totalorder %s34, %s35
    %p49 = scmp.eq.s32.totalorder %s13, 1
    %p50 = por %p48, %p49
    %p52 = scmp.ne.s32.totalorder %s35, %s51
    %p53 = scmp.eq.s32.totalorder %s13, 0
    %p54 = por %p52, %p53
    %s55 = ssub.s32 %s14, %s26
    %s56 = ssub.s32 %s15, %s22
    %s57 = sor.u32 %s55, %s56
    %p58 = scmp.eq.s32.totalorder %s57, 0
    %s60 = sadd.s32 %s59, 1
    %s61 = scalar_select %p58, %s59, %s60
    %p64 = pneg %p58
    %p65 = scmp.eq.s32.totalorder %s7, 1
    %p66 = por %p64, %p65
    %p67 = scmp.ne.s32.totalorder %s59, %s62
    %p68 = scmp.eq.s32.totalorder %s7, 0
    %p69 = por %p67, %p68
    %p70 = scmp.ne.s32.totalorder %s59, %s62
    %p71 = scmp.eq.s32.totalorder %s12, 1
    %p72 = por %p70, %p71
    %p73 = scmp.ne.s32.totalorder %s62, %s63
    %p74 = scmp.eq.s32.totalorder %s12, 0
    %p75 = por %p73, %p74
    %p76 = scmp.ne.s32.totalorder %s62, %s63
    %p77 = scmp.eq.s32.totalorder %s13, 1
    %p78 = por %p76, %p77
    %p80 = scmp.ne.s32.totalorder %s63, %s79
    %p81 = scmp.eq.s32.totalorder %s13, 0
    %p82 = por %p80, %p81
    %p83 = scmp.le.s32.totalorder 1, %s7
    %p84 = scmp.lt.s32.totalorder %s7, 3
    %p85 = pnand %p83, %p84
    %p86 = pneg %p85
    // Predicated region
    $region9: #{shared_net_forward.25} parent=5 // pred_check
      _
    $region10: #{shared_net_forward.25} parent=5 // pred_check_branch
      %88 = sbr.rel (%p85) target = $region12
    $region11: #{shared_net_forward.25} parent=5 // pred_region
      %s89 = ssub.s32 %s7, 1
    $region12: #{shared_net_forward.25} parent=5 // pred_fallthru
      _
    %p90 = scmp.lt.s32.totalorder %s7, 2
    // Predicated region
    $region13: #{shared_net_forward.25} parent=5 // pred_check
      %p91 = pneg %p90
    $region14: #{shared_net_forward.25} parent=5 // pred_check_branch
      %93 = sbr.rel (%p91) target = $region16
    $region15: #{shared_net_forward.25} parent=5 // pred_region
      // Predicated region
      $region17: #{shared_net_forward.25} parent=15 // pred_check
        %p94 = pneg %p41
      $region18: #{shared_net_forward.25} parent=15 // pred_check_branch
        %96 = sbr.rel (%p94) target = $region20
      $region19: #{shared_net_forward.25} parent=15 // pred_region
        %p97 = scmp.lt.s32.totalorder %s14, 1
        %s98 = scalar_select %p97, %s14, 1
        %p99 = scmp.lt.s32.totalorder %s15, 0
        %s100 = scalar_select %p99, %s15, 0
        %s101 = smul.addr %s98, 2
        %s102 = sadd.s32 %s100, %s101
        %s103 = smul.addr %s102, 8
        %s104 = scalar_lea.vmem %s0, %s103
      $region20: #{shared_net_forward.25} parent=15 // pred_fallthru
        _
    $region16: #{shared_net_forward.25} parent=5 // pred_fallthru
      _
    %p105 = scmp.le.s32.totalorder 1, %s7
    %p106 = scmp.lt.s32.totalorder %s7, 3
    %p107 = pnand %p105, %p106
    %p108 = pneg %p107
    // Predicated region
    $region21: #{shared_net_forward.25} parent=5 // pred_check
      _
    $region22: #{shared_net_forward.25} parent=5 // pred_check_branch
      %110 = sbr.rel (%p107) target = $region24
    $region23: #{shared_net_forward.25} parent=5 // pred_region
      %s111 = ssub.s32 %s7, 1
      %p112 = scmp.lt.s32.totalorder %s16, 1
      %s113 = scalar_select %p112, %s16, 1
      %p114 = scmp.lt.s32.totalorder %s17, 0
      %s115 = scalar_select %p114, %s17, 0
      %s116 = smul.addr %s113, 2
      %s117 = sadd.s32 %s115, %s116
      %s118 = smul.addr %s117, 8
      %s119 = scalar_lea.vmem %s0, %s118
      %p120 = pneg %p47
      %p121 = pneg %p44
      %p122 = pneg %p75
      %p123 = pneg %p72
      %p124 = scmp.lt.s32.totalorder %s16, 1
      %s125 = scalar_select %p124, %s16, 1
      %p126 = scmp.lt.s32.totalorder %s17, 0
      %s127 = scalar_select %p126, %s17, 0
      %s128 = sadd.s32 %s127, %s125
      %s129 = scalar_lea.vmem %s1, %s128
      %p130 = scmp.lt.s32.totalorder %s16, 1
      %s131 = scalar_select %p130, %s16, 1
      %p132 = scmp.lt.s32.totalorder %s17, 0
      %s133 = scalar_select %p132, %s17, 0
      %s134 = smul.addr %s131, 2
      %s135 = sadd.s32 %s133, %s134
      %s136 = smul.addr %s135, 8
      %s137 = scalar_lea.vmem %s0, %s136
      %p138 = scmp.lt.s32.totalorder %s16, 1
      %s139 = scalar_select %p138, %s16, 1
      %p140 = scmp.lt.s32.totalorder %s17, 0
      %s141 = scalar_select %p140, %s17, 0
      %s142 = sadd.s32 %s141, %s139
      %s143 = scalar_lea.vmem %s1, %s142
      %v144 = vld [vmem:[%s137] sm:$0xff]
      %v145 = vld [vmem:[%s137 + $0x8] sm:$0xf]
      %v146 = vsub.f32 0.0, %v144
      %v147 = vsub.f32 0.0, %v145
      %vm148 = vcmask 31744
      %v149 = vsel %vm148, %v146, -inf
      %vm150 = vcmask 27648
      %v151 = vsel %vm150, %v147, -inf
      %v152 = vmax.f32 %v149, %v151
      %v153 = vrot.slane %v152, 4
      %v154 = vmax.f32 %v152, %v153
      %v155 = vrot.slane %v154, 2
      %v156 = vmax.f32 %v154, %v155
      %v157 = vrot.slane %v156, 1
      %v158 = vmax.f32 %v156, %v157
      %v159 = vsub.f32 %v146, %v158
      %v160 = vsub.f32 %v147, %v158
      %v161 = vmul.f32 %v159, 1.442695
      %v162 = vpow.pop %v161
      %v163 = vmul.f32 %v160, 1.442695
      %v164 = vpow.pop %v163
      %v165 = vsel %vm148, %v162, 0.0
      %v166 = vsel %vm150, %v164, 0.0
      %v167 = vadd.f32 %v165, %v166
      %v168 = vrot.slane %v167, 4
      %v169 = vadd.f32 %v167, %v168
      %v170 = vrot.slane %v169, 2
      %v171 = vadd.f32 %v169, %v170
      %v172 = vrot.slane %v171, 1
      %v173 = vadd.f32 %v171, %v172
      %v174 = vlaneseq
      %v175 = vshrl.u32 %v174, 7
      %v176 = vadd.s32 %v175, 8
      %v177 = vcvt.s32.f32 %v175
      %v178 = vcvt.s32.f32 %v176
      %v179 = vadd.f32 %v177, 0.0
      %v180 = vadd.f32 %v178, 0.0
      %v181 = vmul.f32 %v162, %v179
      %v182 = vmul.f32 %v164, %v180
      %v183 = vsel %vm148, %v181, 0.0
      %v184 = vsel %vm150, %v182, 0.0
      %v185 = vadd.f32 %v183, %v184
      %v186 = vrot.slane %v185, 4
      %v187 = vadd.f32 %v185, %v186
      %v188 = vrot.slane %v187, 2
      %v189 = vadd.f32 %v187, %v188
      %v190 = vrot.slane %v189, 1
      %v191 = vadd.f32 %v189, %v190
      %v192 = vrcp.pop %v173
      %v193 = vmul.f32 %v191, %v192
      %vm194 = vcmask 24576
      %195 = vst.msk [vmem:[%s143] sm:$0x1] %vm194, %v193
      %p196 = scmp.lt.s32.totalorder %s16, 1
      %s197 = scalar_select %p196, %s16, 1
      %p198 = scmp.lt.s32.totalorder %s17, 0
      %s199 = scalar_select %p198, %s17, 0
      %s200 = sadd.s32 %s199, %s197
      %s201 = scalar_lea.vmem %s1, %s200
      // Predicated region
      $region25: #{shared_net_forward.25} parent=23 // pred_check
        %p202 = pneg %p72
      $region26: #{shared_net_forward.25} parent=23 // pred_check_branch
        %204 = sbr.rel (%p202) target = $region28
      $region27: #{shared_net_forward.25} parent=23 // pred_region
        _
      $region28: #{shared_net_forward.25} parent=23 // pred_fallthru
        _
    $region24: #{shared_net_forward.25} parent=5 // pred_fallthru
      _
    %p205 = scmp.le.s32.totalorder 2, %s7
    // Predicated region
    $region29: #{shared_net_forward.25} parent=5 // pred_check
      %p206 = pneg %p205
    $region30: #{shared_net_forward.25} parent=5 // pred_check_branch
      %208 = sbr.rel (%p206) target = $region32
    $region31: #{shared_net_forward.25} parent=5 // pred_region
      %s209 = ssub.s32 %s7, 2
      // Predicated region
      $region33: #{shared_net_forward.25} parent=31 // pred_check
        %p210 = pneg %p78
      $region34: #{shared_net_forward.25} parent=31 // pred_check_branch
        %212 = sbr.rel (%p210) target = $region36
      $region35: #{shared_net_forward.25} parent=31 // pred_region
        %p213 = scmp.lt.s32.totalorder %s18, 1
        %s214 = scalar_select %p213, %s18, 1
        %p215 = scmp.lt.s32.totalorder %s19, 0
        %s216 = scalar_select %p215, %s19, 0
        %s217 = sadd.s32 %s216, %s214
        %s218 = scalar_lea.vmem %s1, %s217
      $region36: #{shared_net_forward.25} parent=31 // pred_fallthru
        _
    $region32: #{shared_net_forward.25} parent=5 // pred_fallthru
      _
  $region6: #{shared_net_forward.25} parent=0 // loop_footer
    %s11 = sadd.s32 1, %s7
  $region7: #{shared_net_forward.25} parent=0 // loop_footer_branch
    %6 = sbr.rel target = $region3
  $region8: #{shared_net_forward.25} parent=0 // loop_exit
    _

// kernel: shared_net_forward.24
$region0: #{shared_net_forward.24}
  #allocation0 [shape = 'u32[]', space=smem, size = 0x4, offset = 0x4, fixed_abs, tag = 'smem constant byte address 0x4 - core index']
  #allocation1 [shape = 'u32[144,128]{1,0:T(1,128)}', space=vmem, size = 0x12000, scoped, tag = 'internal scratch']
  %s0 = inlined_call_operand.vmem [shape: f32[2,2,2,512], index: 0, kind: input, shape index: {}]
  %s1 = inlined_call_operand.vmem [shape: f32[2,2,13,512], index: 1, kind: input, shape index: {}]
  %s2 = inlined_call_operand.vmem [shape: f32[2,12,2,2], index: 2, kind: output, shape index: {}]
  %s3 = sld [smem:[#allocation0]]
  $region41: #{shared_net_forward.24} parent=0
    _
  %s5 = ssub.s32 1, %s3
  %s6 = scalar_select 0, %s5, %s3
  loop: start=0, step=1, limit=4
  $region2: #{shared_net_forward.24} parent=0 // loop_pre_header
    _
  $region3: #{shared_net_forward.24} parent=0 // loop_header
    %s8 = sphi 0, %s12
    %p9 = scmp.ge.s32.totalorder %s8, 4
    %s15 = sphi 0, %s27
    %s16 = sphi 0, %s23
    %s17 = sphi 0, %s15
    %s18 = sphi 0, %s16
    %s19 = sphi 0, %s17
    %s20 = sphi 0, %s18
    %s32 = sphi 0, %s34
    %s35 = sphi 0, %s32
    %s36 = sphi 0, %s35
    %s52 = sphi 0, %s36
    %s60 = sphi 0, %s62
    %s63 = sphi 0, %s60
    %s64 = sphi 0, %s63
    %s80 = sphi 0, %s64
    %s88 = sphi 0, %s90
    %s91 = sphi 0, %s88
    %s92 = sphi 0, %s91
    %s108 = sphi 0, %s92
  $region4: #{shared_net_forward.24} parent=0 // loop_header_branch
    %11 = sbr.rel (%p9) target = $region8
  $region5: #{shared_net_forward.24} parent=0 // loop_body
    %s13 = ssub.s32 %s8, 1
    %s14 = ssub.s32 %s8, 2
    %s21 = sadd.s32 1, %s16
    %p22 = scmp.ge.s32.totalorder %s21, 1
    %s23 = scalar_select %p22, 0, %s21
    %s24 = sadd.s32 1, %s15
    %s25 = scalar_select %p22, %s24, %s15
    %p26 = scmp.ge.s32.totalorder %s25, 2
    %s27 = scalar_select %p26, 0, %s25
    %s28 = ssub.s32 %s15, %s27
    %s29 = ssub.s32 %s16, %s23
    %s30 = sor.u32 %s28, %s29
    %p31 = scmp.eq.s32.totalorder %s30, 0
    %s33 = sadd.s32 %s32, 1
    %s34 = scalar_select %p31, %s32, %s33
    %p37 = pneg %p31
    %p38 = scmp.eq.s32.totalorder %s8, 1
    %p39 = por %p37, %p38
    %p40 = scmp.ne.s32.totalorder %s32, %s35
    %p41 = scmp.eq.s32.totalorder %s8, 0
    %p42 = por %p40, %p41
    %p43 = scmp.ne.s32.totalorder %s32, %s35
    %p44 = scmp.eq.s32.totalorder %s13, 1
    %p45 = por %p43, %p44
    %p46 = scmp.ne.s32.totalorder %s35, %s36
    %p47 = scmp.eq.s32.totalorder %s13, 0
    %p48 = por %p46, %p47
    %p49 = scmp.ne.s32.totalorder %s35, %s36
    %p50 = scmp.eq.s32.totalorder %s14, 1
    %p51 = por %p49, %p50
    %p53 = scmp.ne.s32.totalorder %s36, %s52
    %p54 = scmp.eq.s32.totalorder %s14, 0
    %p55 = por %p53, %p54
    %s56 = ssub.s32 %s15, %s27
    %s57 = ssub.s32 %s16, %s23
    %s58 = sor.u32 %s56, %s57
    %p59 = scmp.eq.s32.totalorder %s58, 0
    %s61 = sadd.s32 %s60, 1
    %s62 = scalar_select %p59, %s60, %s61
    %p65 = pneg %p59
    %p66 = scmp.eq.s32.totalorder %s8, 1
    %p67 = por %p65, %p66
    %p68 = scmp.ne.s32.totalorder %s60, %s63
    %p69 = scmp.eq.s32.totalorder %s8, 0
    %p70 = por %p68, %p69
    %p71 = scmp.ne.s32.totalorder %s60, %s63
    %p72 = scmp.eq.s32.totalorder %s13, 1
    %p73 = por %p71, %p72
    %p74 = scmp.ne.s32.totalorder %s63, %s64
    %p75 = scmp.eq.s32.totalorder %s13, 0
    %p76 = por %p74, %p75
    %p77 = scmp.ne.s32.totalorder %s63, %s64
    %p78 = scmp.eq.s32.totalorder %s14, 1
    %p79 = por %p77, %p78
    %p81 = scmp.ne.s32.totalorder %s64, %s80
    %p82 = scmp.eq.s32.totalorder %s14, 0
    %p83 = por %p81, %p82
    %s84 = ssub.s32 %s15, %s27
    %s85 = ssub.s32 %s16, %s23
    %s86 = sor.u32 %s84, %s85
    %p87 = scmp.eq.s32.totalorder %s86, 0
    %s89 = sadd.s32 %s88, 1
    %s90 = scalar_select %p87, %s88, %s89
    %p93 = pneg %p87
    %p94 = scmp.eq.s32.totalorder %s8, 1
    %p95 = por %p93, %p94
    %p96 = scmp.ne.s32.totalorder %s88, %s91
    %p97 = scmp.eq.s32.totalorder %s8, 0
    %p98 = por %p96, %p97
    %p99 = scmp.ne.s32.totalorder %s88, %s91
    %p100 = scmp.eq.s32.totalorder %s13, 1
    %p101 = por %p99, %p100
    %p102 = scmp.ne.s32.totalorder %s91, %s92
    %p103 = scmp.eq.s32.totalorder %s13, 0
    %p104 = por %p102, %p103
    %p105 = scmp.ne.s32.totalorder %s91, %s92
    %p106 = scmp.eq.s32.totalorder %s14, 1
    %p107 = por %p105, %p106
    %p109 = scmp.ne.s32.totalorder %s92, %s108
    %p110 = scmp.eq.s32.totalorder %s14, 0
    %p111 = por %p109, %p110
    %p112 = scmp.le.s32.totalorder 1, %s8
    %p113 = scmp.lt.s32.totalorder %s8, 3
    %p114 = pnand %p112, %p113
    %p115 = pneg %p114
    // Predicated region
    $region9: #{shared_net_forward.24} parent=5 // pred_check
      _
    $region10: #{shared_net_forward.24} parent=5 // pred_check_branch
      %117 = sbr.rel (%p114) target = $region12
    $region11: #{shared_net_forward.24} parent=5 // pred_region
      %s118 = ssub.s32 %s8, 1
    $region12: #{shared_net_forward.24} parent=5 // pred_fallthru
      _
    %p119 = scmp.lt.s32.totalorder %s8, 2
    // Predicated region
    $region13: #{shared_net_forward.24} parent=5 // pred_check
      %p120 = pneg %p119
    $region14: #{shared_net_forward.24} parent=5 // pred_check_branch
      %122 = sbr.rel (%p120) target = $region16
    $region15: #{shared_net_forward.24} parent=5 // pred_region
      // Predicated region
      $region17: #{shared_net_forward.24} parent=15 // pred_check
        %p123 = pneg %p42
      $region18: #{shared_net_forward.24} parent=15 // pred_check_branch
        %125 = sbr.rel (%p123) target = $region20
      $region19: #{shared_net_forward.24} parent=15 // pred_region
        %s126 = smul.u32 2, %s16
        %p127 = scmp.lt.s32.totalorder %s15, 1
        %s128 = scalar_select %p127, %s15, 1
        %p129 = scmp.lt.s32.totalorder %s126, 1
        %s130 = scalar_select %p129, %s126, 1
        %s131 = smul.addr %s130, 4
        %s132 = smul.addr %s128, 8
        %s133 = sadd.s32 %s131, %s132
        %s134 = smul.addr %s133, 2
        %s135 = scalar_lea.vmem %s0, %s134
        %s136 = smul.u32 2, %s16
      $region20: #{shared_net_forward.24} parent=15 // pred_fallthru
        _
      // Predicated region
      $region21: #{shared_net_forward.24} parent=15 // pred_check
        %p137 = pneg %p70
      $region22: #{shared_net_forward.24} parent=15 // pred_check_branch
        %139 = sbr.rel (%p137) target = $region24
      $region23: #{shared_net_forward.24} parent=15 // pred_region
        %s140 = smul.u32 2, %s16
        %p141 = scmp.lt.s32.totalorder %s15, 1
        %s142 = scalar_select %p141, %s15, 1
        %p143 = scmp.lt.s32.totalorder %s140, 1
        %s144 = scalar_select %p143, %s140, 1
        %s145 = smul.addr %s144, 8
        %s146 = smul.addr %s142, 16
        %s147 = sadd.s32 %s145, %s146
        %s148 = smul.addr %s147, 8
        %s149 = scalar_lea.vmem %s1, %s148
        %s150 = smul.u32 2, %s16
      $region24: #{shared_net_forward.24} parent=15 // pred_fallthru
        _
    $region16: #{shared_net_forward.24} parent=5 // pred_fallthru
      _
    %p151 = scmp.le.s32.totalorder 1, %s8
    %p152 = scmp.lt.s32.totalorder %s8, 3
    %p153 = pnand %p151, %p152
    %p154 = pneg %p153
    // Predicated region
    $region25: #{shared_net_forward.24} parent=5 // pred_check
      _
    $region26: #{shared_net_forward.24} parent=5 // pred_check_branch
      %156 = sbr.rel (%p153) target = $region28
    $region27: #{shared_net_forward.24} parent=5 // pred_region
      %s157 = ssub.s32 %s8, 1
      %s158 = smul.u32 2, %s18
      %p159 = scmp.lt.s32.totalorder %s17, 1
      %s160 = scalar_select %p159, %s17, 1
      %p161 = scmp.lt.s32.totalorder %s158, 1
      %s162 = scalar_select %p161, %s158, 1
      %s163 = smul.addr %s162, 4
      %s164 = smul.addr %s160, 8
      %s165 = sadd.s32 %s163, %s164
      %s166 = smul.addr %s165, 2
      %s167 = scalar_lea.vmem %s0, %s166
      %p168 = pneg %p48
      %p169 = pneg %p45
      %s170 = smul.u32 2, %s18
      %p171 = scmp.lt.s32.totalorder %s17, 1
      %s172 = scalar_select %p171, %s17, 1
      %p173 = scmp.lt.s32.totalorder %s170, 1
      %s174 = scalar_select %p173, %s170, 1
      %s175 = smul.addr %s174, 8
      %s176 = smul.addr %s172, 16
      %s177 = sadd.s32 %s175, %s176
      %s178 = smul.addr %s177, 8
      %s179 = scalar_lea.vmem %s1, %s178
      %p180 = pneg %p76
      %p181 = pneg %p73
      %p182 = pneg %p104
      %p183 = pneg %p101
      %p184 = scmp.lt.s32.totalorder %s17, 1
      %s185 = scalar_select %p184, %s17, 1
      %p186 = scmp.lt.s32.totalorder %s18, 0
      %s187 = scalar_select %p186, %s18, 0
      %s188 = smul.addr %s185, 12
      %s189 = sadd.s32 %s187, %s188
      %s190 = smul.addr %s189, 2
      %s191 = scalar_lea.vmem %s2, %s190
      %s192 = smul.u32 2, %s18
      %p193 = scmp.lt.s32.totalorder %s17, 1
      %s194 = scalar_select %p193, %s17, 1
      %p195 = scmp.lt.s32.totalorder %s192, 1
      %s196 = scalar_select %p195, %s192, 1
      %s197 = smul.addr %s196, 4
      %s198 = smul.addr %s194, 8
      %s199 = sadd.s32 %s197, %s198
      %s200 = smul.addr %s199, 2
      %s201 = scalar_lea.vmem %s0, %s200
      %s202 = smul.u32 2, %s18
      %s203 = smul.u32 2, %s18
      %p204 = scmp.lt.s32.totalorder %s17, 1
      %s205 = scalar_select %p204, %s17, 1
      %p206 = scmp.lt.s32.totalorder %s203, 1
      %s207 = scalar_select %p206, %s203, 1
      %s208 = smul.addr %s207, 8
      %s209 = smul.addr %s205, 16
      %s210 = sadd.s32 %s208, %s209
      %s211 = smul.addr %s210, 8
      %s212 = scalar_lea.vmem %s1, %s211
      %s213 = smul.u32 2, %s18
      %p214 = scmp.lt.s32.totalorder %s17, 1
      %s215 = scalar_select %p214, %s17, 1
      %p216 = scmp.lt.s32.totalorder %s18, 0
      %s217 = scalar_select %p216, %s18, 0
      %s218 = smul.addr %s215, 12
      %s219 = sadd.s32 %s217, %s218
      %s220 = smul.addr %s219, 2
      %s221 = scalar_lea.vmem %s2, %s220
      %v222 = vld [vmem:[%s201] sm:$0xff]
      %v223 = vld [vmem:[%s201 + $0x8] sm:$0xff]
      %v224 = vld [vmem:[%s212 + $0x20] sm:$0x18]
      %v225 = vld [vmem:[%s212 + $0x28] sm:$0x18]
      %v226 = vld [vmem:[%s212 + $0x30] sm:$0x18]
      %v227 = vld [vmem:[%s212 + $0x38] sm:$0x18]
      %v228 = vld [vmem:[%s212 + $0x60] sm:$0x18]
      %v229 = vld [vmem:[%s212 + $0x68] sm:$0x18]
      %v230 = vld [vmem:[%s212 + $0x70] sm:$0x18]
      %v231 = vld [vmem:[%s212 + $0x78] sm:$0x18]
      %v240 = vcombine.low %v224, %v225
      %v241 = vcombine.high %v224, %v225
      %v242 = vcombine.low %v226, %v227
      %v243 = vcombine.high %v226, %v227
      %v245 = vunpack.c.l.s4 1983009808
      %v246 = vunpack.c.0.s8 %v245
      %v247 = vlaneseq
      %v248 = vshrl.u32 %v247, 7
      %v249 = vsub.s32 %v246, %v248
      %v250 = vrot.slane %v240, %v249
      %v252 = vunpack.c.l.s4 1983009808
      %v253 = vunpack.c.0.s8 %v252
      %v254 = vlaneseq
      %v255 = vshrl.u32 %v254, 7
      %v256 = vsub.s32 %v253, %v255
      %v257 = vrot.slane %v241, %v256
      %v259 = vunpack.c.l.s4 1983009808
      %v260 = vunpack.c.0.s8 %v259
      %v261 = vlaneseq
      %v262 = vshrl.u32 %v261, 7
      %v263 = vsub.s32 %v260, %v262
      %v264 = vrot.slane %v242, %v263
      %v266 = vunpack.c.l.s4 1983009808
      %v267 = vunpack.c.0.s8 %v266
      %v268 = vlaneseq
      %v269 = vshrl.u32 %v268, 7
      %v270 = vsub.s32 %v267, %v269
      %v271 = vrot.slane %v243, %v270
      %v272 = vcombine.high %v250, %v264
      %v273 = vcombine.low %v257, %v271
      %v274 = vcombine.low %v228, %v229
      %v275 = vcombine.high %v228, %v229
      %v276 = vcombine.low %v230, %v231
      %v277 = vcombine.high %v230, %v231
      %v279 = vunpack.c.l.s4 1983009808
      %v280 = vunpack.c.0.s8 %v279
      %v281 = vlaneseq
      %v282 = vshrl.u32 %v281, 7
      %v283 = vsub.s32 %v280, %v282
      %v284 = vrot.slane %v274, %v283
      %v286 = vunpack.c.l.s4 1983009808
      %v287 = vunpack.c.0.s8 %v286
      %v288 = vlaneseq
      %v289 = vshrl.u32 %v288, 7
      %v290 = vsub.s32 %v287, %v289
      %v291 = vrot.slane %v275, %v290
      %v293 = vunpack.c.l.s4 1983009808
      %v294 = vunpack.c.0.s8 %v293
      %v295 = vlaneseq
      %v296 = vshrl.u32 %v295, 7
      %v297 = vsub.s32 %v294, %v296
      %v298 = vrot.slane %v276, %v297
      %v300 = vunpack.c.l.s4 1983009808
      %v301 = vunpack.c.0.s8 %v300
      %v302 = vlaneseq
      %v303 = vshrl.u32 %v302, 7
      %v304 = vsub.s32 %v301, %v303
      %v305 = vrot.slane %v277, %v304
      %v306 = vcombine.high %v284, %v298
      %v307 = vcombine.low %v291, %v305
      %vm308 = vcmask 1040384
      %vm309 = vcmask 1042434
      %vm310 = vmor %vm308, %vm309
      %vm311 = vcmask 1044484
      %vm312 = vmor %vm310, %vm311
      %vm313 = vcmask 1046534
      %vm314 = vmor %vm312, %vm313
      %v315 = vrot.slane %v272, 7
      %v316 = vrot.slane %v315, 2
      %v317 = vrot.slane %v273, 7
      %v318 = vsel %vm314, %v316, %v317
      %v319 = vrot.slane %v306, 7
      %v320 = vrot.slane %v319, 2
      %v321 = vrot.slane %v307, 7
      %v322 = vsel %vm314, %v320, %v321
      %v325 = vsub.f32 %v222, %v318
      %v326 = vsub.f32 %v223, %v322
      %v327 = vand.u32 2147483647, %v325
      %v328 = vand.u32 2147483647, %v326
      %v331 = vcombine.high %v327, %v327
      %v333 = vunpack.c.l.s4 1983009808
      %v334 = vunpack.c.0.s8 %v333
      %v335 = vlaneseq
      %v336 = vshrl.u32 %v335, 7
      %v337 = vsub.s32 %v334, %v336
      %v338 = vrot.slane %v327, %v337
      %v340 = vunpack.c.l.s4 1983009808
      %v341 = vunpack.c.0.s8 %v340
      %v342 = vlaneseq
      %v343 = vshrl.u32 %v342, 7
      %v344 = vsub.s32 %v341, %v343
      %v345 = vrot.slane %v331, %v344
      %v346 = vcombine.high %v338, %v338
      %v347 = vcombine.high %v345, %v345
      %v348 = vcombine.high %v328, %v328
      %v350 = vunpack.c.l.s4 1983009808
      %v351 = vunpack.c.0.s8 %v350
      %v352 = vlaneseq
      %v353 = vshrl.u32 %v352, 7
      %v354 = vsub.s32 %v351, %v353
      %v355 = vrot.slane %v328, %v354
      %v357 = vunpack.c.l.s4 1983009808
      %v358 = vunpack.c.0.s8 %v357
      %v359 = vlaneseq
      %v360 = vshrl.u32 %v359, 7
      %v361 = vsub.s32 %v358, %v360
      %v362 = vrot.slane %v348, %v361
      %v363 = vcombine.high %v355, %v355
      %v364 = vcombine.high %v362, %v362
      %vm373 = vcmask 1041408
      %v374 = vsel %vm373, %v338, 0.0
      %v375 = vsel %vm373, %v346, 0.0
      %v376 = vadd.f32 %v374, %v375
      %v377 = vsel %vm373, %v345, 0.0
      %v378 = vadd.f32 %v376, %v377
      %v379 = vsel %vm373, %v347, 0.0
      %v380 = vadd.f32 %v378, %v379
      %381 = vadd.xlane.f32.xlu0 %v380
      %v382 = vpop.xlane.xlu0 %381
      %v383 = vsel %vm373, %v355, 0.0
      %v384 = vsel %vm373, %v363, 0.0
      %v385 = vadd.f32 %v383, %v384
      %v386 = vsel %vm373, %v362, 0.0
      %v387 = vadd.f32 %v385, %v386
      %v388 = vsel %vm373, %v364, 0.0
      %v389 = vadd.f32 %v387, %v388
      %390 = vadd.xlane.f32.xlu0 %v389
      %v391 = vpop.xlane.xlu0 %390
      %v394 = vlaneseq
      %v395 = vand.u32 %v394, 127
      %v396 = vlaneseq
      %v397 = vshrl.u32 %v396, 7
      %v398 = vsub.s32 %v395, %v397
      %v399 = vrot.slane %v382, %v398
      %v400 = vlaneseq
      %v401 = vshrl.u32 %v400, 7
      %v402 = vsub.s32 %v395, %v401
      %v403 = vrot.slane %v391, %v402
      %vm404 = vcmask 1041409
      %v405 = vsel %vm404, %v403, %v399
      %vm407 = vcmask 9216
      %408 = vst.msk [vmem:[%s221] sm:$0x3] %vm407, %v405
      %v409 = vld [vmem:[%s212 + $0x20] sm:$0xc]
      %v410 = vld [vmem:[%s212 + $0x28] sm:$0xc]
      %v411 = vld [vmem:[%s212 + $0x30] sm:$0xc]
      %v412 = vld [vmem:[%s212 + $0x38] sm:$0xc]
      %v413 = vld [vmem:[%s212 + $0x60] sm:$0xc]
      %v414 = vld [vmem:[%s212 + $0x68] sm:$0xc]
      %v415 = vld [vmem:[%s212 + $0x70] sm:$0xc]
      %v416 = vld [vmem:[%s212 + $0x78] sm:$0xc]
      %v425 = vcombine.low %v409, %v410
      %v426 = vcombine.low %v411, %v412
      %v428 = vunpack.c.l.s4 1983009808
      %v429 = vunpack.c.0.s8 %v428
      %v430 = vlaneseq
      %v431 = vshrl.u32 %v430, 7
      %v432 = vsub.s32 %v429, %v431
      %v433 = vrot.slane %v425, %v432
      %v435 = vunpack.c.l.s4 1983009808
      %v436 = vunpack.c.0.s8 %v435
      %v437 = vlaneseq
      %v438 = vshrl.u32 %v437, 7
      %v439 = vsub.s32 %v436, %v438
      %v440 = vrot.slane %v426, %v439
      %v441 = vcombine.high %v433, %v440
      %v442 = vcombine.low %v413, %v414
      %v443 = vcombine.low %v415, %v416
      %v445 = vunpack.c.l.s4 1983009808
      %v446 = vunpack.c.0.s8 %v445
      %v447 = vlaneseq
      %v448 = vshrl.u32 %v447, 7
      %v449 = vsub.s32 %v446, %v448
      %v450 = vrot.slane %v442, %v449
      %v452 = vunpack.c.l.s4 1983009808
      %v453 = vunpack.c.0.s8 %v452
      %v454 = vlaneseq
      %v455 = vshrl.u32 %v454, 7
      %v456 = vsub.s32 %v453, %v455
      %v457 = vrot.slane %v443, %v456
      %v458 = vcombine.high %v450, %v457
      %v461 = vsub.f32 %v222, %v441
      %v462 = vsub.f32 %v223, %v458
      %v463 = vand.u32 2147483647, %v461
      %v464 = vand.u32 2147483647, %v462
      %v467 = vcombine.high %v463, %v463
      %v469 = vunpack.c.l.s4 1983009808
      %v470 = vunpack.c.0.s8 %v469
      %v471 = vlaneseq
      %v472 = vshrl.u32 %v471, 7
      %v473 = vsub.s32 %v470, %v472
      %v474 = vrot.slane %v463, %v473
      %v476 = vunpack.c.l.s4 1983009808
      %v477 = vunpack.c.0.s8 %v476
      %v478 = vlaneseq
      %v479 = vshrl.u32 %v478, 7
      %v480 = vsub.s32 %v477, %v479
      %v481 = vrot.slane %v467, %v480
      %v482 = vcombine.high %v474, %v474
      %v483 = vcombine.high %v481, %v481
      %v484 = vcombine.high %v464, %v464
      %v486 = vunpack.c.l.s4 1983009808
      %v487 = vunpack.c.0.s8 %v486
      %v488 = vlaneseq
      %v489 = vshrl.u32 %v488, 7
      %v490 = vsub.s32 %v487, %v489
      %v491 = vrot.slane %v464, %v490
      %v493 = vunpack.c.l.s4 1983009808
      %v494 = vunpack.c.0.s8 %v493
      %v495 = vlaneseq
      %v496 = vshrl.u32 %v495, 7
      %v497 = vsub.s32 %v494, %v496
      %v498 = vrot.slane %v484, %v497
      %v499 = vcombine.high %v491, %v491
      %v500 = vcombine.high %v498, %v498
      %v509 = vsel %vm373, %v474, 0.0
      %v510 = vsel %vm373, %v482, 0.0
      %v511 = vadd.f32 %v509, %v510
      %v512 = vsel %vm373, %v481, 0.0
      %v513 = vadd.f32 %v511, %v512
      %v514 = vsel %vm373, %v483, 0.0
      %v515 = vadd.f32 %v513, %v514
      %516 = vadd.xlane.f32.xlu0 %v515
      %v517 = vpop.xlane.xlu0 %516
      %v518 = vsel %vm373, %v491, 0.0
      %v519 = vsel %vm373, %v499, 0.0
      %v520 = vadd.f32 %v518, %v519
      %v521 = vsel %vm373, %v498, 0.0
      %v522 = vadd.f32 %v520, %v521
      %v523 = vsel %vm373, %v500, 0.0
      %v524 = vadd.f32 %v522, %v523
      %525 = vadd.xlane.f32.xlu0 %v524
      %v526 = vpop.xlane.xlu0 %525
      %v529 = vlaneseq
      %v530 = vshrl.u32 %v529, 7
      %v531 = vsub.s32 %v395, %v530
      %v532 = vrot.slane %v517, %v531
      %v533 = vlaneseq
      %v534 = vshrl.u32 %v533, 7
      %v535 = vsub.s32 %v395, %v534
      %v536 = vrot.slane %v526, %v535
      %v537 = vsel %vm404, %v536, %v532
      %s539 = scalar_lea.vmem %s221, 2
      %540 = vst.msk [vmem:[%s539] sm:$0x3] %vm407, %v537
      %v541 = vld [vmem:[%s212 + $0x20] sm:$0x6]
      %v542 = vld [vmem:[%s212 + $0x28] sm:$0x6]
      %v543 = vld [vmem:[%s212 + $0x30] sm:$0x6]
      %v544 = vld [vmem:[%s212 + $0x38] sm:$0x6]
      %v545 = vld [vmem:[%s212 + $0x60] sm:$0x6]
      %v546 = vld [vmem:[%s212 + $0x68] sm:$0x6]
      %v547 = vld [vmem:[%s212 + $0x70] sm:$0x6]
      %v548 = vld [vmem:[%s212 + $0x78] sm:$0x6]
      %v557 = vcombine.low %v541, %v542
      %v558 = vcombine.low %v543, %v544
      %v560 = vunpack.c.l.s4 1983009808
      %v561 = vunpack.c.0.s8 %v560
      %v562 = vlaneseq
      %v563 = vshrl.u32 %v562, 7
      %v564 = vsub.s32 %v561, %v563
      %v565 = vrot.slane %v557, %v564
      %v567 = vunpack.c.l.s4 1983009808
      %v568 = vunpack.c.0.s8 %v567
      %v569 = vlaneseq
      %v570 = vshrl.u32 %v569, 7
      %v571 = vsub.s32 %v568, %v570
      %v572 = vrot.slane %v558, %v571
      %v573 = vcombine.low %v565, %v572
      %v574 = vcombine.high %v565, %v572
      %v575 = vcombine.low %v545, %v546
      %v576 = vcombine.low %v547, %v548
      %v578 = vunpack.c.l.s4 1983009808
      %v579 = vunpack.c.0.s8 %v578
      %v580 = vlaneseq
      %v581 = vshrl.u32 %v580, 7
      %v582 = vsub.s32 %v579, %v581
      %v583 = vrot.slane %v575, %v582
      %v585 = vunpack.c.l.s4 1983009808
      %v586 = vunpack.c.0.s8 %v585
      %v587 = vlaneseq
      %v588 = vshrl.u32 %v587, 7
      %v589 = vsub.s32 %v586, %v588
      %v590 = vrot.slane %v576, %v589
      %v591 = vcombine.low %v583, %v590
      %v592 = vcombine.high %v583, %v590
      %v593 = vrot.slane %v573, 7
      %v594 = vrot.slane %v593, 2
      %v595 = vrot.slane %v574, 7
      %v596 = vsel %vm314, %v594, %v595
      %v597 = vrot.slane %v591, 7
      %v598 = vrot.slane %v597, 2
      %v599 = vrot.slane %v592, 7
      %v600 = vsel %vm314, %v598, %v599
      %v603 = vsub.f32 %v222, %v596
      %v604 = vsub.f32 %v223, %v600
      %v605 = vand.u32 2147483647, %v603
      %v606 = vand.u32 2147483647, %v604
      %v609 = vcombine.high %v605, %v605
      %v611 = vunpack.c.l.s4 1983009808
      %v612 = vunpack.c.0.s8 %v611
      %v613 = vlaneseq
      %v614 = vshrl.u32 %v613, 7
      %v615 = vsub.s32 %v612, %v614
      %v616 = vrot.slane %v605, %v615
      %v618 = vunpack.c.l.s4 1983009808
      %v619 = vunpack.c.0.s8 %v618
      %v620 = vlaneseq
      %v621 = vshrl.u32 %v620, 7
      %v622 = vsub.s32 %v619, %v621
      %v623 = vrot.slane %v609, %v622
      %v624 = vcombine.high %v616, %v616
      %v625 = vcombine.high %v623, %v623
      %v626 = vcombine.high %v606, %v606
      %v628 = vunpack.c.l.s4 1983009808
      %v629 = vunpack.c.0.s8 %v628
      %v630 = vlaneseq
      %v631 = vshrl.u32 %v630, 7
      %v632 = vsub.s32 %v629, %v631
      %v633 = vrot.slane %v606, %v632
      %v635 = vunpack.c.l.s4 1983009808
      %v636 = vunpack.c.0.s8 %v635
      %v637 = vlaneseq
      %v638 = vshrl.u32 %v637, 7
      %v639 = vsub.s32 %v636, %v638
      %v640 = vrot.slane %v626, %v639
      %v641 = vcombine.high %v633, %v633
      %v642 = vcombine.high %v640, %v640
      %v651 = vsel %vm373, %v616, 0.0
      %v652 = vsel %vm373, %v624, 0.0
      %v653 = vadd.f32 %v651, %v652
      %v654 = vsel %vm373, %v623, 0.0
      %v655 = vadd.f32 %v653, %v654
      %v656 = vsel %vm373, %v625, 0.0
      %v657 = vadd.f32 %v655, %v656
      %658 = vadd.xlane.f32.xlu0 %v657
      %v659 = vpop.xlane.xlu0 %658
      %v660 = vsel %vm373, %v633, 0.0
      %v661 = vsel %vm373, %v641, 0.0
      %v662 = vadd.f32 %v660, %v661
      %v663 = vsel %vm373, %v640, 0.0
      %v664 = vadd.f32 %v662, %v663
      %v665 = vsel %vm373, %v642, 0.0
      %v666 = vadd.f32 %v664, %v665
      %667 = vadd.xlane.f32.xlu0 %v666
      %v668 = vpop.xlane.xlu0 %667
      %v671 = vlaneseq
      %v672 = vshrl.u32 %v671, 7
      %v673 = vsub.s32 %v395, %v672
      %v674 = vrot.slane %v659, %v673
      %v675 = vlaneseq
      %v676 = vshrl.u32 %v675, 7
      %v677 = vsub.s32 %v395, %v676
      %v678 = vrot.slane %v668, %v677
      %v679 = vsel %vm404, %v678, %v674
      %s681 = scalar_lea.vmem %s221, 4
      %682 = vst.msk [vmem:[%s681] sm:$0x3] %vm407, %v679
      %v683 = vld [vmem:[%s212 + $0x20] sm:$0x3]
      %v684 = vld [vmem:[%s212 + $0x28] sm:$0x3]
      %v685 = vld [vmem:[%s212 + $0x30] sm:$0x3]
      %v686 = vld [vmem:[%s212 + $0x38] sm:$0x3]
      %v687 = vld [vmem:[%s212 + $0x60] sm:$0x3]
      %v688 = vld [vmem:[%s212 + $0x68] sm:$0x3]
      %v689 = vld [vmem:[%s212 + $0x70] sm:$0x3]
      %v690 = vld [vmem:[%s212 + $0x78] sm:$0x3]
      %v699 = vcombine.low %v683, %v684
      %v700 = vcombine.low %v685, %v686
      %v702 = vunpack.c.l.s4 1983009808
      %v703 = vunpack.c.0.s8 %v702
      %v704 = vlaneseq
      %v705 = vshrl.u32 %v704, 7
      %v706 = vsub.s32 %v703, %v705
      %v707 = vrot.slane %v699, %v706
      %v709 = vunpack.c.l.s4 1983009808
      %v710 = vunpack.c.0.s8 %v709
      %v711 = vlaneseq
      %v712 = vshrl.u32 %v711, 7
      %v713 = vsub.s32 %v710, %v712
      %v714 = vrot.slane %v700, %v713
      %v715 = vcombine.low %v707, %v714
      %v716 = vcombine.low %v687, %v688
      %v717 = vcombine.low %v689, %v690
      %v719 = vunpack.c.l.s4 1983009808
      %v720 = vunpack.c.0.s8 %v719
      %v721 = vlaneseq
      %v722 = vshrl.u32 %v721, 7
      %v723 = vsub.s32 %v720, %v722
      %v724 = vrot.slane %v716, %v723
      %v726 = vunpack.c.l.s4 1983009808
      %v727 = vunpack.c.0.s8 %v726
      %v728 = vlaneseq
      %v729 = vshrl.u32 %v728, 7
      %v730 = vsub.s32 %v727, %v729
      %v731 = vrot.slane %v717, %v730
      %v732 = vcombine.low %v724, %v731
      %v735 = vsub.f32 %v222, %v715
      %v736 = vsub.f32 %v223, %v732
      %v737 = vand.u32 2147483647, %v735
      %v738 = vand.u32 2147483647, %v736
      %v741 = vcombine.high %v737, %v737
      %v743 = vunpack.c.l.s4 1983009808
      %v744 = vunpack.c.0.s8 %v743
      %v745 = vlaneseq
      %v746 = vshrl.u32 %v745, 7
      %v747 = vsub.s32 %v744, %v746
      %v748 = vrot.slane %v737, %v747
      %v750 = vunpack.c.l.s4 1983009808
      %v751 = vunpack.c.0.s8 %v750
      %v752 = vlaneseq
      %v753 = vshrl.u32 %v752, 7
      %v754 = vsub.s32 %v751, %v753
      %v755 = vrot.slane %v741, %v754
      %v756 = vcombine.high %v748, %v748
      %v757 = vcombine.high %v755, %v755
      %v758 = vcombine.high %v738, %v738
      %v760 = vunpack.c.l.s4 1983009808
      %v761 = vunpack.c.0.s8 %v760
      %v762 = vlaneseq
      %v763 = vshrl.u32 %v762, 7
      %v764 = vsub.s32 %v761, %v763
      %v765 = vrot.slane %v738, %v764
      %v767 = vunpack.c.l.s4 1983009808
      %v768 = vunpack.c.0.s8 %v767
      %v769 = vlaneseq
      %v770 = vshrl.u32 %v769, 7
      %v771 = vsub.s32 %v768, %v770
      %v772 = vrot.slane %v758, %v771
      %v773 = vcombine.high %v765, %v765
      %v774 = vcombine.high %v772, %v772
      %v783 = vsel %vm373, %v748, 0.0
      %v784 = vsel %vm373, %v756, 0.0
      %v785 = vadd.f32 %v783, %v784
      %v786 = vsel %vm373, %v755, 0.0
      %v787 = vadd.f32 %v785, %v786
      %v788 = vsel %vm373, %v757, 0.0
      %v789 = vadd.f32 %v787, %v788
      %790 = vadd.xlane.f32.xlu0 %v789
      %v791 = vpop.xlane.xlu0 %790
      %v792 = vsel %vm373, %v765, 0.0
      %v793 = vsel %vm373, %v773, 0.0
      %v794 = vadd.f32 %v792, %v793
      %v795 = vsel %vm373, %v772, 0.0
      %v796 = vadd.f32 %v794, %v795
      %v797 = vsel %vm373, %v774, 0.0
      %v798 = vadd.f32 %v796, %v797
      %799 = vadd.xlane.f32.xlu0 %v798
      %v800 = vpop.xlane.xlu0 %799
      %v803 = vlaneseq
      %v804 = vshrl.u32 %v803, 7
      %v805 = vsub.s32 %v395, %v804
      %v806 = vrot.slane %v791, %v805
      %v807 = vlaneseq
      %v808 = vshrl.u32 %v807, 7
      %v809 = vsub.s32 %v395, %v808
      %v810 = vrot.slane %v800, %v809
      %v811 = vsel %vm404, %v810, %v806
      %s813 = scalar_lea.vmem %s221, 6
      %814 = vst.msk [vmem:[%s813] sm:$0x3] %vm407, %v811
      %v815 = vld [vmem:[%s212] sm:$0x80]
      %v816 = vld [vmem:[%s212 + $0x8] sm:$0x80]
      %v817 = vld [vmem:[%s212 + $0x10] sm:$0x80]
      %v818 = vld [vmem:[%s212 + $0x18] sm:$0x80]
      %v819 = vld [vmem:[%s212 + $0x20] sm:$0x1]
      %v820 = vld [vmem:[%s212 + $0x28] sm:$0x1]
      %v821 = vld [vmem:[%s212 + $0x30] sm:$0x1]
      %v822 = vld [vmem:[%s212 + $0x38] sm:$0x1]
      %v823 = vld [vmem:[%s212 + $0x40] sm:$0x80]
      %v824 = vld [vmem:[%s212 + $0x48] sm:$0x80]
      %v825 = vld [vmem:[%s212 + $0x50] sm:$0x80]
      %v826 = vld [vmem:[%s212 + $0x58] sm:$0x80]
      %v827 = vld [vmem:[%s212 + $0x60] sm:$0x1]
      %v828 = vld [vmem:[%s212 + $0x68] sm:$0x1]
      %v829 = vld [vmem:[%s212 + $0x70] sm:$0x1]
      %v830 = vld [vmem:[%s212 + $0x78] sm:$0x1]
      %v847 = vcombine.high %v815, %v816
      %v848 = vcombine.high %v817, %v818
      %v850 = vunpack.c.l.s4 1983009808
      %v851 = vunpack.c.0.s8 %v850
      %v852 = vlaneseq
      %v853 = vshrl.u32 %v852, 7
      %v854 = vsub.s32 %v851, %v853
      %v855 = vrot.slane %v847, %v854
      %v857 = vunpack.c.l.s4 1983009808
      %v858 = vunpack.c.0.s8 %v857
      %v859 = vlaneseq
      %v860 = vshrl.u32 %v859, 7
      %v861 = vsub.s32 %v858, %v860
      %v862 = vrot.slane %v848, %v861
      %v863 = vcombine.high %v855, %v862
      %v864 = vcombine.low %v819, %v820
      %v865 = vcombine.low %v821, %v822
      %v867 = vunpack.c.l.s4 1983009808
      %v868 = vunpack.c.0.s8 %v867
      %v869 = vlaneseq
      %v870 = vshrl.u32 %v869, 7
      %v871 = vsub.s32 %v868, %v870
      %v872 = vrot.slane %v864, %v871
      %v874 = vunpack.c.l.s4 1983009808
      %v875 = vunpack.c.0.s8 %v874
      %v876 = vlaneseq
      %v877 = vshrl.u32 %v876, 7
      %v878 = vsub.s32 %v875, %v877
      %v879 = vrot.slane %v865, %v878
      %v880 = vcombine.low %v872, %v879
      %v881 = vcombine.high %v823, %v824
      %v882 = vcombine.high %v825, %v826
      %v884 = vunpack.c.l.s4 1983009808
      %v885 = vunpack.c.0.s8 %v884
      %v886 = vlaneseq
      %v887 = vshrl.u32 %v886, 7
      %v888 = vsub.s32 %v885, %v887
      %v889 = vrot.slane %v881, %v888
      %v891 = vunpack.c.l.s4 1983009808
      %v892 = vunpack.c.0.s8 %v891
      %v893 = vlaneseq
      %v894 = vshrl.u32 %v893, 7
      %v895 = vsub.s32 %v892, %v894
      %v896 = vrot.slane %v882, %v895
      %v897 = vcombine.high %v889, %v896
      %v898 = vcombine.low %v827, %v828
      %v899 = vcombine.low %v829, %v830
      %v901 = vunpack.c.l.s4 1983009808
      %v902 = vunpack.c.0.s8 %v901
      %v903 = vlaneseq
      %v904 = vshrl.u32 %v903, 7
      %v905 = vsub.s32 %v902, %v904
      %v906 = vrot.slane %v898, %v905
      %v908 = vunpack.c.l.s4 1983009808
      %v909 = vunpack.c.0.s8 %v908
      %v910 = vlaneseq
      %v911 = vshrl.u32 %v910, 7
      %v912 = vsub.s32 %v909, %v911
      %v913 = vrot.slane %v899, %v912
      %v914 = vcombine.low %v906, %v913
      %v915 = vrot.slane %v863, 7
      %v916 = vrot.slane %v915, 2
      %v917 = vrot.slane %v880, 7
      %v918 = vsel %vm314, %v916, %v917
      %v919 = vrot.slane %v897, 7
      %v920 = vrot.slane %v919, 2
      %v921 = vrot.slane %v914, 7
      %v922 = vsel %vm314, %v920, %v921
      %v925 = vsub.f32 %v222, %v918
      %v926 = vsub.f32 %v223, %v922
      %v927 = vand.u32 2147483647, %v925
      %v928 = vand.u32 2147483647, %v926
      %v931 = vcombine.high %v927, %v927
      %v933 = vunpack.c.l.s4 1983009808
      %v934 = vunpack.c.0.s8 %v933
      %v935 = vlaneseq
      %v936 = vshrl.u32 %v935, 7
      %v937 = vsub.s32 %v934, %v936
      %v938 = vrot.slane %v927, %v937
      %v940 = vunpack.c.l.s4 1983009808
      %v941 = vunpack.c.0.s8 %v940
      %v942 = vlaneseq
      %v943 = vshrl.u32 %v942, 7
      %v944 = vsub.s32 %v941, %v943
      %v945 = vrot.slane %v931, %v944
      %v946 = vcombine.high %v938, %v938
      %v947 = vcombine.high %v945, %v945
      %v948 = vcombine.high %v928, %v928
      %v950 = vunpack.c.l.s4 1983009808
      %v951 = vunpack.c.0.s8 %v950
      %v952 = vlaneseq
      %v953 = vshrl.u32 %v952, 7
      %v954 = vsub.s32 %v951, %v953
      %v955 = vrot.slane %v928, %v954
      %v957 = vunpack.c.l.s4 1983009808
      %v958 = vunpack.c.0.s8 %v957
      %v959 = vlaneseq
      %v960 = vshrl.u32 %v959, 7
      %v961 = vsub.s32 %v958, %v960
      %v962 = vrot.slane %v948, %v961
      %v963 = vcombine.high %v955, %v955
      %v964 = vcombine.high %v962, %v962
      %v973 = vsel %vm373, %v938, 0.0
      %v974 = vsel %vm373, %v946, 0.0
      %v975 = vadd.f32 %v973, %v974
      %v976 = vsel %vm373, %v945, 0.0
      %v977 = vadd.f32 %v975, %v976
      %v978 = vsel %vm373, %v947, 0.0
      %v979 = vadd.f32 %v977, %v978
      %980 = vadd.xlane.f32.xlu0 %v979
      %v981 = vpop.xlane.xlu0 %980
      %v982 = vsel %vm373, %v955, 0.0
      %v983 = vsel %vm373, %v963, 0.0
      %v984 = vadd.f32 %v982, %v983
      %v985 = vsel %vm373, %v962, 0.0
      %v986 = vadd.f32 %v984, %v985
      %v987 = vsel %vm373, %v964, 0.0
      %v988 = vadd.f32 %v986, %v987
      %989 = vadd.xlane.f32.xlu0 %v988
      %v990 = vpop.xlane.xlu0 %989
      %v993 = vlaneseq
      %v994 = vshrl.u32 %v993, 7
      %v995 = vsub.s32 %v395, %v994
      %v996 = vrot.slane %v981, %v995
      %v997 = vlaneseq
      %v998 = vshrl.u32 %v997, 7
      %v999 = vsub.s32 %v395, %v998
      %v1000 = vrot.slane %v990, %v999
      %v1001 = vsel %vm404, %v1000, %v996
      %s1003 = scalar_lea.vmem %s221, 8
      %1004 = vst.msk [vmem:[%s1003] sm:$0x3] %vm407, %v1001
      %v1005 = vld [vmem:[%s212] sm:$0xc0]
      %v1006 = vld [vmem:[%s212 + $0x8] sm:$0xc0]
      %v1007 = vld [vmem:[%s212 + $0x10] sm:$0xc0]
      %v1008 = vld [vmem:[%s212 + $0x18] sm:$0xc0]
      %v1009 = vld [vmem:[%s212 + $0x40] sm:$0xc0]
      %v1010 = vld [vmem:[%s212 + $0x48] sm:$0xc0]
      %v1011 = vld [vmem:[%s212 + $0x50] sm:$0xc0]
      %v1012 = vld [vmem:[%s212 + $0x58] sm:$0xc0]
      %v1021 = vcombine.high %v1005, %v1006
      %v1022 = vcombine.high %v1007, %v1008
      %v1024 = vunpack.c.l.s4 1983009808
      %v1025 = vunpack.c.0.s8 %v1024
      %v1026 = vlaneseq
      %v1027 = vshrl.u32 %v1026, 7
      %v1028 = vsub.s32 %v1025, %v1027
      %v1029 = vrot.slane %v1021, %v1028
      %v1031 = vunpack.c.l.s4 1983009808
      %v1032 = vunpack.c.0.s8 %v1031
      %v1033 = vlaneseq
      %v1034 = vshrl.u32 %v1033, 7
      %v1035 = vsub.s32 %v1032, %v1034
      %v1036 = vrot.slane %v1022, %v1035
      %v1037 = vcombine.high %v1029, %v1036
      %v1038 = vcombine.high %v1009, %v1010
      %v1039 = vcombine.high %v1011, %v1012
      %v1041 = vunpack.c.l.s4 1983009808
      %v1042 = vunpack.c.0.s8 %v1041
      %v1043 = vlaneseq
      %v1044 = vshrl.u32 %v1043, 7
      %v1045 = vsub.s32 %v1042, %v1044
      %v1046 = vrot.slane %v1038, %v1045
      %v1048 = vunpack.c.l.s4 1983009808
      %v1049 = vunpack.c.0.s8 %v1048
      %v1050 = vlaneseq
      %v1051 = vshrl.u32 %v1050, 7
      %v1052 = vsub.s32 %v1049, %v1051
      %v1053 = vrot.slane %v1039, %v1052
      %v1054 = vcombine.high %v1046, %v1053
      %v1057 = vsub.f32 %v222, %v1037
      %v1058 = vsub.f32 %v223, %v1054
      %v1059 = vand.u32 2147483647, %v1057
      %v1060 = vand.u32 2147483647, %v1058
      %v1063 = vcombine.high %v1059, %v1059
      %v1065 = vunpack.c.l.s4 1983009808
      %v1066 = vunpack.c.0.s8 %v1065
      %v1067 = vlaneseq
      %v1068 = vshrl.u32 %v1067, 7
      %v1069 = vsub.s32 %v1066, %v1068
      %v1070 = vrot.slane %v1059, %v1069
      %v1072 = vunpack.c.l.s4 1983009808
      %v1073 = vunpack.c.0.s8 %v1072
      %v1074 = vlaneseq
      %v1075 = vshrl.u32 %v1074, 7
      %v1076 = vsub.s32 %v1073, %v1075
      %v1077 = vrot.slane %v1063, %v1076
      %v1078 = vcombine.high %v1070, %v1070
      %v1079 = vcombine.high %v1077, %v1077
      %v1080 = vcombine.high %v1060, %v1060
      %v1082 = vunpack.c.l.s4 1983009808
      %v1083 = vunpack.c.0.s8 %v1082
      %v1084 = vlaneseq
      %v1085 = vshrl.u32 %v1084, 7
      %v1086 = vsub.s32 %v1083, %v1085
      %v1087 = vrot.slane %v1060, %v1086
      %v1089 = vunpack.c.l.s4 1983009808
      %v1090 = vunpack.c.0.s8 %v1089
      %v1091 = vlaneseq
      %v1092 = vshrl.u32 %v1091, 7
      %v1093 = vsub.s32 %v1090, %v1092
      %v1094 = vrot.slane %v1080, %v1093
      %v1095 = vcombine.high %v1087, %v1087
      %v1096 = vcombine.high %v1094, %v1094
      %v1105 = vsel %vm373, %v1070, 0.0
      %v1106 = vsel %vm373, %v1078, 0.0
      %v1107 = vadd.f32 %v1105, %v1106
      %v1108 = vsel %vm373, %v1077, 0.0
      %v1109 = vadd.f32 %v1107, %v1108
      %v1110 = vsel %vm373, %v1079, 0.0
      %v1111 = vadd.f32 %v1109, %v1110
      %1112 = vadd.xlane.f32.xlu0 %v1111
      %v1113 = vpop.xlane.xlu0 %1112
      %v1114 = vsel %vm373, %v1087, 0.0
      %v1115 = vsel %vm373, %v1095, 0.0
      %v1116 = vadd.f32 %v1114, %v1115
      %v1117 = vsel %vm373, %v1094, 0.0
      %v1118 = vadd.f32 %v1116, %v1117
      %v1119 = vsel %vm373, %v1096, 0.0
      %v1120 = vadd.f32 %v1118, %v1119
      %1121 = vadd.xlane.f32.xlu0 %v1120
      %v1122 = vpop.xlane.xlu0 %1121
      %v1125 = vlaneseq
      %v1126 = vshrl.u32 %v1125, 7
      %v1127 = vsub.s32 %v395, %v1126
      %v1128 = vrot.slane %v1113, %v1127
      %v1129 = vlaneseq
      %v1130 = vshrl.u32 %v1129, 7
      %v1131 = vsub.s32 %v395, %v1130
      %v1132 = vrot.slane %v1122, %v1131
      %v1133 = vsel %vm404, %v1132, %v1128
      %s1135 = scalar_lea.vmem %s221, 10
      %1136 = vst.msk [vmem:[%s1135] sm:$0x3] %vm407, %v1133
      %v1137 = vld [vmem:[%s212] sm:$0x60]
      %v1138 = vld [vmem:[%s212 + $0x8] sm:$0x60]
      %v1139 = vld [vmem:[%s212 + $0x10] sm:$0x60]
      %v1140 = vld [vmem:[%s212 + $0x18] sm:$0x60]
      %v1141 = vld [vmem:[%s212 + $0x40] sm:$0x60]
      %v1142 = vld [vmem:[%s212 + $0x48] sm:$0x60]
      %v1143 = vld [vmem:[%s212 + $0x50] sm:$0x60]
      %v1144 = vld [vmem:[%s212 + $0x58] sm:$0x60]
      %v1153 = vcombine.high %v1137, %v1138
      %v1154 = vcombine.high %v1139, %v1140
      %v1156 = vunpack.c.l.s4 1983009808
      %v1157 = vunpack.c.0.s8 %v1156
      %v1158 = vlaneseq
      %v1159 = vshrl.u32 %v1158, 7
      %v1160 = vsub.s32 %v1157, %v1159
      %v1161 = vrot.slane %v1153, %v1160
      %v1163 = vunpack.c.l.s4 1983009808
      %v1164 = vunpack.c.0.s8 %v1163
      %v1165 = vlaneseq
      %v1166 = vshrl.u32 %v1165, 7
      %v1167 = vsub.s32 %v1164, %v1166
      %v1168 = vrot.slane %v1154, %v1167
      %v1169 = vcombine.low %v1161, %v1168
      %v1170 = vcombine.high %v1161, %v1168
      %v1171 = vcombine.high %v1141, %v1142
      %v1172 = vcombine.high %v1143, %v1144
      %v1174 = vunpack.c.l.s4 1983009808
      %v1175 = vunpack.c.0.s8 %v1174
      %v1176 = vlaneseq
      %v1177 = vshrl.u32 %v1176, 7
      %v1178 = vsub.s32 %v1175, %v1177
      %v1179 = vrot.slane %v1171, %v1178
      %v1181 = vunpack.c.l.s4 1983009808
      %v1182 = vunpack.c.0.s8 %v1181
      %v1183 = vlaneseq
      %v1184 = vshrl.u32 %v1183, 7
      %v1185 = vsub.s32 %v1182, %v1184
      %v1186 = vrot.slane %v1172, %v1185
      %v1187 = vcombine.low %v1179, %v1186
      %v1188 = vcombine.high %v1179, %v1186
      %v1189 = vrot.slane %v1169, 7
      %v1190 = vrot.slane %v1189, 2
      %v1191 = vrot.slane %v1170, 7
      %v1192 = vsel %vm314, %v1190, %v1191
      %v1193 = vrot.slane %v1187, 7
      %v1194 = vrot.slane %v1193, 2
      %v1195 = vrot.slane %v1188, 7
      %v1196 = vsel %vm314, %v1194, %v1195
      %v1199 = vsub.f32 %v222, %v1192
      %v1200 = vsub.f32 %v223, %v1196
      %v1201 = vand.u32 2147483647, %v1199
      %v1202 = vand.u32 2147483647, %v1200
      %v1205 = vcombine.high %v1201, %v1201
      %v1207 = vunpack.c.l.s4 1983009808
      %v1208 = vunpack.c.0.s8 %v1207
      %v1209 = vlaneseq
      %v1210 = vshrl.u32 %v1209, 7
      %v1211 = vsub.s32 %v1208, %v1210
      %v1212 = vrot.slane %v1201, %v1211
      %v1214 = vunpack.c.l.s4 1983009808
      %v1215 = vunpack.c.0.s8 %v1214
      %v1216 = vlaneseq
      %v1217 = vshrl.u32 %v1216, 7
      %v1218 = vsub.s32 %v1215, %v1217
      %v1219 = vrot.slane %v1205, %v1218
      %v1220 = vcombine.high %v1212, %v1212
      %v1221 = vcombine.high %v1219, %v1219
      %v1222 = vcombine.high %v1202, %v1202
      %v1224 = vunpack.c.l.s4 1983009808
      %v1225 = vunpack.c.0.s8 %v1224
      %v1226 = vlaneseq
      %v1227 = vshrl.u32 %v1226, 7
      %v1228 = vsub.s32 %v1225, %v1227
      %v1229 = vrot.slane %v1202, %v1228
      %v1231 = vunpack.c.l.s4 1983009808
      %v1232 = vunpack.c.0.s8 %v1231
      %v1233 = vlaneseq
      %v1234 = vshrl.u32 %v1233, 7
      %v1235 = vsub.s32 %v1232, %v1234
      %v1236 = vrot.slane %v1222, %v1235
      %v1237 = vcombine.high %v1229, %v1229
      %v1238 = vcombine.high %v1236, %v1236
      %v1247 = vsel %vm373, %v1212, 0.0
      %v1248 = vsel %vm373, %v1220, 0.0
      %v1249 = vadd.f32 %v1247, %v1248
      %v1250 = vsel %vm373, %v1219, 0.0
      %v1251 = vadd.f32 %v1249, %v1250
      %v1252 = vsel %vm373, %v1221, 0.0
      %v1253 = vadd.f32 %v1251, %v1252
      %1254 = vadd.xlane.f32.xlu0 %v1253
      %v1255 = vpop.xlane.xlu0 %1254
      %v1256 = vsel %vm373, %v1229, 0.0
      %v1257 = vsel %vm373, %v1237, 0.0
      %v1258 = vadd.f32 %v1256, %v1257
      %v1259 = vsel %vm373, %v1236, 0.0
      %v1260 = vadd.f32 %v1258, %v1259
      %v1261 = vsel %vm373, %v1238, 0.0
      %v1262 = vadd.f32 %v1260, %v1261
      %1263 = vadd.xlane.f32.xlu0 %v1262
      %v1264 = vpop.xlane.xlu0 %1263
      %v1267 = vlaneseq
      %v1268 = vshrl.u32 %v1267, 7
      %v1269 = vsub.s32 %v395, %v1268
      %v1270 = vrot.slane %v1255, %v1269
      %v1271 = vlaneseq
      %v1272 = vshrl.u32 %v1271, 7
      %v1273 = vsub.s32 %v395, %v1272
      %v1274 = vrot.slane %v1264, %v1273
      %v1275 = vsel %vm404, %v1274, %v1270
      %s1277 = scalar_lea.vmem %s221, 12
      %1278 = vst.msk [vmem:[%s1277] sm:$0x3] %vm407, %v1275
      %v1279 = vld [vmem:[%s212] sm:$0x30]
      %v1280 = vld [vmem:[%s212 + $0x8] sm:$0x30]
      %v1281 = vld [vmem:[%s212 + $0x10] sm:$0x30]
      %v1282 = vld [vmem:[%s212 + $0x18] sm:$0x30]
      %v1283 = vld [vmem:[%s212 + $0x40] sm:$0x30]
      %v1284 = vld [vmem:[%s212 + $0x48] sm:$0x30]
      %v1285 = vld [vmem:[%s212 + $0x50] sm:$0x30]
      %v1286 = vld [vmem:[%s212 + $0x58] sm:$0x30]
      %v1295 = vcombine.high %v1279, %v1280
      %v1296 = vcombine.high %v1281, %v1282
      %v1298 = vunpack.c.l.s4 1983009808
      %v1299 = vunpack.c.0.s8 %v1298
      %v1300 = vlaneseq
      %v1301 = vshrl.u32 %v1300, 7
      %v1302 = vsub.s32 %v1299, %v1301
      %v1303 = vrot.slane %v1295, %v1302
      %v1305 = vunpack.c.l.s4 1983009808
      %v1306 = vunpack.c.0.s8 %v1305
      %v1307 = vlaneseq
      %v1308 = vshrl.u32 %v1307, 7
      %v1309 = vsub.s32 %v1306, %v1308
      %v1310 = vrot.slane %v1296, %v1309
      %v1311 = vcombine.low %v1303, %v1310
      %v1312 = vcombine.high %v1283, %v1284
      %v1313 = vcombine.high %v1285, %v1286
      %v1315 = vunpack.c.l.s4 1983009808
      %v1316 = vunpack.c.0.s8 %v1315
      %v1317 = vlaneseq
      %v1318 = vshrl.u32 %v1317, 7
      %v1319 = vsub.s32 %v1316, %v1318
      %v1320 = vrot.slane %v1312, %v1319
      %v1322 = vunpack.c.l.s4 1983009808
      %v1323 = vunpack.c.0.s8 %v1322
      %v1324 = vlaneseq
      %v1325 = vshrl.u32 %v1324, 7
      %v1326 = vsub.s32 %v1323, %v1325
      %v1327 = vrot.slane %v1313, %v1326
      %v1328 = vcombine.low %v1320, %v1327
      %v1331 = vsub.f32 %v222, %v1311
      %v1332 = vsub.f32 %v223, %v1328
      %v1333 = vand.u32 2147483647, %v1331
      %v1334 = vand.u32 2147483647, %v1332
      %v1337 = vcombine.high %v1333, %v1333
      %v1339 = vunpack.c.l.s4 1983009808
      %v1340 = vunpack.c.0.s8 %v1339
      %v1341 = vlaneseq
      %v1342 = vshrl.u32 %v1341, 7
      %v1343 = vsub.s32 %v1340, %v1342
      %v1344 = vrot.slane %v1333, %v1343
      %v1346 = vunpack.c.l.s4 1983009808
      %v1347 = vunpack.c.0.s8 %v1346
      %v1348 = vlaneseq
      %v1349 = vshrl.u32 %v1348, 7
      %v1350 = vsub.s32 %v1347, %v1349
      %v1351 = vrot.slane %v1337, %v1350
      %v1352 = vcombine.high %v1344, %v1344
      %v1353 = vcombine.high %v1351, %v1351
      %v1354 = vcombine.high %v1334, %v1334
      %v1356 = vunpack.c.l.s4 1983009808
      %v1357 = vunpack.c.0.s8 %v1356
      %v1358 = vlaneseq
      %v1359 = vshrl.u32 %v1358, 7
      %v1360 = vsub.s32 %v1357, %v1359
      %v1361 = vrot.slane %v1334, %v1360
      %v1363 = vunpack.c.l.s4 1983009808
      %v1364 = vunpack.c.0.s8 %v1363
      %v1365 = vlaneseq
      %v1366 = vshrl.u32 %v1365, 7
      %v1367 = vsub.s32 %v1364, %v1366
      %v1368 = vrot.slane %v1354, %v1367
      %v1369 = vcombine.high %v1361, %v1361
      %v1370 = vcombine.high %v1368, %v1368
      %v1379 = vsel %vm373, %v1344, 0.0
      %v1380 = vsel %vm373, %v1352, 0.0
      %v1381 = vadd.f32 %v1379, %v1380
      %v1382 = vsel %vm373, %v1351, 0.0
      %v1383 = vadd.f32 %v1381, %v1382
      %v1384 = vsel %vm373, %v1353, 0.0
      %v1385 = vadd.f32 %v1383, %v1384
      %1386 = vadd.xlane.f32.xlu0 %v1385
      %v1387 = vpop.xlane.xlu0 %1386
      %v1388 = vsel %vm373, %v1361, 0.0
      %v1389 = vsel %vm373, %v1369, 0.0
      %v1390 = vadd.f32 %v1388, %v1389
      %v1391 = vsel %vm373, %v1368, 0.0
      %v1392 = vadd.f32 %v1390, %v1391
      %v1393 = vsel %vm373, %v1370, 0.0
      %v1394 = vadd.f32 %v1392, %v1393
      %1395 = vadd.xlane.f32.xlu0 %v1394
      %v1396 = vpop.xlane.xlu0 %1395
      %v1399 = vlaneseq
      %v1400 = vshrl.u32 %v1399, 7
      %v1401 = vsub.s32 %v395, %v1400
      %v1402 = vrot.slane %v1387, %v1401
      %v1403 = vlaneseq
      %v1404 = vshrl.u32 %v1403, 7
      %v1405 = vsub.s32 %v395, %v1404
      %v1406 = vrot.slane %v1396, %v1405
      %v1407 = vsel %vm404, %v1406, %v1402
      %s1409 = scalar_lea.vmem %s221, 14
      %1410 = vst.msk [vmem:[%s1409] sm:$0x3] %vm407, %v1407
      %v1411 = vld [vmem:[%s212] sm:$0x18]
      %v1412 = vld [vmem:[%s212 + $0x8] sm:$0x18]
      %v1413 = vld [vmem:[%s212 + $0x10] sm:$0x18]
      %v1414 = vld [vmem:[%s212 + $0x18] sm:$0x18]
      %v1415 = vld [vmem:[%s212 + $0x40] sm:$0x18]
      %v1416 = vld [vmem:[%s212 + $0x48] sm:$0x18]
      %v1417 = vld [vmem:[%s212 + $0x50] sm:$0x18]
      %v1418 = vld [vmem:[%s212 + $0x58] sm:$0x18]
      %v1427 = vcombine.low %v1411, %v1412
      %v1428 = vcombine.high %v1411, %v1412
      %v1429 = vcombine.low %v1413, %v1414
      %v1430 = vcombine.high %v1413, %v1414
      %v1432 = vunpack.c.l.s4 1983009808
      %v1433 = vunpack.c.0.s8 %v1432
      %v1434 = vlaneseq
      %v1435 = vshrl.u32 %v1434, 7
      %v1436 = vsub.s32 %v1433, %v1435
      %v1437 = vrot.slane %v1427, %v1436
      %v1439 = vunpack.c.l.s4 1983009808
      %v1440 = vunpack.c.0.s8 %v1439
      %v1441 = vlaneseq
      %v1442 = vshrl.u32 %v1441, 7
      %v1443 = vsub.s32 %v1440, %v1442
      %v1444 = vrot.slane %v1428, %v1443
      %v1446 = vunpack.c.l.s4 1983009808
      %v1447 = vunpack.c.0.s8 %v1446
      %v1448 = vlaneseq
      %v1449 = vshrl.u32 %v1448, 7
      %v1450 = vsub.s32 %v1447, %v1449
      %v1451 = vrot.slane %v1429, %v1450
      %v1453 = vunpack.c.l.s4 1983009808
      %v1454 = vunpack.c.0.s8 %v1453
      %v1455 = vlaneseq
      %v1456 = vshrl.u32 %v1455, 7
      %v1457 = vsub.s32 %v1454, %v1456
      %v1458 = vrot.slane %v1430, %v1457
      %v1459 = vcombine.high %v1437, %v1451
      %v1460 = vcombine.low %v1444, %v1458
      %v1461 = vcombine.low %v1415, %v1416
      %v1462 = vcombine.high %v1415, %v1416
      %v1463 = vcombine.low %v1417, %v1418
      %v1464 = vcombine.high %v1417, %v1418
      %v1466 = vunpack.c.l.s4 1983009808
      %v1467 = vunpack.c.0.s8 %v1466
      %v1468 = vlaneseq
      %v1469 = vshrl.u32 %v1468, 7
      %v1470 = vsub.s32 %v1467, %v1469
      %v1471 = vrot.slane %v1461, %v1470
      %v1473 = vunpack.c.l.s4 1983009808
      %v1474 = vunpack.c.0.s8 %v1473
      %v1475 = vlaneseq
      %v1476 = vshrl.u32 %v1475, 7
      %v1477 = vsub.s32 %v1474, %v1476
      %v1478 = vrot.slane %v1462, %v1477
      %v1480 = vunpack.c.l.s4 1983009808
      %v1481 = vunpack.c.0.s8 %v1480
      %v1482 = vlaneseq
      %v1483 = vshrl.u32 %v1482, 7
      %v1484 = vsub.s32 %v1481, %v1483
      %v1485 = vrot.slane %v1463, %v1484
      %v1487 = vunpack.c.l.s4 1983009808
      %v1488 = vunpack.c.0.s8 %v1487
      %v1489 = vlaneseq
      %v1490 = vshrl.u32 %v1489, 7
      %v1491 = vsub.s32 %v1488, %v1490
      %v1492 = vrot.slane %v1464, %v1491
      %v1493 = vcombine.high %v1471, %v1485
      %v1494 = vcombine.low %v1478, %v1492
      %v1495 = vrot.slane %v1459, 7
      %v1496 = vrot.slane %v1495, 2
      %v1497 = vrot.slane %v1460, 7
      %v1498 = vsel %vm314, %v1496, %v1497
      %v1499 = vrot.slane %v1493, 7
      %v1500 = vrot.slane %v1499, 2
      %v1501 = vrot.slane %v1494, 7
      %v1502 = vsel %vm314, %v1500, %v1501
      %v1505 = vsub.f32 %v222, %v1498
      %v1506 = vsub.f32 %v223, %v1502
      %v1507 = vand.u32 2147483647, %v1505
      %v1508 = vand.u32 2147483647, %v1506
      %v1511 = vcombine.high %v1507, %v1507
      %v1513 = vunpack.c.l.s4 1983009808
      %v1514 = vunpack.c.0.s8 %v1513
      %v1515 = vlaneseq
      %v1516 = vshrl.u32 %v1515, 7
      %v1517 = vsub.s32 %v1514, %v1516
      %v1518 = vrot.slane %v1507, %v1517
      %v1520 = vunpack.c.l.s4 1983009808
      %v1521 = vunpack.c.0.s8 %v1520
      %v1522 = vlaneseq
      %v1523 = vshrl.u32 %v1522, 7
      %v1524 = vsub.s32 %v1521, %v1523
      %v1525 = vrot.slane %v1511, %v1524
      %v1526 = vcombine.high %v1518, %v1518
      %v1527 = vcombine.high %v1525, %v1525
      %v1528 = vcombine.high %v1508, %v1508
      %v1530 = vunpack.c.l.s4 1983009808
      %v1531 = vunpack.c.0.s8 %v1530
      %v1532 = vlaneseq
      %v1533 = vshrl.u32 %v1532, 7
      %v1534 = vsub.s32 %v1531, %v1533
      %v1535 = vrot.slane %v1508, %v1534
      %v1537 = vunpack.c.l.s4 1983009808
      %v1538 = vunpack.c.0.s8 %v1537
      %v1539 = vlaneseq
      %v1540 = vshrl.u32 %v1539, 7
      %v1541 = vsub.s32 %v1538, %v1540
      %v1542 = vrot.slane %v1528, %v1541
      %v1543 = vcombine.high %v1535, %v1535
      %v1544 = vcombine.high %v1542, %v1542
      %v1553 = vsel %vm373, %v1518, 0.0
      %v1554 = vsel %vm373, %v1526, 0.0
      %v1555 = vadd.f32 %v1553, %v1554
      %v1556 = vsel %vm373, %v1525, 0.0
      %v1557 = vadd.f32 %v1555, %v1556
      %v1558 = vsel %vm373, %v1527, 0.0
      %v1559 = vadd.f32 %v1557, %v1558
      %1560 = vadd.xlane.f32.xlu0 %v1559
      %v1561 = vpop.xlane.xlu0 %1560
      %v1562 = vsel %vm373, %v1535, 0.0
      %v1563 = vsel %vm373, %v1543, 0.0
      %v1564 = vadd.f32 %v1562, %v1563
      %v1565 = vsel %vm373, %v1542, 0.0
      %v1566 = vadd.f32 %v1564, %v1565
      %v1567 = vsel %vm373, %v1544, 0.0
      %v1568 = vadd.f32 %v1566, %v1567
      %1569 = vadd.xlane.f32.xlu0 %v1568
      %v1570 = vpop.xlane.xlu0 %1569
      %v1573 = vlaneseq
      %v1574 = vshrl.u32 %v1573, 7
      %v1575 = vsub.s32 %v395, %v1574
      %v1576 = vrot.slane %v1561, %v1575
      %v1577 = vlaneseq
      %v1578 = vshrl.u32 %v1577, 7
      %v1579 = vsub.s32 %v395, %v1578
      %v1580 = vrot.slane %v1570, %v1579
      %v1581 = vsel %vm404, %v1580, %v1576
      %s1583 = scalar_lea.vmem %s221, 16
      %1584 = vst.msk [vmem:[%s1583] sm:$0x3] %vm407, %v1581
      %v1585 = vld [vmem:[%s212] sm:$0xc]
      %v1586 = vld [vmem:[%s212 + $0x8] sm:$0xc]
      %v1587 = vld [vmem:[%s212 + $0x10] sm:$0xc]
      %v1588 = vld [vmem:[%s212 + $0x18] sm:$0xc]
      %v1589 = vld [vmem:[%s212 + $0x40] sm:$0xc]
      %v1590 = vld [vmem:[%s212 + $0x48] sm:$0xc]
      %v1591 = vld [vmem:[%s212 + $0x50] sm:$0xc]
      %v1592 = vld [vmem:[%s212 + $0x58] sm:$0xc]
      %v1601 = vcombine.low %v1585, %v1586
      %v1602 = vcombine.low %v1587, %v1588
      %v1604 = vunpack.c.l.s4 1983009808
      %v1605 = vunpack.c.0.s8 %v1604
      %v1606 = vlaneseq
      %v1607 = vshrl.u32 %v1606, 7
      %v1608 = vsub.s32 %v1605, %v1607
      %v1609 = vrot.slane %v1601, %v1608
      %v1611 = vunpack.c.l.s4 1983009808
      %v1612 = vunpack.c.0.s8 %v1611
      %v1613 = vlaneseq
      %v1614 = vshrl.u32 %v1613, 7
      %v1615 = vsub.s32 %v1612, %v1614
      %v1616 = vrot.slane %v1602, %v1615
      %v1617 = vcombine.high %v1609, %v1616
      %v1618 = vcombine.low %v1589, %v1590
      %v1619 = vcombine.low %v1591, %v1592
      %v1621 = vunpack.c.l.s4 1983009808
      %v1622 = vunpack.c.0.s8 %v1621
      %v1623 = vlaneseq
      %v1624 = vshrl.u32 %v1623, 7
      %v1625 = vsub.s32 %v1622, %v1624
      %v1626 = vrot.slane %v1618, %v1625
      %v1628 = vunpack.c.l.s4 1983009808
      %v1629 = vunpack.c.0.s8 %v1628
      %v1630 = vlaneseq
      %v1631 = vshrl.u32 %v1630, 7
      %v1632 = vsub.s32 %v1629, %v1631
      %v1633 = vrot.slane %v1619, %v1632
      %v1634 = vcombine.high %v1626, %v1633
      %v1637 = vsub.f32 %v222, %v1617
      %v1638 = vsub.f32 %v223, %v1634
      %v1639 = vand.u32 2147483647, %v1637
      %v1640 = vand.u32 2147483647, %v1638
      %v1643 = vcombine.high %v1639, %v1639
      %v1645 = vunpack.c.l.s4 1983009808
      %v1646 = vunpack.c.0.s8 %v1645
      %v1647 = vlaneseq
      %v1648 = vshrl.u32 %v1647, 7
      %v1649 = vsub.s32 %v1646, %v1648
      %v1650 = vrot.slane %v1639, %v1649
      %v1652 = vunpack.c.l.s4 1983009808
      %v1653 = vunpack.c.0.s8 %v1652
      %v1654 = vlaneseq
      %v1655 = vshrl.u32 %v1654, 7
      %v1656 = vsub.s32 %v1653, %v1655
      %v1657 = vrot.slane %v1643, %v1656
      %v1658 = vcombine.high %v1650, %v1650
      %v1659 = vcombine.high %v1657, %v1657
      %v1660 = vcombine.high %v1640, %v1640
      %v1662 = vunpack.c.l.s4 1983009808
      %v1663 = vunpack.c.0.s8 %v1662
      %v1664 = vlaneseq
      %v1665 = vshrl.u32 %v1664, 7
      %v1666 = vsub.s32 %v1663, %v1665
      %v1667 = vrot.slane %v1640, %v1666
      %v1669 = vunpack.c.l.s4 1983009808
      %v1670 = vunpack.c.0.s8 %v1669
      %v1671 = vlaneseq
      %v1672 = vshrl.u32 %v1671, 7
      %v1673 = vsub.s32 %v1670, %v1672
      %v1674 = vrot.slane %v1660, %v1673
      %v1675 = vcombine.high %v1667, %v1667
      %v1676 = vcombine.high %v1674, %v1674
      %v1685 = vsel %vm373, %v1650, 0.0
      %v1686 = vsel %vm373, %v1658, 0.0
      %v1687 = vadd.f32 %v1685, %v1686
      %v1688 = vsel %vm373, %v1657, 0.0
      %v1689 = vadd.f32 %v1687, %v1688
      %v1690 = vsel %vm373, %v1659, 0.0
      %v1691 = vadd.f32 %v1689, %v1690
      %1692 = vadd.xlane.f32.xlu0 %v1691
      %v1693 = vpop.xlane.xlu0 %1692
      %v1694 = vsel %vm373, %v1667, 0.0
      %v1695 = vsel %vm373, %v1675, 0.0
      %v1696 = vadd.f32 %v1694, %v1695
      %v1697 = vsel %vm373, %v1674, 0.0
      %v1698 = vadd.f32 %v1696, %v1697
      %v1699 = vsel %vm373, %v1676, 0.0
      %v1700 = vadd.f32 %v1698, %v1699
      %1701 = vadd.xlane.f32.xlu0 %v1700
      %v1702 = vpop.xlane.xlu0 %1701
      %v1705 = vlaneseq
      %v1706 = vshrl.u32 %v1705, 7
      %v1707 = vsub.s32 %v395, %v1706
      %v1708 = vrot.slane %v1693, %v1707
      %v1709 = vlaneseq
      %v1710 = vshrl.u32 %v1709, 7
      %v1711 = vsub.s32 %v395, %v1710
      %v1712 = vrot.slane %v1702, %v1711
      %v1713 = vsel %vm404, %v1712, %v1708
      %s1715 = scalar_lea.vmem %s221, 18
      %1716 = vst.msk [vmem:[%s1715] sm:$0x3] %vm407, %v1713
      %v1717 = vld [vmem:[%s212] sm:$0x6]
      %v1718 = vld [vmem:[%s212 + $0x8] sm:$0x6]
      %v1719 = vld [vmem:[%s212 + $0x10] sm:$0x6]
      %v1720 = vld [vmem:[%s212 + $0x18] sm:$0x6]
      %v1721 = vld [vmem:[%s212 + $0x40] sm:$0x6]
      %v1722 = vld [vmem:[%s212 + $0x48] sm:$0x6]
      %v1723 = vld [vmem:[%s212 + $0x50] sm:$0x6]
      %v1724 = vld [vmem:[%s212 + $0x58] sm:$0x6]
      %v1733 = vcombine.low %v1717, %v1718
      %v1734 = vcombine.low %v1719, %v1720
      %v1736 = vunpack.c.l.s4 1983009808
      %v1737 = vunpack.c.0.s8 %v1736
      %v1738 = vlaneseq
      %v1739 = vshrl.u32 %v1738, 7
      %v1740 = vsub.s32 %v1737, %v1739
      %v1741 = vrot.slane %v1733, %v1740
      %v1743 = vunpack.c.l.s4 1983009808
      %v1744 = vunpack.c.0.s8 %v1743
      %v1745 = vlaneseq
      %v1746 = vshrl.u32 %v1745, 7
      %v1747 = vsub.s32 %v1744, %v1746
      %v1748 = vrot.slane %v1734, %v1747
      %v1749 = vcombine.low %v1741, %v1748
      %v1750 = vcombine.high %v1741, %v1748
      %v1751 = vcombine.low %v1721, %v1722
      %v1752 = vcombine.low %v1723, %v1724
      %v1754 = vunpack.c.l.s4 1983009808
      %v1755 = vunpack.c.0.s8 %v1754
      %v1756 = vlaneseq
      %v1757 = vshrl.u32 %v1756, 7
      %v1758 = vsub.s32 %v1755, %v1757
      %v1759 = vrot.slane %v1751, %v1758
      %v1761 = vunpack.c.l.s4 1983009808
      %v1762 = vunpack.c.0.s8 %v1761
      %v1763 = vlaneseq
      %v1764 = vshrl.u32 %v1763, 7
      %v1765 = vsub.s32 %v1762, %v1764
      %v1766 = vrot.slane %v1752, %v1765
      %v1767 = vcombine.low %v1759, %v1766
      %v1768 = vcombine.high %v1759, %v1766
      %v1769 = vrot.slane %v1749, 7
      %v1770 = vrot.slane %v1769, 2
      %v1771 = vrot.slane %v1750, 7
      %v1772 = vsel %vm314, %v1770, %v1771
      %v1773 = vrot.slane %v1767, 7
      %v1774 = vrot.slane %v1773, 2
      %v1775 = vrot.slane %v1768, 7
      %v1776 = vsel %vm314, %v1774, %v1775
      %v1779 = vsub.f32 %v222, %v1772
      %v1780 = vsub.f32 %v223, %v1776
      %v1781 = vand.u32 2147483647, %v1779
      %v1782 = vand.u32 2147483647, %v1780
      %v1785 = vcombine.high %v1781, %v1781
      %v1787 = vunpack.c.l.s4 1983009808
      %v1788 = vunpack.c.0.s8 %v1787
      %v1789 = vlaneseq
      %v1790 = vshrl.u32 %v1789, 7
      %v1791 = vsub.s32 %v1788, %v1790
      %v1792 = vrot.slane %v1781, %v1791
      %v1794 = vunpack.c.l.s4 1983009808
      %v1795 = vunpack.c.0.s8 %v1794
      %v1796 = vlaneseq
      %v1797 = vshrl.u32 %v1796, 7
      %v1798 = vsub.s32 %v1795, %v1797
      %v1799 = vrot.slane %v1785, %v1798
      %v1800 = vcombine.high %v1792, %v1792
      %v1801 = vcombine.high %v1799, %v1799
      %v1802 = vcombine.high %v1782, %v1782
      %v1804 = vunpack.c.l.s4 1983009808
      %v1805 = vunpack.c.0.s8 %v1804
      %v1806 = vlaneseq
      %v1807 = vshrl.u32 %v1806, 7
      %v1808 = vsub.s32 %v1805, %v1807
      %v1809 = vrot.slane %v1782, %v1808
      %v1811 = vunpack.c.l.s4 1983009808
      %v1812 = vunpack.c.0.s8 %v1811
      %v1813 = vlaneseq
      %v1814 = vshrl.u32 %v1813, 7
      %v1815 = vsub.s32 %v1812, %v1814
      %v1816 = vrot.slane %v1802, %v1815
      %v1817 = vcombine.high %v1809, %v1809
      %v1818 = vcombine.high %v1816, %v1816
      %v1827 = vsel %vm373, %v1792, 0.0
      %v1828 = vsel %vm373, %v1800, 0.0
      %v1829 = vadd.f32 %v1827, %v1828
      %v1830 = vsel %vm373, %v1799, 0.0
      %v1831 = vadd.f32 %v1829, %v1830
      %v1832 = vsel %vm373, %v1801, 0.0
      %v1833 = vadd.f32 %v1831, %v1832
      %1834 = vadd.xlane.f32.xlu0 %v1833
      %v1835 = vpop.xlane.xlu0 %1834
      %v1836 = vsel %vm373, %v1809, 0.0
      %v1837 = vsel %vm373, %v1817, 0.0
      %v1838 = vadd.f32 %v1836, %v1837
      %v1839 = vsel %vm373, %v1816, 0.0
      %v1840 = vadd.f32 %v1838, %v1839
      %v1841 = vsel %vm373, %v1818, 0.0
      %v1842 = vadd.f32 %v1840, %v1841
      %1843 = vadd.xlane.f32.xlu0 %v1842
      %v1844 = vpop.xlane.xlu0 %1843
      %v1847 = vlaneseq
      %v1848 = vshrl.u32 %v1847, 7
      %v1849 = vsub.s32 %v395, %v1848
      %v1850 = vrot.slane %v1835, %v1849
      %v1851 = vlaneseq
      %v1852 = vshrl.u32 %v1851, 7
      %v1853 = vsub.s32 %v395, %v1852
      %v1854 = vrot.slane %v1844, %v1853
      %v1855 = vsel %vm404, %v1854, %v1850
      %s1857 = scalar_lea.vmem %s221, 20
      %1858 = vst.msk [vmem:[%s1857] sm:$0x3] %vm407, %v1855
      %v1859 = vld [vmem:[%s212] sm:$0x3]
      %v1860 = vld [vmem:[%s212 + $0x8] sm:$0x3]
      %v1861 = vld [vmem:[%s212 + $0x10] sm:$0x3]
      %v1862 = vld [vmem:[%s212 + $0x18] sm:$0x3]
      %v1863 = vld [vmem:[%s212 + $0x40] sm:$0x3]
      %v1864 = vld [vmem:[%s212 + $0x48] sm:$0x3]
      %v1865 = vld [vmem:[%s212 + $0x50] sm:$0x3]
      %v1866 = vld [vmem:[%s212 + $0x58] sm:$0x3]
      %v1875 = vcombine.low %v1859, %v1860
      %v1876 = vcombine.low %v1861, %v1862
      %v1878 = vunpack.c.l.s4 1983009808
      %v1879 = vunpack.c.0.s8 %v1878
      %v1880 = vlaneseq
      %v1881 = vshrl.u32 %v1880, 7
      %v1882 = vsub.s32 %v1879, %v1881
      %v1883 = vrot.slane %v1875, %v1882
      %v1885 = vunpack.c.l.s4 1983009808
      %v1886 = vunpack.c.0.s8 %v1885
      %v1887 = vlaneseq
      %v1888 = vshrl.u32 %v1887, 7
      %v1889 = vsub.s32 %v1886, %v1888
      %v1890 = vrot.slane %v1876, %v1889
      %v1891 = vcombine.low %v1883, %v1890
      %v1892 = vcombine.low %v1863, %v1864
      %v1893 = vcombine.low %v1865, %v1866
      %v1895 = vunpack.c.l.s4 1983009808
      %v1896 = vunpack.c.0.s8 %v1895
      %v1897 = vlaneseq
      %v1898 = vshrl.u32 %v1897, 7
      %v1899 = vsub.s32 %v1896, %v1898
      %v1900 = vrot.slane %v1892, %v1899
      %v1902 = vunpack.c.l.s4 1983009808
      %v1903 = vunpack.c.0.s8 %v1902
      %v1904 = vlaneseq
      %v1905 = vshrl.u32 %v1904, 7
      %v1906 = vsub.s32 %v1903, %v1905
      %v1907 = vrot.slane %v1893, %v1906
      %v1908 = vcombine.low %v1900, %v1907
      %v1911 = vsub.f32 %v222, %v1891
      %v1912 = vsub.f32 %v223, %v1908
      %v1913 = vand.u32 2147483647, %v1911
      %v1914 = vand.u32 2147483647, %v1912
      %v1917 = vcombine.high %v1913, %v1913
      %v1919 = vunpack.c.l.s4 1983009808
      %v1920 = vunpack.c.0.s8 %v1919
      %v1921 = vlaneseq
      %v1922 = vshrl.u32 %v1921, 7
      %v1923 = vsub.s32 %v1920, %v1922
      %v1924 = vrot.slane %v1913, %v1923
      %v1926 = vunpack.c.l.s4 1983009808
      %v1927 = vunpack.c.0.s8 %v1926
      %v1928 = vlaneseq
      %v1929 = vshrl.u32 %v1928, 7
      %v1930 = vsub.s32 %v1927, %v1929
      %v1931 = vrot.slane %v1917, %v1930
      %v1932 = vcombine.high %v1924, %v1924
      %v1933 = vcombine.high %v1931, %v1931
      %v1934 = vcombine.high %v1914, %v1914
      %v1936 = vunpack.c.l.s4 1983009808
      %v1937 = vunpack.c.0.s8 %v1936
      %v1938 = vlaneseq
      %v1939 = vshrl.u32 %v1938, 7
      %v1940 = vsub.s32 %v1937, %v1939
      %v1941 = vrot.slane %v1914, %v1940
      %v1943 = vunpack.c.l.s4 1983009808
      %v1944 = vunpack.c.0.s8 %v1943
      %v1945 = vlaneseq
      %v1946 = vshrl.u32 %v1945, 7
      %v1947 = vsub.s32 %v1944, %v1946
      %v1948 = vrot.slane %v1934, %v1947
      %v1949 = vcombine.high %v1941, %v1941
      %v1950 = vcombine.high %v1948, %v1948
      %v1959 = vsel %vm373, %v1924, 0.0
      %v1960 = vsel %vm373, %v1932, 0.0
      %v1961 = vadd.f32 %v1959, %v1960
      %v1962 = vsel %vm373, %v1931, 0.0
      %v1963 = vadd.f32 %v1961, %v1962
      %v1964 = vsel %vm373, %v1933, 0.0
      %v1965 = vadd.f32 %v1963, %v1964
      %1966 = vadd.xlane.f32.xlu0 %v1965
      %v1967 = vpop.xlane.xlu0 %1966
      %v1968 = vsel %vm373, %v1941, 0.0
      %v1969 = vsel %vm373, %v1949, 0.0
      %v1970 = vadd.f32 %v1968, %v1969
      %v1971 = vsel %vm373, %v1948, 0.0
      %v1972 = vadd.f32 %v1970, %v1971
      %v1973 = vsel %vm373, %v1950, 0.0
      %v1974 = vadd.f32 %v1972, %v1973
      %1975 = vadd.xlane.f32.xlu0 %v1974
      %v1976 = vpop.xlane.xlu0 %1975
      %v1979 = vlaneseq
      %v1980 = vshrl.u32 %v1979, 7
      %v1981 = vsub.s32 %v395, %v1980
      %v1982 = vrot.slane %v1967, %v1981
      %v1983 = vlaneseq
      %v1984 = vshrl.u32 %v1983, 7
      %v1985 = vsub.s32 %v395, %v1984
      %v1986 = vrot.slane %v1976, %v1985
      %v1987 = vsel %vm404, %v1986, %v1982
      %s1989 = scalar_lea.vmem %s221, 22
      %1990 = vst.msk [vmem:[%s1989] sm:$0x3] %vm407, %v1987
      %p1991 = scmp.lt.s32.totalorder %s17, 1
      %s1992 = scalar_select %p1991, %s17, 1
      %p1993 = scmp.lt.s32.totalorder %s18, 0
      %s1994 = scalar_select %p1993, %s18, 0
      %s1995 = smul.addr %s1992, 12
      %s1996 = sadd.s32 %s1994, %s1995
      %s1997 = smul.addr %s1996, 2
      %s1998 = scalar_lea.vmem %s2, %s1997
      // Predicated region
      $region29: #{shared_net_forward.24} parent=27 // pred_check
        %p1999 = pneg %p101
      $region30: #{shared_net_forward.24} parent=27 // pred_check_branch
        %2001 = sbr.rel (%p1999) target = $region32
      $region31: #{shared_net_forward.24} parent=27 // pred_region
        _
      $region32: #{shared_net_forward.24} parent=27 // pred_fallthru
        _
    $region28: #{shared_net_forward.24} parent=5 // pred_fallthru
      _
    %p2002 = scmp.le.s32.totalorder 2, %s8
    // Predicated region
    $region33: #{shared_net_forward.24} parent=5 // pred_check
      %p2003 = pneg %p2002
    $region34: #{shared_net_forward.24} parent=5 // pred_check_branch
      %2005 = sbr.rel (%p2003) target = $region36
    $region35: #{shared_net_forward.24} parent=5 // pred_region
      %s2006 = ssub.s32 %s8, 2
      // Predicated region
      $region37: #{shared_net_forward.24} parent=35 // pred_check
        %p2007 = pneg %p107
      $region38: #{shared_net_forward.24} parent=35 // pred_check_branch
        %2009 = sbr.rel (%p2007) target = $region40
      $region39: #{shared_net_forward.24} parent=35 // pred_region
        %p2010 = scmp.lt.s32.totalorder %s19, 1
        %s2011 = scalar_select %p2010, %s19, 1
        %p2012 = scmp.lt.s32.totalorder %s20, 0
        %s2013 = scalar_select %p2012, %s20, 0
        %s2014 = smul.addr %s2011, 12
        %s2015 = sadd.s32 %s2013, %s2014
        %s2016 = smul.addr %s2015, 2
        %s2017 = scalar_lea.vmem %s2, %s2016
      $region40: #{shared_net_forward.24} parent=35 // pred_fallthru
        _
    $region36: #{shared_net_forward.24} parent=5 // pred_fallthru
      _
  $region6: #{shared_net_forward.24} parent=0 // loop_footer
    %s12 = sadd.s32 1, %s8
  $region7: #{shared_net_forward.24} parent=0 // loop_footer_branch
    %7 = sbr.rel target = $region3
  $region8: #{shared_net_forward.24} parent=0 // loop_exit
    _

// kernel: shared_net_forward.26
$region0: #{shared_net_forward.26}
  #allocation0 [shape = 'u32[]', space=smem, size = 0x4, offset = 0x4, fixed_abs, tag = 'smem constant byte address 0x4 - core index']
  #allocation1 [shape = 'u32[144,128]{1,0:T(1,128)}', space=vmem, size = 0x12000, scoped, tag = 'internal scratch']
  %s0 = inlined_call_operand.vmem [shape: f32[2,4,4,256], index: 0, kind: input, shape index: {}]
  %s1 = inlined_call_operand.vmem [shape: f32[2,5,4,4,256], index: 1, kind: input, shape index: {}]
  %s2 = inlined_call_operand.vmem [shape: f32[2,5,4,4], index: 2, kind: output, shape index: {}]
  %s3 = sld [smem:[#allocation0]]
  $region41: #{shared_net_forward.26} parent=0
    _
  %s5 = ssub.s32 1, %s3
  %s6 = scalar_select 0, %s5, %s3
  loop: start=0, step=1, limit=12
  $region2: #{shared_net_forward.26} parent=0 // loop_pre_header
    _
  $region3: #{shared_net_forward.26} parent=0 // loop_header
    %s8 = sphi 0, %s12
    %p9 = scmp.ge.s32.totalorder %s8, 12
    %s15 = sphi 0, %s34
    %s16 = sphi 0, %s30
    %s17 = sphi 0, %s26
    %s18 = sphi 0, %s15
    %s19 = sphi 0, %s16
    %s20 = sphi 0, %s17
    %s21 = sphi 0, %s18
    %s22 = sphi 0, %s19
    %s23 = sphi 0, %s20
    %s39 = sphi 0, %s41
    %s42 = sphi 0, %s39
    %s43 = sphi 0, %s42
    %s59 = sphi 0, %s43
    %s69 = sphi 0, %s71
    %s72 = sphi 0, %s69
    %s73 = sphi 0, %s72
    %s89 = sphi 0, %s73
    %s99 = sphi 0, %s101
    %s102 = sphi 0, %s99
    %s103 = sphi 0, %s102
    %s119 = sphi 0, %s103
  $region4: #{shared_net_forward.26} parent=0 // loop_header_branch
    %11 = sbr.rel (%p9) target = $region8
  $region5: #{shared_net_forward.26} parent=0 // loop_body
    %s13 = ssub.s32 %s8, 1
    %s14 = ssub.s32 %s8, 2
    %s24 = sadd.s32 1, %s17
    %p25 = scmp.ge.s32.totalorder %s24, 5
    %s26 = scalar_select %p25, 0, %s24
    %s27 = sadd.s32 1, %s16
    %s28 = scalar_select %p25, %s27, %s16
    %p29 = scmp.ge.s32.totalorder %s28, 1
    %s30 = scalar_select %p29, 0, %s28
    %s31 = sadd.s32 1, %s15
    %s32 = scalar_select %p29, %s31, %s15
    %p33 = scmp.ge.s32.totalorder %s32, 2
    %s34 = scalar_select %p33, 0, %s32
    %s35 = ssub.s32 %s15, %s34
    %s36 = ssub.s32 %s16, %s30
    %s37 = sor.u32 %s35, %s36
    %p38 = scmp.eq.s32.totalorder %s37, 0
    %s40 = sadd.s32 %s39, 1
    %s41 = scalar_select %p38, %s39, %s40
    %p44 = pneg %p38
    %p45 = scmp.eq.s32.totalorder %s8, 9
    %p46 = por %p44, %p45
    %p47 = scmp.ne.s32.totalorder %s39, %s42
    %p48 = scmp.eq.s32.totalorder %s8, 0
    %p49 = por %p47, %p48
    %p50 = scmp.ne.s32.totalorder %s39, %s42
    %p51 = scmp.eq.s32.totalorder %s13, 9
    %p52 = por %p50, %p51
    %p53 = scmp.ne.s32.totalorder %s42, %s43
    %p54 = scmp.eq.s32.totalorder %s13, 0
    %p55 = por %p53, %p54
    %p56 = scmp.ne.s32.totalorder %s42, %s43
    %p57 = scmp.eq.s32.totalorder %s14, 9
    %p58 = por %p56, %p57
    %p60 = scmp.ne.s32.totalorder %s43, %s59
    %p61 = scmp.eq.s32.totalorder %s14, 0
    %p62 = por %p60, %p61
    %s63 = ssub.s32 %s15, %s34
    %s64 = ssub.s32 %s17, %s26
    %s65 = sor.u32 %s63, %s64
    %s66 = ssub.s32 %s16, %s30
    %s67 = sor.u32 %s65, %s66
    %p68 = scmp.eq.s32.totalorder %s67, 0
    %s70 = sadd.s32 %s69, 1
    %s71 = scalar_select %p68, %s69, %s70
    %p74 = pneg %p68
    %p75 = scmp.eq.s32.totalorder %s8, 9
    %p76 = por %p74, %p75
    %p77 = scmp.ne.s32.totalorder %s69, %s72
    %p78 = scmp.eq.s32.totalorder %s8, 0
    %p79 = por %p77, %p78
    %p80 = scmp.ne.s32.totalorder %s69, %s72
    %p81 = scmp.eq.s32.totalorder %s13, 9
    %p82 = por %p80, %p81
    %p83 = scmp.ne.s32.totalorder %s72, %s73
    %p84 = scmp.eq.s32.totalorder %s13, 0
    %p85 = por %p83, %p84
    %p86 = scmp.ne.s32.totalorder %s72, %s73
    %p87 = scmp.eq.s32.totalorder %s14, 9
    %p88 = por %p86, %p87
    %p90 = scmp.ne.s32.totalorder %s73, %s89
    %p91 = scmp.eq.s32.totalorder %s14, 0
    %p92 = por %p90, %p91
    %s93 = ssub.s32 %s15, %s34
    %s94 = ssub.s32 %s17, %s26
    %s95 = sor.u32 %s93, %s94
    %s96 = ssub.s32 %s16, %s30
    %s97 = sor.u32 %s95, %s96
    %p98 = scmp.eq.s32.totalorder %s97, 0
    %s100 = sadd.s32 %s99, 1
    %s101 = scalar_select %p98, %s99, %s100
    %p104 = pneg %p98
    %p105 = scmp.eq.s32.totalorder %s8, 9
    %p106 = por %p104, %p105
    %p107 = scmp.ne.s32.totalorder %s99, %s102
    %p108 = scmp.eq.s32.totalorder %s8, 0
    %p109 = por %p107, %p108
    %p110 = scmp.ne.s32.totalorder %s99, %s102
    %p111 = scmp.eq.s32.totalorder %s13, 9
    %p112 = por %p110, %p111
    %p113 = scmp.ne.s32.totalorder %s102, %s103
    %p114 = scmp.eq.s32.totalorder %s13, 0
    %p115 = por %p113, %p114
    %p116 = scmp.ne.s32.totalorder %s102, %s103
    %p117 = scmp.eq.s32.totalorder %s14, 9
    %p118 = por %p116, %p117
    %p120 = scmp.ne.s32.totalorder %s103, %s119
    %p121 = scmp.eq.s32.totalorder %s14, 0
    %p122 = por %p120, %p121
    %p123 = scmp.le.s32.totalorder 1, %s8
    %p124 = scmp.lt.s32.totalorder %s8, 11
    %p125 = pnand %p123, %p124
    %p126 = pneg %p125
    // Predicated region
    $region9: #{shared_net_forward.26} parent=5 // pred_check
      _
    $region10: #{shared_net_forward.26} parent=5 // pred_check_branch
      %128 = sbr.rel (%p125) target = $region12
    $region11: #{shared_net_forward.26} parent=5 // pred_region
      %s129 = ssub.s32 %s8, 1
    $region12: #{shared_net_forward.26} parent=5 // pred_fallthru
      _
    %p130 = scmp.lt.s32.totalorder %s8, 10
    // Predicated region
    $region13: #{shared_net_forward.26} parent=5 // pred_check
      %p131 = pneg %p130
    $region14: #{shared_net_forward.26} parent=5 // pred_check_branch
      %133 = sbr.rel (%p131) target = $region16
    $region15: #{shared_net_forward.26} parent=5 // pred_region
      // Predicated region
      $region17: #{shared_net_forward.26} parent=15 // pred_check
        %p134 = pneg %p49
      $region18: #{shared_net_forward.26} parent=15 // pred_check_branch
        %136 = sbr.rel (%p134) target = $region20
      $region19: #{shared_net_forward.26} parent=15 // pred_region
        %s137 = smul.u32 4, %s16
        %p138 = scmp.lt.s32.totalorder %s15, 1
        %s139 = scalar_select %p138, %s15, 1
        %p140 = scmp.lt.s32.totalorder %s137, 3
        %s141 = scalar_select %p140, %s137, 3
        %s142 = smul.addr %s141, 2
        %s143 = smul.addr %s139, 8
        %s144 = sadd.s32 %s142, %s143
        %s145 = smul.addr %s144, 4
        %s146 = scalar_lea.vmem %s0, %s145
        %s147 = smul.u32 4, %s16
      $region20: #{shared_net_forward.26} parent=15 // pred_fallthru
        _
      // Predicated region
      $region21: #{shared_net_forward.26} parent=15 // pred_check
        %p148 = pneg %p79
      $region22: #{shared_net_forward.26} parent=15 // pred_check_branch
        %150 = sbr.rel (%p148) target = $region24
      $region23: #{shared_net_forward.26} parent=15 // pred_region
        %s151 = smul.u32 4, %s16
        %p152 = scmp.lt.s32.totalorder %s15, 1
        %s153 = scalar_select %p152, %s15, 1
        %p154 = scmp.lt.s32.totalorder %s17, 4
        %s155 = scalar_select %p154, %s17, 4
        %p156 = scmp.lt.s32.totalorder %s151, 3
        %s157 = scalar_select %p156, %s151, 3
        %s158 = smul.addr %s157, 2
        %s159 = smul.addr %s155, 8
        %s160 = sadd.s32 %s158, %s159
        %s161 = smul.addr %s153, 40
        %s162 = sadd.s32 %s160, %s161
        %s163 = smul.addr %s162, 4
        %s164 = scalar_lea.vmem %s1, %s163
        %s165 = smul.u32 4, %s16
      $region24: #{shared_net_forward.26} parent=15 // pred_fallthru
        _
    $region16: #{shared_net_forward.26} parent=5 // pred_fallthru
      _
    %p166 = scmp.le.s32.totalorder 1, %s8
    %p167 = scmp.lt.s32.totalorder %s8, 11
    %p168 = pnand %p166, %p167
    %p169 = pneg %p168
    // Predicated region
    $region25: #{shared_net_forward.26} parent=5 // pred_check
      _
    $region26: #{shared_net_forward.26} parent=5 // pred_check_branch
      %171 = sbr.rel (%p168) target = $region28
    $region27: #{shared_net_forward.26} parent=5 // pred_region
      %s172 = ssub.s32 %s8, 1
      %s173 = smul.u32 4, %s19
      %p174 = scmp.lt.s32.totalorder %s18, 1
      %s175 = scalar_select %p174, %s18, 1
      %p176 = scmp.lt.s32.totalorder %s173, 3
      %s177 = scalar_select %p176, %s173, 3
      %s178 = smul.addr %s177, 2
      %s179 = smul.addr %s175, 8
      %s180 = sadd.s32 %s178, %s179
      %s181 = smul.addr %s180, 4
      %s182 = scalar_lea.vmem %s0, %s181
      %p183 = pneg %p55
      %p184 = pneg %p52
      %s185 = smul.u32 4, %s19
      %p186 = scmp.lt.s32.totalorder %s18, 1
      %s187 = scalar_select %p186, %s18, 1
      %p188 = scmp.lt.s32.totalorder %s20, 4
      %s189 = scalar_select %p188, %s20, 4
      %p190 = scmp.lt.s32.totalorder %s185, 3
      %s191 = scalar_select %p190, %s185, 3
      %s192 = smul.addr %s191, 2
      %s193 = smul.addr %s189, 8
      %s194 = sadd.s32 %s192, %s193
      %s195 = smul.addr %s187, 40
      %s196 = sadd.s32 %s194, %s195
      %s197 = smul.addr %s196, 4
      %s198 = scalar_lea.vmem %s1, %s197
      %p199 = pneg %p85
      %p200 = pneg %p82
      %p201 = pneg %p115
      %p202 = pneg %p112
      %p203 = scmp.lt.s32.totalorder %s18, 1
      %s204 = scalar_select %p203, %s18, 1
      %p205 = scmp.lt.s32.totalorder %s20, 4
      %s206 = scalar_select %p205, %s20, 4
      %p207 = scmp.lt.s32.totalorder %s19, 0
      %s208 = scalar_select %p207, %s19, 0
      %s209 = sadd.s32 %s208, %s206
      %s210 = smul.addr %s204, 5
      %s211 = sadd.s32 %s209, %s210
      %s212 = smul.addr %s211, 4
      %s213 = scalar_lea.vmem %s2, %s212
      %s214 = smul.u32 4, %s19
      %p215 = scmp.lt.s32.totalorder %s18, 1
      %s216 = scalar_select %p215, %s18, 1
      %p217 = scmp.lt.s32.totalorder %s214, 3
      %s218 = scalar_select %p217, %s214, 3
      %s219 = smul.addr %s218, 2
      %s220 = smul.addr %s216, 8
      %s221 = sadd.s32 %s219, %s220
      %s222 = smul.addr %s221, 4
      %s223 = scalar_lea.vmem %s0, %s222
      %s224 = smul.u32 4, %s19
      %s225 = smul.u32 4, %s19
      %p226 = scmp.lt.s32.totalorder %s18, 1
      %s227 = scalar_select %p226, %s18, 1
      %p228 = scmp.lt.s32.totalorder %s20, 4
      %s229 = scalar_select %p228, %s20, 4
      %p230 = scmp.lt.s32.totalorder %s225, 3
      %s231 = scalar_select %p230, %s225, 3
      %s232 = smul.addr %s231, 2
      %s233 = smul.addr %s229, 8
      %s234 = sadd.s32 %s232, %s233
      %s235 = smul.addr %s227, 40
      %s236 = sadd.s32 %s234, %s235
      %s237 = smul.addr %s236, 4
      %s238 = scalar_lea.vmem %s1, %s237
      %s239 = smul.u32 4, %s19
      %p240 = scmp.lt.s32.totalorder %s18, 1
      %s241 = scalar_select %p240, %s18, 1
      %p242 = scmp.lt.s32.totalorder %s20, 4
      %s243 = scalar_select %p242, %s20, 4
      %p244 = scmp.lt.s32.totalorder %s19, 0
      %s245 = scalar_select %p244, %s19, 0
      %s246 = sadd.s32 %s245, %s243
      %s247 = smul.addr %s241, 5
      %s248 = sadd.s32 %s246, %s247
      %s249 = smul.addr %s248, 4
      %s250 = scalar_lea.vmem %s2, %s249
      %v251 = vld [vmem:[%s223] sm:$0xff]
      %v252 = vld [vmem:[%s223 + $0x8] sm:$0xff]
      %v253 = vld [vmem:[%s223 + $0x10] sm:$0xff]
      %v254 = vld [vmem:[%s223 + $0x18] sm:$0xff]
      %v255 = vld [vmem:[%s238] sm:$0xff]
      %v256 = vld [vmem:[%s238 + $0x8] sm:$0xff]
      %v257 = vld [vmem:[%s238 + $0x10] sm:$0xff]
      %v258 = vld [vmem:[%s238 + $0x18] sm:$0xff]
      %v259 = vsub.f32 %v251, %v255
      %v260 = vsub.f32 %v252, %v256
      %v261 = vsub.f32 %v253, %v257
      %v262 = vsub.f32 %v254, %v258
      %v263 = vand.u32 2147483647, %v259
      %v264 = vand.u32 2147483647, %v260
      %v265 = vand.u32 2147483647, %v261
      %v266 = vand.u32 2147483647, %v262
      %v271 = vcombine.high %v263, %v263
      %v272 = vcombine.high %v264, %v264
      %v273 = vcombine.high %v265, %v265
      %v274 = vcombine.high %v266, %v266
      %vm279 = vcmask 1043456
      %v280 = vsel %vm279, %v263, 0.0
      %v281 = vsel %vm279, %v271, 0.0
      %v282 = vadd.f32 %v280, %v281
      %283 = vadd.xlane.f32.xlu0 %v282
      %v284 = vpop.xlane.xlu0 %283
      %v285 = vsel %vm279, %v264, 0.0
      %v286 = vsel %vm279, %v272, 0.0
      %v287 = vadd.f32 %v285, %v286
      %288 = vadd.xlane.f32.xlu0 %v287
      %v289 = vpop.xlane.xlu0 %288
      %v290 = vsel %vm279, %v265, 0.0
      %v291 = vsel %vm279, %v273, 0.0
      %v292 = vadd.f32 %v290, %v291
      %293 = vadd.xlane.f32.xlu0 %v292
      %v294 = vpop.xlane.xlu0 %293
      %v295 = vsel %vm279, %v266, 0.0
      %v296 = vsel %vm279, %v274, 0.0
      %v297 = vadd.f32 %v295, %v296
      %298 = vadd.xlane.f32.xlu0 %v297
      %v299 = vpop.xlane.xlu0 %298
      %v304 = vlaneseq
      %v305 = vand.u32 %v304, 127
      %v306 = vlaneseq
      %v307 = vshrl.u32 %v306, 7
      %v308 = vsub.s32 %v305, %v307
      %v309 = vrot.slane %v284, %v308
      %v310 = vlaneseq
      %v311 = vshrl.u32 %v310, 7
      %v312 = vsub.s32 %v305, %v311
      %v313 = vrot.slane %v289, %v312
      %v314 = vlaneseq
      %v315 = vshrl.u32 %v314, 7
      %v316 = vsub.s32 %v305, %v315
      %v317 = vrot.slane %v294, %v316
      %v318 = vlaneseq
      %v319 = vshrl.u32 %v318, 7
      %v320 = vsub.s32 %v305, %v319
      %v321 = vrot.slane %v299, %v320
      %vm322 = vcmask 1041409
      %v323 = vsel %vm322, %v313, %v309
      %vm324 = vcmask 1042434
      %v325 = vsel %vm324, %v317, %v323
      %vm326 = vcmask 1043459
      %v327 = vsel %vm326, %v321, %v325
      %vm329 = vcmask 27648
      %330 = vst.msk [vmem:[%s250] sm:$0xf] %vm329, %v327
      %p331 = scmp.lt.s32.totalorder %s18, 1
      %s332 = scalar_select %p331, %s18, 1
      %p333 = scmp.lt.s32.totalorder %s20, 4
      %s334 = scalar_select %p333, %s20, 4
      %p335 = scmp.lt.s32.totalorder %s19, 0
      %s336 = scalar_select %p335, %s19, 0
      %s337 = sadd.s32 %s336, %s334
      %s338 = smul.addr %s332, 5
      %s339 = sadd.s32 %s337, %s338
      %s340 = smul.addr %s339, 4
      %s341 = scalar_lea.vmem %s2, %s340
      // Predicated region
      $region29: #{shared_net_forward.26} parent=27 // pred_check
        %p342 = pneg %p112
      $region30: #{shared_net_forward.26} parent=27 // pred_check_branch
        %344 = sbr.rel (%p342) target = $region32
      $region31: #{shared_net_forward.26} parent=27 // pred_region
        _
      $region32: #{shared_net_forward.26} parent=27 // pred_fallthru
        _
    $region28: #{shared_net_forward.26} parent=5 // pred_fallthru
      _
    %p345 = scmp.le.s32.totalorder 2, %s8
    // Predicated region
    $region33: #{shared_net_forward.26} parent=5 // pred_check
      %p346 = pneg %p345
    $region34: #{shared_net_forward.26} parent=5 // pred_check_branch
      %348 = sbr.rel (%p346) target = $region36
    $region35: #{shared_net_forward.26} parent=5 // pred_region
      %s349 = ssub.s32 %s8, 2
      // Predicated region
      $region37: #{shared_net_forward.26} parent=35 // pred_check
        %p350 = pneg %p118
      $region38: #{shared_net_forward.26} parent=35 // pred_check_branch
        %352 = sbr.rel (%p350) target = $region40
      $region39: #{shared_net_forward.26} parent=35 // pred_region
        %p353 = scmp.lt.s32.totalorder %s21, 1
        %s354 = scalar_select %p353, %s21, 1
        %p355 = scmp.lt.s32.totalorder %s23, 4
        %s356 = scalar_select %p355, %s23, 4
        %p357 = scmp.lt.s32.totalorder %s22, 0
        %s358 = scalar_select %p357, %s22, 0
        %s359 = sadd.s32 %s358, %s356
        %s360 = smul.addr %s354, 5
        %s361 = sadd.s32 %s359, %s360
        %s362 = smul.addr %s361, 4
        %s363 = scalar_lea.vmem %s2, %s362
      $region40: #{shared_net_forward.26} parent=35 // pred_fallthru
        _
    $region36: #{shared_net_forward.26} parent=5 // pred_fallthru
      _
  $region6: #{shared_net_forward.26} parent=0 // loop_footer
    %s12 = sadd.s32 1, %s8
  $region7: #{shared_net_forward.26} parent=0 // loop_footer_branch
    %7 = sbr.rel target = $region3
  $region8: #{shared_net_forward.26} parent=0 // loop_exit
    _

// kernel: shared_net_forward.27
$region0: #{shared_net_forward.27}
  #allocation0 [shape = 'u32[]', space=smem, size = 0x4, offset = 0x4, fixed_abs, tag = 'smem constant byte address 0x4 - core index']
  #allocation1 [shape = 'u32[144,128]{1,0:T(1,128)}', space=vmem, size = 0x12000, scoped, tag = 'internal scratch']
  %s0 = inlined_call_operand.vmem [shape: f32[2,5,16], index: 0, kind: input, shape index: {}]
  %s1 = inlined_call_operand.vmem [shape: f32[2,1,16], index: 1, kind: output, shape index: {}]
  %s2 = sld [smem:[#allocation0]]
  $region37: #{shared_net_forward.27} parent=0
    _
  %s4 = ssub.s32 1, %s2
  %s5 = scalar_select 0, %s4, %s2
  loop: start=0, step=1, limit=4
  $region2: #{shared_net_forward.27} parent=0 // loop_pre_header
    _
  $region3: #{shared_net_forward.27} parent=0 // loop_header
    %s7 = sphi 0, %s11
    %p8 = scmp.ge.s32.totalorder %s7, 4
    %s14 = sphi 0, %s26
    %s15 = sphi 0, %s22
    %s16 = sphi 0, %s14
    %s17 = sphi 0, %s15
    %s18 = sphi 0, %s16
    %s19 = sphi 0, %s17
    %s31 = sphi 0, %s33
    %s34 = sphi 0, %s31
    %s35 = sphi 0, %s34
    %s51 = sphi 0, %s35
    %s59 = sphi 0, %s61
    %s62 = sphi 0, %s59
    %s63 = sphi 0, %s62
    %s79 = sphi 0, %s63
  $region4: #{shared_net_forward.27} parent=0 // loop_header_branch
    %10 = sbr.rel (%p8) target = $region8
  $region5: #{shared_net_forward.27} parent=0 // loop_body
    %s12 = ssub.s32 %s7, 1
    %s13 = ssub.s32 %s7, 2
    %s20 = sadd.s32 1, %s15
    %p21 = scmp.ge.s32.totalorder %s20, 1
    %s22 = scalar_select %p21, 0, %s20
    %s23 = sadd.s32 1, %s14
    %s24 = scalar_select %p21, %s23, %s14
    %p25 = scmp.ge.s32.totalorder %s24, 2
    %s26 = scalar_select %p25, 0, %s24
    %s27 = ssub.s32 %s14, %s26
    %s28 = ssub.s32 %s15, %s22
    %s29 = sor.u32 %s27, %s28
    %p30 = scmp.eq.s32.totalorder %s29, 0
    %s32 = sadd.s32 %s31, 1
    %s33 = scalar_select %p30, %s31, %s32
    %p36 = pneg %p30
    %p37 = scmp.eq.s32.totalorder %s7, 1
    %p38 = por %p36, %p37
    %p39 = scmp.ne.s32.totalorder %s31, %s34
    %p40 = scmp.eq.s32.totalorder %s7, 0
    %p41 = por %p39, %p40
    %p42 = scmp.ne.s32.totalorder %s31, %s34
    %p43 = scmp.eq.s32.totalorder %s12, 1
    %p44 = por %p42, %p43
    %p45 = scmp.ne.s32.totalorder %s34, %s35
    %p46 = scmp.eq.s32.totalorder %s12, 0
    %p47 = por %p45, %p46
    %p48 = scmp.ne.s32.totalorder %s34, %s35
    %p49 = scmp.eq.s32.totalorder %s13, 1
    %p50 = por %p48, %p49
    %p52 = scmp.ne.s32.totalorder %s35, %s51
    %p53 = scmp.eq.s32.totalorder %s13, 0
    %p54 = por %p52, %p53
    %s55 = ssub.s32 %s14, %s26
    %s56 = ssub.s32 %s15, %s22
    %s57 = sor.u32 %s55, %s56
    %p58 = scmp.eq.s32.totalorder %s57, 0
    %s60 = sadd.s32 %s59, 1
    %s61 = scalar_select %p58, %s59, %s60
    %p64 = pneg %p58
    %p65 = scmp.eq.s32.totalorder %s7, 1
    %p66 = por %p64, %p65
    %p67 = scmp.ne.s32.totalorder %s59, %s62
    %p68 = scmp.eq.s32.totalorder %s7, 0
    %p69 = por %p67, %p68
    %p70 = scmp.ne.s32.totalorder %s59, %s62
    %p71 = scmp.eq.s32.totalorder %s12, 1
    %p72 = por %p70, %p71
    %p73 = scmp.ne.s32.totalorder %s62, %s63
    %p74 = scmp.eq.s32.totalorder %s12, 0
    %p75 = por %p73, %p74
    %p76 = scmp.ne.s32.totalorder %s62, %s63
    %p77 = scmp.eq.s32.totalorder %s13, 1
    %p78 = por %p76, %p77
    %p80 = scmp.ne.s32.totalorder %s63, %s79
    %p81 = scmp.eq.s32.totalorder %s13, 0
    %p82 = por %p80, %p81
    %p83 = scmp.le.s32.totalorder 1, %s7
    %p84 = scmp.lt.s32.totalorder %s7, 3
    %p85 = pnand %p83, %p84
    %p86 = pneg %p85
    // Predicated region
    $region9: #{shared_net_forward.27} parent=5 // pred_check
      _
    $region10: #{shared_net_forward.27} parent=5 // pred_check_branch
      %88 = sbr.rel (%p85) target = $region12
    $region11: #{shared_net_forward.27} parent=5 // pred_region
      %s89 = ssub.s32 %s7, 1
    $region12: #{shared_net_forward.27} parent=5 // pred_fallthru
      _
    %p90 = scmp.lt.s32.totalorder %s7, 2
    // Predicated region
    $region13: #{shared_net_forward.27} parent=5 // pred_check
      %p91 = pneg %p90
    $region14: #{shared_net_forward.27} parent=5 // pred_check_branch
      %93 = sbr.rel (%p91) target = $region16
    $region15: #{shared_net_forward.27} parent=5 // pred_region
      // Predicated region
      $region17: #{shared_net_forward.27} parent=15 // pred_check
        %p94 = pneg %p41
      $region18: #{shared_net_forward.27} parent=15 // pred_check_branch
        %96 = sbr.rel (%p94) target = $region20
      $region19: #{shared_net_forward.27} parent=15 // pred_region
        %p97 = scmp.lt.s32.totalorder %s14, 1
        %s98 = scalar_select %p97, %s14, 1
        %p99 = scmp.lt.s32.totalorder %s15, 0
        %s100 = scalar_select %p99, %s15, 0
        %s101 = sadd.s32 %s100, %s98
        %s102 = smul.addr %s101, 8
        %s103 = scalar_lea.vmem %s0, %s102
      $region20: #{shared_net_forward.27} parent=15 // pred_fallthru
        _
    $region16: #{shared_net_forward.27} parent=5 // pred_fallthru
      _
    %p104 = scmp.le.s32.totalorder 1, %s7
    %p105 = scmp.lt.s32.totalorder %s7, 3
    %p106 = pnand %p104, %p105
    %p107 = pneg %p106
    // Predicated region
    $region21: #{shared_net_forward.27} parent=5 // pred_check
      _
    $region22: #{shared_net_forward.27} parent=5 // pred_check_branch
      %109 = sbr.rel (%p106) target = $region24
    $region23: #{shared_net_forward.27} parent=5 // pred_region
      %s110 = ssub.s32 %s7, 1
      %p111 = scmp.lt.s32.totalorder %s16, 1
      %s112 = scalar_select %p111, %s16, 1
      %p113 = scmp.lt.s32.totalorder %s17, 0
      %s114 = scalar_select %p113, %s17, 0
      %s115 = sadd.s32 %s114, %s112
      %s116 = smul.addr %s115, 8
      %s117 = scalar_lea.vmem %s0, %s116
      %p118 = pneg %p47
      %p119 = pneg %p44
      %p120 = pneg %p75
      %p121 = pneg %p72
      %p122 = scmp.lt.s32.totalorder %s16, 1
      %s123 = scalar_select %p122, %s16, 1
      %p124 = scmp.lt.s32.totalorder %s17, 0
      %s125 = scalar_select %p124, %s17, 0
      %s126 = sadd.s32 %s125, %s123
      %s127 = scalar_lea.vmem %s1, %s126
      %p128 = scmp.lt.s32.totalorder %s16, 1
      %s129 = scalar_select %p128, %s16, 1
      %p130 = scmp.lt.s32.totalorder %s17, 0
      %s131 = scalar_select %p130, %s17, 0
      %s132 = sadd.s32 %s131, %s129
      %s133 = smul.addr %s132, 8
      %s134 = scalar_lea.vmem %s0, %s133
      %p135 = scmp.lt.s32.totalorder %s16, 1
      %s136 = scalar_select %p135, %s16, 1
      %p137 = scmp.lt.s32.totalorder %s17, 0
      %s138 = scalar_select %p137, %s17, 0
      %s139 = sadd.s32 %s138, %s136
      %s140 = scalar_lea.vmem %s1, %s139
      %v141 = vld [vmem:[%s134] sm:$0x1f]
      %v142 = vsub.f32 0.0, %v141
      %vm143 = vcmask 126976
      %v144 = vsel %vm143, %v142, -inf
      %v145 = vrot.slane %v144, 4
      %v146 = vmax.f32 %v144, %v145
      %v147 = vrot.slane %v146, 2
      %v148 = vmax.f32 %v146, %v147
      %v149 = vrot.slane %v148, 1
      %v150 = vmax.f32 %v148, %v149
      %v151 = vsub.f32 %v142, %v150
      %v152 = vmul.f32 %v151, 1.442695
      %v153 = vpow.pop %v152
      %v154 = vsel %vm143, %v153, 0.0
      %v155 = vrot.slane %v154, 4
      %v156 = vadd.f32 %v154, %v155
      %v157 = vrot.slane %v156, 2
      %v158 = vadd.f32 %v156, %v157
      %v159 = vrot.slane %v158, 1
      %v160 = vadd.f32 %v158, %v159
      %v161 = vlaneseq
      %v162 = vshrl.u32 %v161, 7
      %v163 = vcvt.s32.f32 %v162
      %v164 = vadd.f32 %v163, -2.0
      %v165 = vmul.f32 %v153, %v164
      %v166 = vsel %vm143, %v165, 0.0
      %v167 = vrot.slane %v166, 4
      %v168 = vadd.f32 %v166, %v167
      %v169 = vrot.slane %v168, 2
      %v170 = vadd.f32 %v168, %v169
      %v171 = vrot.slane %v170, 1
      %v172 = vadd.f32 %v170, %v171
      %v173 = vrcp.pop %v160
      %v174 = vmul.f32 %v172, %v173
      %vm175 = vcmask 122880
      %176 = vst.msk [vmem:[%s140] sm:$0x1] %vm175, %v174
      %p177 = scmp.lt.s32.totalorder %s16, 1
      %s178 = scalar_select %p177, %s16, 1
      %p179 = scmp.lt.s32.totalorder %s17, 0
      %s180 = scalar_select %p179, %s17, 0
      %s181 = sadd.s32 %s180, %s178
      %s182 = scalar_lea.vmem %s1, %s181
      // Predicated region
      $region25: #{shared_net_forward.27} parent=23 // pred_check
        %p183 = pneg %p72
      $region26: #{shared_net_forward.27} parent=23 // pred_check_branch
        %185 = sbr.rel (%p183) target = $region28
      $region27: #{shared_net_forward.27} parent=23 // pred_region
        _
      $region28: #{shared_net_forward.27} parent=23 // pred_fallthru
        _
    $region24: #{shared_net_forward.27} parent=5 // pred_fallthru
      _
    %p186 = scmp.le.s32.totalorder 2, %s7
    // Predicated region
    $region29: #{shared_net_forward.27} parent=5 // pred_check
      %p187 = pneg %p186
    $region30: #{shared_net_forward.27} parent=5 // pred_check_branch
      %189 = sbr.rel (%p187) target = $region32
    $region31: #{shared_net_forward.27} parent=5 // pred_region
      %s190 = ssub.s32 %s7, 2
      // Predicated region
      $region33: #{shared_net_forward.27} parent=31 // pred_check
        %p191 = pneg %p78
      $region34: #{shared_net_forward.27} parent=31 // pred_check_branch
        %193 = sbr.rel (%p191) target = $region36
      $region35: #{shared_net_forward.27} parent=31 // pred_region
        %p194 = scmp.lt.s32.totalorder %s18, 1
        %s195 = scalar_select %p194, %s18, 1
        %p196 = scmp.lt.s32.totalorder %s19, 0
        %s197 = scalar_select %p196, %s19, 0
        %s198 = sadd.s32 %s197, %s195
        %s199 = scalar_lea.vmem %s1, %s198
      $region36: #{shared_net_forward.27} parent=31 // pred_fallthru
        _
    $region32: #{shared_net_forward.27} parent=5 // pred_fallthru
      _
  $region6: #{shared_net_forward.27} parent=0 // loop_footer
    %s11 = sadd.s32 1, %s7
  $region7: #{shared_net_forward.27} parent=0 // loop_footer_branch
    %6 = sbr.rel target = $region3
  $region8: #{shared_net_forward.27} parent=0 // loop_exit
    _

// kernel: shared_net_forward.28
$region0: #{shared_net_forward.28}
  #allocation0 [shape = 'u32[]', space=smem, size = 0x4, offset = 0x4, fixed_abs, tag = 'smem constant byte address 0x4 - core index']
  #allocation1 [shape = 'u32[144,128]{1,0:T(1,128)}', space=vmem, size = 0x12000, scoped, tag = 'internal scratch']
  %s0 = inlined_call_operand.vmem [shape: f32[2,8,8,128], index: 0, kind: input, shape index: {}]
  %s1 = inlined_call_operand.vmem [shape: f32[2,5,8,8,128], index: 1, kind: input, shape index: {}]
  %s2 = inlined_call_operand.vmem [shape: f32[2,5,8,8], index: 2, kind: output, shape index: {}]
  %s3 = sld [smem:[#allocation0]]
  $region41: #{shared_net_forward.28} parent=0
    _
  %s5 = ssub.s32 1, %s3
  %s6 = scalar_select 0, %s5, %s3
  loop: start=0, step=1, limit=12
  $region2: #{shared_net_forward.28} parent=0 // loop_pre_header
    _
  $region3: #{shared_net_forward.28} parent=0 // loop_header
    %s8 = sphi 0, %s12
    %p9 = scmp.ge.s32.totalorder %s8, 12
    %s15 = sphi 0, %s34
    %s16 = sphi 0, %s30
    %s17 = sphi 0, %s26
    %s18 = sphi 0, %s15
    %s19 = sphi 0, %s16
    %s20 = sphi 0, %s17
    %s21 = sphi 0, %s18
    %s22 = sphi 0, %s19
    %s23 = sphi 0, %s20
    %s39 = sphi 0, %s41
    %s42 = sphi 0, %s39
    %s43 = sphi 0, %s42
    %s59 = sphi 0, %s43
    %s69 = sphi 0, %s71
    %s72 = sphi 0, %s69
    %s73 = sphi 0, %s72
    %s89 = sphi 0, %s73
    %s99 = sphi 0, %s101
    %s102 = sphi 0, %s99
    %s103 = sphi 0, %s102
    %s119 = sphi 0, %s103
  $region4: #{shared_net_forward.28} parent=0 // loop_header_branch
    %11 = sbr.rel (%p9) target = $region8
  $region5: #{shared_net_forward.28} parent=0 // loop_body
    %s13 = ssub.s32 %s8, 1
    %s14 = ssub.s32 %s8, 2
    %s24 = sadd.s32 1, %s17
    %p25 = scmp.ge.s32.totalorder %s24, 5
    %s26 = scalar_select %p25, 0, %s24
    %s27 = sadd.s32 1, %s16
    %s28 = scalar_select %p25, %s27, %s16
    %p29 = scmp.ge.s32.totalorder %s28, 1
    %s30 = scalar_select %p29, 0, %s28
    %s31 = sadd.s32 1, %s15
    %s32 = scalar_select %p29, %s31, %s15
    %p33 = scmp.ge.s32.totalorder %s32, 2
    %s34 = scalar_select %p33, 0, %s32
    %s35 = ssub.s32 %s15, %s34
    %s36 = ssub.s32 %s16, %s30
    %s37 = sor.u32 %s35, %s36
    %p38 = scmp.eq.s32.totalorder %s37, 0
    %s40 = sadd.s32 %s39, 1
    %s41 = scalar_select %p38, %s39, %s40
    %p44 = pneg %p38
    %p45 = scmp.eq.s32.totalorder %s8, 9
    %p46 = por %p44, %p45
    %p47 = scmp.ne.s32.totalorder %s39, %s42
    %p48 = scmp.eq.s32.totalorder %s8, 0
    %p49 = por %p47, %p48
    %p50 = scmp.ne.s32.totalorder %s39, %s42
    %p51 = scmp.eq.s32.totalorder %s13, 9
    %p52 = por %p50, %p51
    %p53 = scmp.ne.s32.totalorder %s42, %s43
    %p54 = scmp.eq.s32.totalorder %s13, 0
    %p55 = por %p53, %p54
    %p56 = scmp.ne.s32.totalorder %s42, %s43
    %p57 = scmp.eq.s32.totalorder %s14, 9
    %p58 = por %p56, %p57
    %p60 = scmp.ne.s32.totalorder %s43, %s59
    %p61 = scmp.eq.s32.totalorder %s14, 0
    %p62 = por %p60, %p61
    %s63 = ssub.s32 %s15, %s34
    %s64 = ssub.s32 %s17, %s26
    %s65 = sor.u32 %s63, %s64
    %s66 = ssub.s32 %s16, %s30
    %s67 = sor.u32 %s65, %s66
    %p68 = scmp.eq.s32.totalorder %s67, 0
    %s70 = sadd.s32 %s69, 1
    %s71 = scalar_select %p68, %s69, %s70
    %p74 = pneg %p68
    %p75 = scmp.eq.s32.totalorder %s8, 9
    %p76 = por %p74, %p75
    %p77 = scmp.ne.s32.totalorder %s69, %s72
    %p78 = scmp.eq.s32.totalorder %s8, 0
    %p79 = por %p77, %p78
    %p80 = scmp.ne.s32.totalorder %s69, %s72
    %p81 = scmp.eq.s32.totalorder %s13, 9
    %p82 = por %p80, %p81
    %p83 = scmp.ne.s32.totalorder %s72, %s73
    %p84 = scmp.eq.s32.totalorder %s13, 0
    %p85 = por %p83, %p84
    %p86 = scmp.ne.s32.totalorder %s72, %s73
    %p87 = scmp.eq.s32.totalorder %s14, 9
    %p88 = por %p86, %p87
    %p90 = scmp.ne.s32.totalorder %s73, %s89
    %p91 = scmp.eq.s32.totalorder %s14, 0
    %p92 = por %p90, %p91
    %s93 = ssub.s32 %s15, %s34
    %s94 = ssub.s32 %s17, %s26
    %s95 = sor.u32 %s93, %s94
    %s96 = ssub.s32 %s16, %s30
    %s97 = sor.u32 %s95, %s96
    %p98 = scmp.eq.s32.totalorder %s97, 0
    %s100 = sadd.s32 %s99, 1
    %s101 = scalar_select %p98, %s99, %s100
    %p104 = pneg %p98
    %p105 = scmp.eq.s32.totalorder %s8, 9
    %p106 = por %p104, %p105
    %p107 = scmp.ne.s32.totalorder %s99, %s102
    %p108 = scmp.eq.s32.totalorder %s8, 0
    %p109 = por %p107, %p108
    %p110 = scmp.ne.s32.totalorder %s99, %s102
    %p111 = scmp.eq.s32.totalorder %s13, 9
    %p112 = por %p110, %p111
    %p113 = scmp.ne.s32.totalorder %s102, %s103
    %p114 = scmp.eq.s32.totalorder %s13, 0
    %p115 = por %p113, %p114
    %p116 = scmp.ne.s32.totalorder %s102, %s103
    %p117 = scmp.eq.s32.totalorder %s14, 9
    %p118 = por %p116, %p117
    %p120 = scmp.ne.s32.totalorder %s103, %s119
    %p121 = scmp.eq.s32.totalorder %s14, 0
    %p122 = por %p120, %p121
    %p123 = scmp.le.s32.totalorder 1, %s8
    %p124 = scmp.lt.s32.totalorder %s8, 11
    %p125 = pnand %p123, %p124
    %p126 = pneg %p125
    // Predicated region
    $region9: #{shared_net_forward.28} parent=5 // pred_check
      _
    $region10: #{shared_net_forward.28} parent=5 // pred_check_branch
      %128 = sbr.rel (%p125) target = $region12
    $region11: #{shared_net_forward.28} parent=5 // pred_region
      %s129 = ssub.s32 %s8, 1
    $region12: #{shared_net_forward.28} parent=5 // pred_fallthru
      _
    %p130 = scmp.lt.s32.totalorder %s8, 10
    // Predicated region
    $region13: #{shared_net_forward.28} parent=5 // pred_check
      %p131 = pneg %p130
    $region14: #{shared_net_forward.28} parent=5 // pred_check_branch
      %133 = sbr.rel (%p131) target = $region16
    $region15: #{shared_net_forward.28} parent=5 // pred_region
      // Predicated region
      $region17: #{shared_net_forward.28} parent=15 // pred_check
        %p134 = pneg %p49
      $region18: #{shared_net_forward.28} parent=15 // pred_check_branch
        %136 = sbr.rel (%p134) target = $region20
      $region19: #{shared_net_forward.28} parent=15 // pred_region
        %s137 = smul.u32 8, %s16
        %p138 = scmp.lt.s32.totalorder %s15, 1
        %s139 = scalar_select %p138, %s15, 1
        %p140 = scmp.lt.s32.totalorder %s137, 7
        %s141 = scalar_select %p140, %s137, 7
        %s142 = smul.addr %s139, 8
        %s143 = sadd.s32 %s141, %s142
        %s144 = smul.addr %s143, 8
        %s145 = scalar_lea.vmem %s0, %s144
        %s146 = smul.u32 8, %s16
      $region20: #{shared_net_forward.28} parent=15 // pred_fallthru
        _
      // Predicated region
      $region21: #{shared_net_forward.28} parent=15 // pred_check
        %p147 = pneg %p79
      $region22: #{shared_net_forward.28} parent=15 // pred_check_branch
        %149 = sbr.rel (%p147) target = $region24
      $region23: #{shared_net_forward.28} parent=15 // pred_region
        %s150 = smul.u32 8, %s16
        %p151 = scmp.lt.s32.totalorder %s15, 1
        %s152 = scalar_select %p151, %s15, 1
        %p153 = scmp.lt.s32.totalorder %s17, 4
        %s154 = scalar_select %p153, %s17, 4
        %p155 = scmp.lt.s32.totalorder %s150, 7
        %s156 = scalar_select %p155, %s150, 7
        %s157 = smul.addr %s154, 8
        %s158 = sadd.s32 %s156, %s157
        %s159 = smul.addr %s152, 40
        %s160 = sadd.s32 %s158, %s159
        %s161 = smul.addr %s160, 8
        %s162 = scalar_lea.vmem %s1, %s161
        %s163 = smul.u32 8, %s16
      $region24: #{shared_net_forward.28} parent=15 // pred_fallthru
        _
    $region16: #{shared_net_forward.28} parent=5 // pred_fallthru
      _
    %p164 = scmp.le.s32.totalorder 1, %s8
    %p165 = scmp.lt.s32.totalorder %s8, 11
    %p166 = pnand %p164, %p165
    %p167 = pneg %p166
    // Predicated region
    $region25: #{shared_net_forward.28} parent=5 // pred_check
      _
    $region26: #{shared_net_forward.28} parent=5 // pred_check_branch
      %169 = sbr.rel (%p166) target = $region28
    $region27: #{shared_net_forward.28} parent=5 // pred_region
      %s170 = ssub.s32 %s8, 1
      %s171 = smul.u32 8, %s19
      %p172 = scmp.lt.s32.totalorder %s18, 1
      %s173 = scalar_select %p172, %s18, 1
      %p174 = scmp.lt.s32.totalorder %s171, 7
      %s175 = scalar_select %p174, %s171, 7
      %s176 = smul.addr %s173, 8
      %s177 = sadd.s32 %s175, %s176
      %s178 = smul.addr %s177, 8
      %s179 = scalar_lea.vmem %s0, %s178
      %p180 = pneg %p55
      %p181 = pneg %p52
      %s182 = smul.u32 8, %s19
      %p183 = scmp.lt.s32.totalorder %s18, 1
      %s184 = scalar_select %p183, %s18, 1
      %p185 = scmp.lt.s32.totalorder %s20, 4
      %s186 = scalar_select %p185, %s20, 4
      %p187 = scmp.lt.s32.totalorder %s182, 7
      %s188 = scalar_select %p187, %s182, 7
      %s189 = smul.addr %s186, 8
      %s190 = sadd.s32 %s188, %s189
      %s191 = smul.addr %s184, 40
      %s192 = sadd.s32 %s190, %s191
      %s193 = smul.addr %s192, 8
      %s194 = scalar_lea.vmem %s1, %s193
      %p195 = pneg %p85
      %p196 = pneg %p82
      %p197 = pneg %p115
      %p198 = pneg %p112
      %p199 = scmp.lt.s32.totalorder %s18, 1
      %s200 = scalar_select %p199, %s18, 1
      %p201 = scmp.lt.s32.totalorder %s20, 4
      %s202 = scalar_select %p201, %s20, 4
      %p203 = scmp.lt.s32.totalorder %s19, 0
      %s204 = scalar_select %p203, %s19, 0
      %s205 = sadd.s32 %s204, %s202
      %s206 = smul.addr %s200, 5
      %s207 = sadd.s32 %s205, %s206
      %s208 = smul.addr %s207, 8
      %s209 = scalar_lea.vmem %s2, %s208
      %s210 = smul.u32 8, %s19
      %p211 = scmp.lt.s32.totalorder %s18, 1
      %s212 = scalar_select %p211, %s18, 1
      %p213 = scmp.lt.s32.totalorder %s210, 7
      %s214 = scalar_select %p213, %s210, 7
      %s215 = smul.addr %s212, 8
      %s216 = sadd.s32 %s214, %s215
      %s217 = smul.addr %s216, 8
      %s218 = scalar_lea.vmem %s0, %s217
      %s219 = smul.u32 8, %s19
      %s220 = smul.u32 8, %s19
      %p221 = scmp.lt.s32.totalorder %s18, 1
      %s222 = scalar_select %p221, %s18, 1
      %p223 = scmp.lt.s32.totalorder %s20, 4
      %s224 = scalar_select %p223, %s20, 4
      %p225 = scmp.lt.s32.totalorder %s220, 7
      %s226 = scalar_select %p225, %s220, 7
      %s227 = smul.addr %s224, 8
      %s228 = sadd.s32 %s226, %s227
      %s229 = smul.addr %s222, 40
      %s230 = sadd.s32 %s228, %s229
      %s231 = smul.addr %s230, 8
      %s232 = scalar_lea.vmem %s1, %s231
      %s233 = smul.u32 8, %s19
      %p234 = scmp.lt.s32.totalorder %s18, 1
      %s235 = scalar_select %p234, %s18, 1
      %p236 = scmp.lt.s32.totalorder %s20, 4
      %s237 = scalar_select %p236, %s20, 4
      %p238 = scmp.lt.s32.totalorder %s19, 0
      %s239 = scalar_select %p238, %s19, 0
      %s240 = sadd.s32 %s239, %s237
      %s241 = smul.addr %s235, 5
      %s242 = sadd.s32 %s240, %s241
      %s243 = smul.addr %s242, 8
      %s244 = scalar_lea.vmem %s2, %s243
      %v245 = vld [vmem:[%s218] sm:$0xff]
      %v246 = vld [vmem:[%s218 + $0x8] sm:$0xff]
      %v247 = vld [vmem:[%s218 + $0x10] sm:$0xff]
      %v248 = vld [vmem:[%s218 + $0x18] sm:$0xff]
      %v249 = vld [vmem:[%s218 + $0x20] sm:$0xff]
      %v250 = vld [vmem:[%s218 + $0x28] sm:$0xff]
      %v251 = vld [vmem:[%s218 + $0x30] sm:$0xff]
      %v252 = vld [vmem:[%s218 + $0x38] sm:$0xff]
      %v253 = vld [vmem:[%s232] sm:$0xff]
      %v254 = vld [vmem:[%s232 + $0x8] sm:$0xff]
      %v255 = vld [vmem:[%s232 + $0x10] sm:$0xff]
      %v256 = vld [vmem:[%s232 + $0x18] sm:$0xff]
      %v257 = vld [vmem:[%s232 + $0x20] sm:$0xff]
      %v258 = vld [vmem:[%s232 + $0x28] sm:$0xff]
      %v259 = vld [vmem:[%s232 + $0x30] sm:$0xff]
      %v260 = vld [vmem:[%s232 + $0x38] sm:$0xff]
      %v261 = vsub.f32 %v245, %v253
      %v262 = vsub.f32 %v246, %v254
      %v263 = vsub.f32 %v247, %v255
      %v264 = vsub.f32 %v248, %v256
      %v265 = vsub.f32 %v249, %v257
      %v266 = vsub.f32 %v250, %v258
      %v267 = vsub.f32 %v251, %v259
      %v268 = vsub.f32 %v252, %v260
      %v269 = vand.u32 2147483647, %v261
      %v270 = vand.u32 2147483647, %v262
      %v271 = vand.u32 2147483647, %v263
      %v272 = vand.u32 2147483647, %v264
      %v273 = vand.u32 2147483647, %v265
      %v274 = vand.u32 2147483647, %v266
      %v275 = vand.u32 2147483647, %v267
      %v276 = vand.u32 2147483647, %v268
      %277 = vadd.xlane.f32.xlu0 %v269
      %v278 = vpop.xlane.xlu0 %277
      %279 = vadd.xlane.f32.xlu0 %v270
      %v280 = vpop.xlane.xlu0 %279
      %281 = vadd.xlane.f32.xlu0 %v271
      %v282 = vpop.xlane.xlu0 %281
      %283 = vadd.xlane.f32.xlu0 %v272
      %v284 = vpop.xlane.xlu0 %283
      %285 = vadd.xlane.f32.xlu0 %v273
      %v286 = vpop.xlane.xlu0 %285
      %287 = vadd.xlane.f32.xlu0 %v274
      %v288 = vpop.xlane.xlu0 %287
      %289 = vadd.xlane.f32.xlu0 %v275
      %v290 = vpop.xlane.xlu0 %289
      %291 = vadd.xlane.f32.xlu0 %v276
      %v292 = vpop.xlane.xlu0 %291
      %v301 = vlaneseq
      %v302 = vand.u32 %v301, 127
      %v303 = vlaneseq
      %v304 = vshrl.u32 %v303, 7
      %v305 = vsub.s32 %v302, %v304
      %v306 = vrot.slane %v278, %v305
      %v307 = vlaneseq
      %v308 = vshrl.u32 %v307, 7
      %v309 = vsub.s32 %v302, %v308
      %v310 = vrot.slane %v280, %v309
      %v311 = vlaneseq
      %v312 = vshrl.u32 %v311, 7
      %v313 = vsub.s32 %v302, %v312
      %v314 = vrot.slane %v282, %v313
      %v315 = vlaneseq
      %v316 = vshrl.u32 %v315, 7
      %v317 = vsub.s32 %v302, %v316
      %v318 = vrot.slane %v284, %v317
      %v319 = vlaneseq
      %v320 = vshrl.u32 %v319, 7
      %v321 = vsub.s32 %v302, %v320
      %v322 = vrot.slane %v286, %v321
      %v323 = vlaneseq
      %v324 = vshrl.u32 %v323, 7
      %v325 = vsub.s32 %v302, %v324
      %v326 = vrot.slane %v288, %v325
      %v327 = vlaneseq
      %v328 = vshrl.u32 %v327, 7
      %v329 = vsub.s32 %v302, %v328
      %v330 = vrot.slane %v290, %v329
      %v331 = vlaneseq
      %v332 = vshrl.u32 %v331, 7
      %v333 = vsub.s32 %v302, %v332
      %v334 = vrot.slane %v292, %v333
      %vm335 = vcmask 1041409
      %v336 = vsel %vm335, %v310, %v306
      %vm337 = vcmask 1042434
      %v338 = vsel %vm337, %v314, %v336
      %vm339 = vcmask 1043459
      %v340 = vsel %vm339, %v318, %v338
      %vm341 = vcmask 1044484
      %v342 = vsel %vm341, %v322, %v340
      %vm343 = vcmask 1045509
      %v344 = vsel %vm343, %v326, %v342
      %vm345 = vcmask 1046534
      %v346 = vsel %vm345, %v330, %v344
      %vm347 = vcmask 1047559
      %v348 = vsel %vm347, %v334, %v346
      %vm350 = vcmask 64512
      %351 = vst.msk [vmem:[%s244] sm:$0xff] %vm350, %v348
      %p352 = scmp.lt.s32.totalorder %s18, 1
      %s353 = scalar_select %p352, %s18, 1
      %p354 = scmp.lt.s32.totalorder %s20, 4
      %s355 = scalar_select %p354, %s20, 4
      %p356 = scmp.lt.s32.totalorder %s19, 0
      %s357 = scalar_select %p356, %s19, 0
      %s358 = sadd.s32 %s357, %s355
      %s359 = smul.addr %s353, 5
      %s360 = sadd.s32 %s358, %s359
      %s361 = smul.addr %s360, 8
      %s362 = scalar_lea.vmem %s2, %s361
      // Predicated region
      $region29: #{shared_net_forward.28} parent=27 // pred_check
        %p363 = pneg %p112
      $region30: #{shared_net_forward.28} parent=27 // pred_check_branch
        %365 = sbr.rel (%p363) target = $region32
      $region31: #{shared_net_forward.28} parent=27 // pred_region
        _
      $region32: #{shared_net_forward.28} parent=27 // pred_fallthru
        _
    $region28: #{shared_net_forward.28} parent=5 // pred_fallthru
      _
    %p366 = scmp.le.s32.totalorder 2, %s8
    // Predicated region
    $region33: #{shared_net_forward.28} parent=5 // pred_check
      %p367 = pneg %p366
    $region34: #{shared_net_forward.28} parent=5 // pred_check_branch
      %369 = sbr.rel (%p367) target = $region36
    $region35: #{shared_net_forward.28} parent=5 // pred_region
      %s370 = ssub.s32 %s8, 2
      // Predicated region
      $region37: #{shared_net_forward.28} parent=35 // pred_check
        %p371 = pneg %p118
      $region38: #{shared_net_forward.28} parent=35 // pred_check_branch
        %373 = sbr.rel (%p371) target = $region40
      $region39: #{shared_net_forward.28} parent=35 // pred_region
        %p374 = scmp.lt.s32.totalorder %s21, 1
        %s375 = scalar_select %p374, %s21, 1
        %p376 = scmp.lt.s32.totalorder %s23, 4
        %s377 = scalar_select %p376, %s23, 4
        %p378 = scmp.lt.s32.totalorder %s22, 0
        %s379 = scalar_select %p378, %s22, 0
        %s380 = sadd.s32 %s379, %s377
        %s381 = smul.addr %s375, 5
        %s382 = sadd.s32 %s380, %s381
        %s383 = smul.addr %s382, 8
        %s384 = scalar_lea.vmem %s2, %s383
      $region40: #{shared_net_forward.28} parent=35 // pred_fallthru
        _
    $region36: #{shared_net_forward.28} parent=5 // pred_fallthru
      _
  $region6: #{shared_net_forward.28} parent=0 // loop_footer
    %s12 = sadd.s32 1, %s8
  $region7: #{shared_net_forward.28} parent=0 // loop_footer_branch
    %7 = sbr.rel target = $region3
  $region8: #{shared_net_forward.28} parent=0 // loop_exit
    _

// kernel: shared_net_forward.29
$region0: #{shared_net_forward.29}
  #allocation0 [shape = 'u32[]', space=smem, size = 0x4, offset = 0x4, fixed_abs, tag = 'smem constant byte address 0x4 - core index']
  #allocation1 [shape = 'u32[144,128]{1,0:T(1,128)}', space=vmem, size = 0x12000, scoped, tag = 'internal scratch']
  %s0 = inlined_call_operand.vmem [shape: f32[2,5,64], index: 0, kind: input, shape index: {}]
  %s1 = inlined_call_operand.vmem [shape: f32[2,1,64], index: 1, kind: output, shape index: {}]
  %s2 = sld [smem:[#allocation0]]
  $region37: #{shared_net_forward.29} parent=0
    _
  %s4 = ssub.s32 1, %s2
  %s5 = scalar_select 0, %s4, %s2
  loop: start=0, step=1, limit=4
  $region2: #{shared_net_forward.29} parent=0 // loop_pre_header
    _
  $region3: #{shared_net_forward.29} parent=0 // loop_header
    %s7 = sphi 0, %s11
    %p8 = scmp.ge.s32.totalorder %s7, 4
    %s14 = sphi 0, %s26
    %s15 = sphi 0, %s22
    %s16 = sphi 0, %s14
    %s17 = sphi 0, %s15
    %s18 = sphi 0, %s16
    %s19 = sphi 0, %s17
    %s31 = sphi 0, %s33
    %s34 = sphi 0, %s31
    %s35 = sphi 0, %s34
    %s51 = sphi 0, %s35
    %s59 = sphi 0, %s61
    %s62 = sphi 0, %s59
    %s63 = sphi 0, %s62
    %s79 = sphi 0, %s63
  $region4: #{shared_net_forward.29} parent=0 // loop_header_branch
    %10 = sbr.rel (%p8) target = $region8
  $region5: #{shared_net_forward.29} parent=0 // loop_body
    %s12 = ssub.s32 %s7, 1
    %s13 = ssub.s32 %s7, 2
    %s20 = sadd.s32 1, %s15
    %p21 = scmp.ge.s32.totalorder %s20, 1
    %s22 = scalar_select %p21, 0, %s20
    %s23 = sadd.s32 1, %s14
    %s24 = scalar_select %p21, %s23, %s14
    %p25 = scmp.ge.s32.totalorder %s24, 2
    %s26 = scalar_select %p25, 0, %s24
    %s27 = ssub.s32 %s14, %s26
    %s28 = ssub.s32 %s15, %s22
    %s29 = sor.u32 %s27, %s28
    %p30 = scmp.eq.s32.totalorder %s29, 0
    %s32 = sadd.s32 %s31, 1
    %s33 = scalar_select %p30, %s31, %s32
    %p36 = pneg %p30
    %p37 = scmp.eq.s32.totalorder %s7, 1
    %p38 = por %p36, %p37
    %p39 = scmp.ne.s32.totalorder %s31, %s34
    %p40 = scmp.eq.s32.totalorder %s7, 0
    %p41 = por %p39, %p40
    %p42 = scmp.ne.s32.totalorder %s31, %s34
    %p43 = scmp.eq.s32.totalorder %s12, 1
    %p44 = por %p42, %p43
    %p45 = scmp.ne.s32.totalorder %s34, %s35
    %p46 = scmp.eq.s32.totalorder %s12, 0
    %p47 = por %p45, %p46
    %p48 = scmp.ne.s32.totalorder %s34, %s35
    %p49 = scmp.eq.s32.totalorder %s13, 1
    %p50 = por %p48, %p49
    %p52 = scmp.ne.s32.totalorder %s35, %s51
    %p53 = scmp.eq.s32.totalorder %s13, 0
    %p54 = por %p52, %p53
    %s55 = ssub.s32 %s14, %s26
    %s56 = ssub.s32 %s15, %s22
    %s57 = sor.u32 %s55, %s56
    %p58 = scmp.eq.s32.totalorder %s57, 0
    %s60 = sadd.s32 %s59, 1
    %s61 = scalar_select %p58, %s59, %s60
    %p64 = pneg %p58
    %p65 = scmp.eq.s32.totalorder %s7, 1
    %p66 = por %p64, %p65
    %p67 = scmp.ne.s32.totalorder %s59, %s62
    %p68 = scmp.eq.s32.totalorder %s7, 0
    %p69 = por %p67, %p68
    %p70 = scmp.ne.s32.totalorder %s59, %s62
    %p71 = scmp.eq.s32.totalorder %s12, 1
    %p72 = por %p70, %p71
    %p73 = scmp.ne.s32.totalorder %s62, %s63
    %p74 = scmp.eq.s32.totalorder %s12, 0
    %p75 = por %p73, %p74
    %p76 = scmp.ne.s32.totalorder %s62, %s63
    %p77 = scmp.eq.s32.totalorder %s13, 1
    %p78 = por %p76, %p77
    %p80 = scmp.ne.s32.totalorder %s63, %s79
    %p81 = scmp.eq.s32.totalorder %s13, 0
    %p82 = por %p80, %p81
    %p83 = scmp.le.s32.totalorder 1, %s7
    %p84 = scmp.lt.s32.totalorder %s7, 3
    %p85 = pnand %p83, %p84
    %p86 = pneg %p85
    // Predicated region
    $region9: #{shared_net_forward.29} parent=5 // pred_check
      _
    $region10: #{shared_net_forward.29} parent=5 // pred_check_branch
      %88 = sbr.rel (%p85) target = $region12
    $region11: #{shared_net_forward.29} parent=5 // pred_region
      %s89 = ssub.s32 %s7, 1
    $region12: #{shared_net_forward.29} parent=5 // pred_fallthru
      _
    %p90 = scmp.lt.s32.totalorder %s7, 2
    // Predicated region
    $region13: #{shared_net_forward.29} parent=5 // pred_check
      %p91 = pneg %p90
    $region14: #{shared_net_forward.29} parent=5 // pred_check_branch
      %93 = sbr.rel (%p91) target = $region16
    $region15: #{shared_net_forward.29} parent=5 // pred_region
      // Predicated region
      $region17: #{shared_net_forward.29} parent=15 // pred_check
        %p94 = pneg %p41
      $region18: #{shared_net_forward.29} parent=15 // pred_check_branch
        %96 = sbr.rel (%p94) target = $region20
      $region19: #{shared_net_forward.29} parent=15 // pred_region
        %p97 = scmp.lt.s32.totalorder %s14, 1
        %s98 = scalar_select %p97, %s14, 1
        %p99 = scmp.lt.s32.totalorder %s15, 0
        %s100 = scalar_select %p99, %s15, 0
        %s101 = sadd.s32 %s100, %s98
        %s102 = smul.addr %s101, 8
        %s103 = scalar_lea.vmem %s0, %s102
      $region20: #{shared_net_forward.29} parent=15 // pred_fallthru
        _
    $region16: #{shared_net_forward.29} parent=5 // pred_fallthru
      _
    %p104 = scmp.le.s32.totalorder 1, %s7
    %p105 = scmp.lt.s32.totalorder %s7, 3
    %p106 = pnand %p104, %p105
    %p107 = pneg %p106
    // Predicated region
    $region21: #{shared_net_forward.29} parent=5 // pred_check
      _
    $region22: #{shared_net_forward.29} parent=5 // pred_check_branch
      %109 = sbr.rel (%p106) target = $region24
    $region23: #{shared_net_forward.29} parent=5 // pred_region
      %s110 = ssub.s32 %s7, 1
      %p111 = scmp.lt.s32.totalorder %s16, 1
      %s112 = scalar_select %p111, %s16, 1
      %p113 = scmp.lt.s32.totalorder %s17, 0
      %s114 = scalar_select %p113, %s17, 0
      %s115 = sadd.s32 %s114, %s112
      %s116 = smul.addr %s115, 8
      %s117 = scalar_lea.vmem %s0, %s116
      %p118 = pneg %p47
      %p119 = pneg %p44
      %p120 = pneg %p75
      %p121 = pneg %p72
      %p122 = scmp.lt.s32.totalorder %s16, 1
      %s123 = scalar_select %p122, %s16, 1
      %p124 = scmp.lt.s32.totalorder %s17, 0
      %s125 = scalar_select %p124, %s17, 0
      %s126 = sadd.s32 %s125, %s123
      %s127 = scalar_lea.vmem %s1, %s126
      %p128 = scmp.lt.s32.totalorder %s16, 1
      %s129 = scalar_select %p128, %s16, 1
      %p130 = scmp.lt.s32.totalorder %s17, 0
      %s131 = scalar_select %p130, %s17, 0
      %s132 = sadd.s32 %s131, %s129
      %s133 = smul.addr %s132, 8
      %s134 = scalar_lea.vmem %s0, %s133
      %p135 = scmp.lt.s32.totalorder %s16, 1
      %s136 = scalar_select %p135, %s16, 1
      %p137 = scmp.lt.s32.totalorder %s17, 0
      %s138 = scalar_select %p137, %s17, 0
      %s139 = sadd.s32 %s138, %s136
      %s140 = scalar_lea.vmem %s1, %s139
      %v141 = vld [vmem:[%s134] sm:$0x1f]
      %v142 = vsub.f32 0.0, %v141
      %vm143 = vcmask 520192
      %v144 = vsel %vm143, %v142, -inf
      %v145 = vrot.slane %v144, 4
      %v146 = vmax.f32 %v144, %v145
      %v147 = vrot.slane %v146, 2
      %v148 = vmax.f32 %v146, %v147
      %v149 = vrot.slane %v148, 1
      %v150 = vmax.f32 %v148, %v149
      %v151 = vsub.f32 %v142, %v150
      %v152 = vmul.f32 %v151, 1.442695
      %v153 = vpow.pop %v152
      %v154 = vsel %vm143, %v153, 0.0
      %v155 = vrot.slane %v154, 4
      %v156 = vadd.f32 %v154, %v155
      %v157 = vrot.slane %v156, 2
      %v158 = vadd.f32 %v156, %v157
      %v159 = vrot.slane %v158, 1
      %v160 = vadd.f32 %v158, %v159
      %v161 = vlaneseq
      %v162 = vshrl.u32 %v161, 7
      %v163 = vcvt.s32.f32 %v162
      %v164 = vadd.f32 %v163, -2.0
      %v165 = vmul.f32 %v153, %v164
      %v166 = vsel %vm143, %v165, 0.0
      %v167 = vrot.slane %v166, 4
      %v168 = vadd.f32 %v166, %v167
      %v169 = vrot.slane %v168, 2
      %v170 = vadd.f32 %v168, %v169
      %v171 = vrot.slane %v170, 1
      %v172 = vadd.f32 %v170, %v171
      %v173 = vrcp.pop %v160
      %v174 = vmul.f32 %v172, %v173
      %vm175 = vcmask 516096
      %176 = vst.msk [vmem:[%s140] sm:$0x1] %vm175, %v174
      %p177 = scmp.lt.s32.totalorder %s16, 1
      %s178 = scalar_select %p177, %s16, 1
      %p179 = scmp.lt.s32.totalorder %s17, 0
      %s180 = scalar_select %p179, %s17, 0
      %s181 = sadd.s32 %s180, %s178
      %s182 = scalar_lea.vmem %s1, %s181
      // Predicated region
      $region25: #{shared_net_forward.29} parent=23 // pred_check
        %p183 = pneg %p72
      $region26: #{shared_net_forward.29} parent=23 // pred_check_branch
        %185 = sbr.rel (%p183) target = $region28
      $region27: #{shared_net_forward.29} parent=23 // pred_region
        _
      $region28: #{shared_net_forward.29} parent=23 // pred_fallthru
        _
    $region24: #{shared_net_forward.29} parent=5 // pred_fallthru
      _
    %p186 = scmp.le.s32.totalorder 2, %s7
    // Predicated region
    $region29: #{shared_net_forward.29} parent=5 // pred_check
      %p187 = pneg %p186
    $region30: #{shared_net_forward.29} parent=5 // pred_check_branch
      %189 = sbr.rel (%p187) target = $region32
    $region31: #{shared_net_forward.29} parent=5 // pred_region
      %s190 = ssub.s32 %s7, 2
      // Predicated region
      $region33: #{shared_net_forward.29} parent=31 // pred_check
        %p191 = pneg %p78
      $region34: #{shared_net_forward.29} parent=31 // pred_check_branch
        %193 = sbr.rel (%p191) target = $region36
      $region35: #{shared_net_forward.29} parent=31 // pred_region
        %p194 = scmp.lt.s32.totalorder %s18, 1
        %s195 = scalar_select %p194, %s18, 1
        %p196 = scmp.lt.s32.totalorder %s19, 0
        %s197 = scalar_select %p196, %s19, 0
        %s198 = sadd.s32 %s197, %s195
        %s199 = scalar_lea.vmem %s1, %s198
      $region36: #{shared_net_forward.29} parent=31 // pred_fallthru
        _
    $region32: #{shared_net_forward.29} parent=5 // pred_fallthru
      _
  $region6: #{shared_net_forward.29} parent=0 // loop_footer
    %s11 = sadd.s32 1, %s7
  $region7: #{shared_net_forward.29} parent=0 // loop_footer_branch
    %6 = sbr.rel target = $region3
  $region8: #{shared_net_forward.29} parent=0 // loop_exit
    _

// kernel: shared_net_forward.21
$region0: #{shared_net_forward.21}
  #allocation0 [shape = 'u32[]', space=smem, size = 0x4, offset = 0x4, fixed_abs, tag = 'smem constant byte address 0x4 - core index']
  #allocation1 [shape = 'u32[144,128]{1,0:T(1,128)}', space=vmem, size = 0x12000, scoped, tag = 'internal scratch']
  %s0 = inlined_call_operand.vmem [shape: bf16[8,512], index: 0, kind: input, shape index: {}]
  %s1 = inlined_call_operand.vmem [shape: bf16[512,128], index: 1, kind: input, shape index: {}]
  %s2 = inlined_call_operand.vmem [shape: f32[1,128], index: 2, kind: input, shape index: {}]
  %s3 = inlined_call_operand.vmem [shape: f32[8,128], index: 3, kind: output, shape index: {}]
  %s4 = sld [smem:[#allocation0]]
  $region22: #{shared_net_forward.21} parent=0
    _
  %s6 = ssub.s32 1, %s4
  %s7 = scalar_select 0, %s6, %s4
  // Predicated region
  $region2: #{shared_net_forward.21} parent=0 // pred_check
    _
  $region3: #{shared_net_forward.21} parent=0 // pred_check_branch
    %9 = sbr.rel (0) target = $region5
  $region4: #{shared_net_forward.21} parent=0 // pred_region
    _
  $region5: #{shared_net_forward.21} parent=0 // pred_fallthru
    _
  // Predicated region
  $region6: #{shared_net_forward.21} parent=0 // pred_check
    _
  $region7: #{shared_net_forward.21} parent=0 // pred_check_branch
    %11 = sbr.rel (0) target = $region9
  $region8: #{shared_net_forward.21} parent=0 // pred_region
    _
  $region9: #{shared_net_forward.21} parent=0 // pred_fallthru
    _
  // Predicated region
  $region10: #{shared_net_forward.21} parent=0 // pred_check
    _
  $region11: #{shared_net_forward.21} parent=0 // pred_check_branch
    %13 = sbr.rel (0) target = $region13
  $region12: #{shared_net_forward.21} parent=0 // pred_region
    _
  $region13: #{shared_net_forward.21} parent=0 // pred_fallthru
    _
  %v15 = vld [vmem:[%s0] sm:$0xff]
  %v16 = vld [vmem:[%s0 + $0x8] sm:$0xff]
  %v17 = vld [vmem:[%s1] sm:$0xf]
  %v18 = vld [vmem:[%s1 + $0x4] sm:$0xf]
  %v19 = vld [vmem:[%s1 + $0x8] sm:$0xf]
  %v20 = vld [vmem:[%s1 + $0xc] sm:$0xf]
  %v21 = vld [vmem:[%s1 + $0x10] sm:$0xf]
  %v22 = vld [vmem:[%s1 + $0x14] sm:$0xf]
  %v23 = vld [vmem:[%s1 + $0x18] sm:$0xf]
  %v24 = vld [vmem:[%s1 + $0x1c] sm:$0xf]
  %v25 = vld [vmem:[%s1 + $0x20] sm:$0xf]
  %v26 = vld [vmem:[%s1 + $0x24] sm:$0xf]
  %v27 = vld [vmem:[%s1 + $0x28] sm:$0xf]
  %v28 = vld [vmem:[%s1 + $0x2c] sm:$0xf]
  %v29 = vld [vmem:[%s1 + $0x30] sm:$0xf]
  %v30 = vld [vmem:[%s1 + $0x34] sm:$0xf]
  %v31 = vld [vmem:[%s1 + $0x38] sm:$0xf]
  %v32 = vld [vmem:[%s1 + $0x3c] sm:$0xf]
  %v33 = vld [vmem:[%s1 + $0x40] sm:$0xf]
  %v34 = vld [vmem:[%s1 + $0x44] sm:$0xf]
  %v35 = vld [vmem:[%s1 + $0x48] sm:$0xf]
  %v36 = vld [vmem:[%s1 + $0x4c] sm:$0xf]
  %v37 = vld [vmem:[%s1 + $0x50] sm:$0xf]
  %v38 = vld [vmem:[%s1 + $0x54] sm:$0xf]
  %v39 = vld [vmem:[%s1 + $0x58] sm:$0xf]
  %v40 = vld [vmem:[%s1 + $0x5c] sm:$0xf]
  %v41 = vld [vmem:[%s1 + $0x60] sm:$0xf]
  %v42 = vld [vmem:[%s1 + $0x64] sm:$0xf]
  %v43 = vld [vmem:[%s1 + $0x68] sm:$0xf]
  %v44 = vld [vmem:[%s1 + $0x6c] sm:$0xf]
  %v45 = vld [vmem:[%s1 + $0x70] sm:$0xf]
  %v46 = vld [vmem:[%s1 + $0x74] sm:$0xf]
  %v47 = vld [vmem:[%s1 + $0x78] sm:$0xf]
  %v48 = vld [vmem:[%s1 + $0x7c] sm:$0xf]
  %v49 = vld [vmem:[%s1 + $0x80] sm:$0xf]
  %v50 = vld [vmem:[%s1 + $0x84] sm:$0xf]
  %v51 = vld [vmem:[%s1 + $0x88] sm:$0xf]
  %v52 = vld [vmem:[%s1 + $0x8c] sm:$0xf]
  %v53 = vld [vmem:[%s1 + $0x90] sm:$0xf]
  %v54 = vld [vmem:[%s1 + $0x94] sm:$0xf]
  %v55 = vld [vmem:[%s1 + $0x98] sm:$0xf]
  %v56 = vld [vmem:[%s1 + $0x9c] sm:$0xf]
  %v57 = vld [vmem:[%s1 + $0xa0] sm:$0xf]
  %v58 = vld [vmem:[%s1 + $0xa4] sm:$0xf]
  %v59 = vld [vmem:[%s1 + $0xa8] sm:$0xf]
  %v60 = vld [vmem:[%s1 + $0xac] sm:$0xf]
  %v61 = vld [vmem:[%s1 + $0xb0] sm:$0xf]
  %v62 = vld [vmem:[%s1 + $0xb4] sm:$0xf]
  %v63 = vld [vmem:[%s1 + $0xb8] sm:$0xf]
  %v64 = vld [vmem:[%s1 + $0xbc] sm:$0xf]
  %v65 = vld [vmem:[%s1 + $0xc0] sm:$0xf]
  %v66 = vld [vmem:[%s1 + $0xc4] sm:$0xf]
  %v67 = vld [vmem:[%s1 + $0xc8] sm:$0xf]
  %v68 = vld [vmem:[%s1 + $0xcc] sm:$0xf]
  %v69 = vld [vmem:[%s1 + $0xd0] sm:$0xf]
  %v70 = vld [vmem:[%s1 + $0xd4] sm:$0xf]
  %v71 = vld [vmem:[%s1 + $0xd8] sm:$0xf]
  %v72 = vld [vmem:[%s1 + $0xdc] sm:$0xf]
  %v73 = vld [vmem:[%s1 + $0xe0] sm:$0xf]
  %v74 = vld [vmem:[%s1 + $0xe4] sm:$0xf]
  %v75 = vld [vmem:[%s1 + $0xe8] sm:$0xf]
  %v76 = vld [vmem:[%s1 + $0xec] sm:$0xf]
  %v77 = vld [vmem:[%s1 + $0xf0] sm:$0xf]
  %v78 = vld [vmem:[%s1 + $0xf4] sm:$0xf]
  %v79 = vld [vmem:[%s1 + $0xf8] sm:$0xf]
  %v80 = vld [vmem:[%s1 + $0xfc] sm:$0xf]
  %v81 = vld [vmem:[%s2] sm:$0x1]
  %v83 = vlaneseq
  %v84 = vshrl.u32 %v83, 7
  %v85 = vsub.s32 0, %v84
  %v86 = vrot.slane %v81, %v85
  %v90 = vunpack.c.l.b16 %v15
  %v91 = vunpack.c.h.b16 %v15
  %v92 = vunpack.c.l.b16 %v16
  %v93 = vunpack.c.h.b16 %v16
  %v94 = vpack.c.b16 %v90, %v90
  %v95 = vpack.c.b16 %v91, %v91
  %v96 = vpack.c.b16 %v92, %v92
  %v97 = vpack.c.b16 %v93, %v93
  %v166 = vunpack.c.l.b16 %v17
  %v167 = vunpack.c.l.b16 %v18
  %v168 = vunpack.c.l.b16 %v19
  %v169 = vunpack.c.l.b16 %v20
  %v170 = vunpack.c.l.b16 %v21
  %v171 = vunpack.c.l.b16 %v22
  %v172 = vunpack.c.l.b16 %v23
  %v173 = vunpack.c.l.b16 %v24
  %v174 = vunpack.c.l.b16 %v25
  %v175 = vunpack.c.l.b16 %v26
  %v176 = vunpack.c.l.b16 %v27
  %v177 = vunpack.c.l.b16 %v28
  %v178 = vunpack.c.l.b16 %v29
  %v179 = vunpack.c.l.b16 %v30
  %v180 = vunpack.c.l.b16 %v31
  %v181 = vunpack.c.l.b16 %v32
  %v182 = vunpack.c.l.b16 %v33
  %v183 = vunpack.c.l.b16 %v34
  %v184 = vunpack.c.l.b16 %v35
  %v185 = vunpack.c.l.b16 %v36
  %v186 = vunpack.c.l.b16 %v37
  %v187 = vunpack.c.l.b16 %v38
  %v188 = vunpack.c.l.b16 %v39
  %v189 = vunpack.c.l.b16 %v40
  %v190 = vunpack.c.l.b16 %v41
  %v191 = vunpack.c.l.b16 %v42
  %v192 = vunpack.c.l.b16 %v43
  %v193 = vunpack.c.l.b16 %v44
  %v194 = vunpack.c.l.b16 %v45
  %v195 = vunpack.c.l.b16 %v46
  %v196 = vunpack.c.l.b16 %v47
  %v197 = vunpack.c.l.b16 %v48
  %v198 = vunpack.c.l.b16 %v49
  %v199 = vunpack.c.l.b16 %v50
  %v200 = vunpack.c.l.b16 %v51
  %v201 = vunpack.c.l.b16 %v52
  %v202 = vunpack.c.l.b16 %v53
  %v203 = vunpack.c.l.b16 %v54
  %v204 = vunpack.c.l.b16 %v55
  %v205 = vunpack.c.l.b16 %v56
  %v206 = vunpack.c.l.b16 %v57
  %v207 = vunpack.c.l.b16 %v58
  %v208 = vunpack.c.l.b16 %v59
  %v209 = vunpack.c.l.b16 %v60
  %v210 = vunpack.c.l.b16 %v61
  %v211 = vunpack.c.l.b16 %v62
  %v212 = vunpack.c.l.b16 %v63
  %v213 = vunpack.c.l.b16 %v64
  %v214 = vunpack.c.l.b16 %v65
  %v215 = vunpack.c.l.b16 %v66
  %v216 = vunpack.c.l.b16 %v67
  %v217 = vunpack.c.l.b16 %v68
  %v218 = vunpack.c.l.b16 %v69
  %v219 = vunpack.c.l.b16 %v70
  %v220 = vunpack.c.l.b16 %v71
  %v221 = vunpack.c.l.b16 %v72
  %v222 = vunpack.c.l.b16 %v73
  %v223 = vunpack.c.l.b16 %v74
  %v224 = vunpack.c.l.b16 %v75
  %v225 = vunpack.c.l.b16 %v76
  %v226 = vunpack.c.l.b16 %v77
  %v227 = vunpack.c.l.b16 %v78
  %v228 = vunpack.c.l.b16 %v79
  %v229 = vunpack.c.l.b16 %v80
  %v230 = vpack.c.b16 %v167, %v166
  %v231 = vpack.c.b16 %v169, %v168
  %v232 = vpack.c.b16 %v171, %v170
  %v233 = vpack.c.b16 %v173, %v172
  %v234 = vpack.c.b16 %v175, %v174
  %v235 = vpack.c.b16 %v177, %v176
  %v236 = vpack.c.b16 %v179, %v178
  %v237 = vpack.c.b16 %v181, %v180
  %v238 = vpack.c.b16 %v183, %v182
  %v239 = vpack.c.b16 %v185, %v184
  %v240 = vpack.c.b16 %v187, %v186
  %v241 = vpack.c.b16 %v189, %v188
  %v242 = vpack.c.b16 %v191, %v190
  %v243 = vpack.c.b16 %v193, %v192
  %v244 = vpack.c.b16 %v195, %v194
  %v245 = vpack.c.b16 %v197, %v196
  %v246 = vpack.c.b16 %v199, %v198
  %v247 = vpack.c.b16 %v201, %v200
  %v248 = vpack.c.b16 %v203, %v202
  %v249 = vpack.c.b16 %v205, %v204
  %v250 = vpack.c.b16 %v207, %v206
  %v251 = vpack.c.b16 %v209, %v208
  %v252 = vpack.c.b16 %v211, %v210
  %v253 = vpack.c.b16 %v213, %v212
  %v254 = vpack.c.b16 %v215, %v214
  %v255 = vpack.c.b16 %v217, %v216
  %v256 = vpack.c.b16 %v219, %v218
  %v257 = vpack.c.b16 %v221, %v220
  %v258 = vpack.c.b16 %v223, %v222
  %v259 = vpack.c.b16 %v225, %v224
  %v260 = vpack.c.b16 %v227, %v226
  %v261 = vpack.c.b16 %v229, %v228
  %294 = vmatprep.subr.bf16.mxu0 0
  %295 = vmatpush1.bf16.msra.mxu0 %v237
  %296 = vmatprep.subr.bf16.mxu0 0
  %297 = vmatpush1.bf16.msra.mxu0 %v236
  %298 = vmatprep.subr.bf16.mxu0 0
  %299 = vmatpush1.bf16.msra.mxu0 %v235
  %300 = vmatprep.subr.bf16.mxu0 0
  %301 = vmatpush1.bf16.msra.mxu0 %v234
  %302 = vmatprep.subr.bf16.mxu0 0
  %303 = vmatpush1.bf16.msra.mxu0 %v233
  %304 = vmatprep.subr.bf16.mxu0 0
  %305 = vmatpush1.bf16.msra.mxu0 %v232
  %306 = vmatprep.subr.bf16.mxu0 0
  %307 = vmatpush1.bf16.msra.mxu0 %v231
  %308 = vmatprep.subr.bf16.mxu0 0
  %309 = vmatpush1.bf16.msra.mxu0 %v230
  %310 = vmatprep.subr.bf16.mxu0 0
  %311 = vmatpush2.bf16.msra.mxu0 %v245
  %312 = vmatprep.subr.bf16.mxu0 0
  %313 = vmatpush2.bf16.msra.mxu0 %v244
  %314 = vmatprep.subr.bf16.mxu0 0
  %315 = vmatpush2.bf16.msra.mxu0 %v243
  %316 = vmatprep.subr.bf16.mxu0 0
  %317 = vmatpush2.bf16.msra.mxu0 %v242
  %318 = vmatprep.subr.bf16.mxu0 0
  %319 = vmatpush2.bf16.msra.mxu0 %v241
  %320 = vmatprep.subr.bf16.mxu0 0
  %321 = vmatpush2.bf16.msra.mxu0 %v240
  %322 = vmatprep.subr.bf16.mxu0 0
  %323 = vmatpush2.bf16.msra.mxu0 %v239
  %324 = vmatprep.subr.bf16.mxu0 0
  %325 = vmatpush2.bf16.msra.mxu0 %v238
  %326 = vmatprep.mubr.bf16.mxu0 %v95
  %327 = vmatmul.mubr.bf16.gmra.mxu0 %v94
  %v328 = vpop.f32.mrf.mxu0
  %v329 = vadd.f32 %v86, %v328
  %v330 = vpop.f32.mrf.mxu0
  %v331 = vpop.f32.mrf.mxu0
  %v332 = vpop.f32.mrf.mxu0
  %333 = vdwg.mxu0
  %334 = vmatprep.subr.bf16.mxu0 0
  %335 = vmatpush1.bf16.msra.mxu0 %v253
  %336 = vmatprep.subr.bf16.mxu0 0
  %337 = vmatpush1.bf16.msra.mxu0 %v252
  %338 = vmatprep.subr.bf16.mxu0 0
  %339 = vmatpush1.bf16.msra.mxu0 %v251
  %340 = vmatprep.subr.bf16.mxu0 0
  %341 = vmatpush1.bf16.msra.mxu0 %v250
  %342 = vmatprep.subr.bf16.mxu0 0
  %343 = vmatpush1.bf16.msra.mxu0 %v249
  %344 = vmatprep.subr.bf16.mxu0 0
  %345 = vmatpush1.bf16.msra.mxu0 %v248
  %346 = vmatprep.subr.bf16.mxu0 0
  %347 = vmatpush1.bf16.msra.mxu0 %v247
  %348 = vmatprep.subr.bf16.mxu0 0
  %349 = vmatpush1.bf16.msra.mxu0 %v246
  %350 = vmatprep.subr.bf16.mxu0 0
  %351 = vmatpush2.bf16.msra.mxu0 %v261
  %352 = vmatprep.subr.bf16.mxu0 0
  %353 = vmatpush2.bf16.msra.mxu0 %v260
  %354 = vmatprep.subr.bf16.mxu0 0
  %355 = vmatpush2.bf16.msra.mxu0 %v259
  %356 = vmatprep.subr.bf16.mxu0 0
  %357 = vmatpush2.bf16.msra.mxu0 %v258
  %358 = vmatprep.subr.bf16.mxu0 0
  %359 = vmatpush2.bf16.msra.mxu0 %v257
  %360 = vmatprep.subr.bf16.mxu0 0
  %361 = vmatpush2.bf16.msra.mxu0 %v256
  %362 = vmatprep.subr.bf16.mxu0 0
  %363 = vmatpush2.bf16.msra.mxu0 %v255
  %364 = vmatprep.subr.bf16.mxu0 0
  %365 = vmatpush2.bf16.msra.mxu0 %v254
  %366 = vmatprep.mubr.bf16.mxu0 %v97
  %367 = vmatmul.mubr.bf16.gmra.mxu0 %v96
  %v368 = vpop.f32.mrf.mxu0
  %v369 = vadd.f32 %v329, %v368
  %v370 = vpop.f32.mrf.mxu0
  %v371 = vpop.f32.mrf.mxu0
  %v372 = vpop.f32.mrf.mxu0
  %373 = vdwg.mxu0
  %374 = vst [vmem:[%s3] sm:$0xff] %v369
  // Predicated region
  $region14: #{shared_net_forward.21} parent=0 // pred_check
    _
  $region15: #{shared_net_forward.21} parent=0 // pred_check_branch
    %376 = sbr.rel (0) target = $region17
  $region16: #{shared_net_forward.21} parent=0 // pred_region
    _
  $region17: #{shared_net_forward.21} parent=0 // pred_fallthru
    _
  // Predicated region
  $region18: #{shared_net_forward.21} parent=0 // pred_check
    _
  $region19: #{shared_net_forward.21} parent=0 // pred_check_branch
    %378 = sbr.rel (0) target = $region21
  $region20: #{shared_net_forward.21} parent=0 // pred_region
    _
  $region21: #{shared_net_forward.21} parent=0 // pred_fallthru
    _

// kernel: shared_net_forward.22
$region0: #{shared_net_forward.22}
  #allocation0 [shape = 'u32[]', space=smem, size = 0x4, offset = 0x4, fixed_abs, tag = 'smem constant byte address 0x4 - core index']
  #allocation1 [shape = 'u32[144,128]{1,0:T(1,128)}', space=vmem, size = 0x12000, scoped, tag = 'internal scratch']
  %s0 = inlined_call_operand.vmem [shape: bf16[32,256], index: 0, kind: input, shape index: {}]
  %s1 = inlined_call_operand.vmem [shape: bf16[256,128], index: 1, kind: input, shape index: {}]
  %s2 = inlined_call_operand.vmem [shape: f32[1,128], index: 2, kind: input, shape index: {}]
  %s3 = inlined_call_operand.vmem [shape: f32[32,128], index: 3, kind: output, shape index: {}]
  %s4 = sld [smem:[#allocation0]]
  $region22: #{shared_net_forward.22} parent=0
    _
  %s6 = ssub.s32 1, %s4
  %s7 = scalar_select 0, %s6, %s4
  // Predicated region
  $region2: #{shared_net_forward.22} parent=0 // pred_check
    _
  $region3: #{shared_net_forward.22} parent=0 // pred_check_branch
    %9 = sbr.rel (0) target = $region5
  $region4: #{shared_net_forward.22} parent=0 // pred_region
    _
  $region5: #{shared_net_forward.22} parent=0 // pred_fallthru
    _
  // Predicated region
  $region6: #{shared_net_forward.22} parent=0 // pred_check
    _
  $region7: #{shared_net_forward.22} parent=0 // pred_check_branch
    %11 = sbr.rel (0) target = $region9
  $region8: #{shared_net_forward.22} parent=0 // pred_region
    _
  $region9: #{shared_net_forward.22} parent=0 // pred_fallthru
    _
  // Predicated region
  $region10: #{shared_net_forward.22} parent=0 // pred_check
    _
  $region11: #{shared_net_forward.22} parent=0 // pred_check_branch
    %13 = sbr.rel (0) target = $region13
  $region12: #{shared_net_forward.22} parent=0 // pred_region
    _
  $region13: #{shared_net_forward.22} parent=0 // pred_fallthru
    _
  %v15 = vld [vmem:[%s0] sm:$0xff]
  %v16 = vld [vmem:[%s0 + $0x8] sm:$0xff]
  %v17 = vld [vmem:[%s0 + $0x10] sm:$0xff]
  %v18 = vld [vmem:[%s0 + $0x18] sm:$0xff]
  %v19 = vld [vmem:[%s1] sm:$0xf]
  %v20 = vld [vmem:[%s1 + $0x4] sm:$0xf]
  %v21 = vld [vmem:[%s1 + $0x8] sm:$0xf]
  %v22 = vld [vmem:[%s1 + $0xc] sm:$0xf]
  %v23 = vld [vmem:[%s1 + $0x10] sm:$0xf]
  %v24 = vld [vmem:[%s1 + $0x14] sm:$0xf]
  %v25 = vld [vmem:[%s1 + $0x18] sm:$0xf]
  %v26 = vld [vmem:[%s1 + $0x1c] sm:$0xf]
  %v27 = vld [vmem:[%s1 + $0x20] sm:$0xf]
  %v28 = vld [vmem:[%s1 + $0x24] sm:$0xf]
  %v29 = vld [vmem:[%s1 + $0x28] sm:$0xf]
  %v30 = vld [vmem:[%s1 + $0x2c] sm:$0xf]
  %v31 = vld [vmem:[%s1 + $0x30] sm:$0xf]
  %v32 = vld [vmem:[%s1 + $0x34] sm:$0xf]
  %v33 = vld [vmem:[%s1 + $0x38] sm:$0xf]
  %v34 = vld [vmem:[%s1 + $0x3c] sm:$0xf]
  %v35 = vld [vmem:[%s1 + $0x40] sm:$0xf]
  %v36 = vld [vmem:[%s1 + $0x44] sm:$0xf]
  %v37 = vld [vmem:[%s1 + $0x48] sm:$0xf]
  %v38 = vld [vmem:[%s1 + $0x4c] sm:$0xf]
  %v39 = vld [vmem:[%s1 + $0x50] sm:$0xf]
  %v40 = vld [vmem:[%s1 + $0x54] sm:$0xf]
  %v41 = vld [vmem:[%s1 + $0x58] sm:$0xf]
  %v42 = vld [vmem:[%s1 + $0x5c] sm:$0xf]
  %v43 = vld [vmem:[%s1 + $0x60] sm:$0xf]
  %v44 = vld [vmem:[%s1 + $0x64] sm:$0xf]
  %v45 = vld [vmem:[%s1 + $0x68] sm:$0xf]
  %v46 = vld [vmem:[%s1 + $0x6c] sm:$0xf]
  %v47 = vld [vmem:[%s1 + $0x70] sm:$0xf]
  %v48 = vld [vmem:[%s1 + $0x74] sm:$0xf]
  %v49 = vld [vmem:[%s1 + $0x78] sm:$0xf]
  %v50 = vld [vmem:[%s1 + $0x7c] sm:$0xf]
  %v51 = vld [vmem:[%s2] sm:$0x1]
  %v53 = vlaneseq
  %v54 = vshrl.u32 %v53, 7
  %v55 = vsub.s32 0, %v54
  %v56 = vrot.slane %v51, %v55
  %v62 = vunpack.c.l.b16 %v15
  %v63 = vunpack.c.h.b16 %v15
  %v64 = vunpack.c.l.b16 %v16
  %v65 = vunpack.c.h.b16 %v16
  %v66 = vunpack.c.l.b16 %v17
  %v67 = vunpack.c.h.b16 %v17
  %v68 = vunpack.c.l.b16 %v18
  %v69 = vunpack.c.h.b16 %v18
  %v70 = vpack.c.b16 %v64, %v62
  %v71 = vpack.c.b16 %v65, %v63
  %v72 = vpack.c.b16 %v68, %v66
  %v73 = vpack.c.b16 %v69, %v67
  %v110 = vunpack.c.l.b16 %v19
  %v111 = vunpack.c.l.b16 %v20
  %v112 = vunpack.c.l.b16 %v21
  %v113 = vunpack.c.l.b16 %v22
  %v114 = vunpack.c.l.b16 %v23
  %v115 = vunpack.c.l.b16 %v24
  %v116 = vunpack.c.l.b16 %v25
  %v117 = vunpack.c.l.b16 %v26
  %v118 = vunpack.c.l.b16 %v27
  %v119 = vunpack.c.l.b16 %v28
  %v120 = vunpack.c.l.b16 %v29
  %v121 = vunpack.c.l.b16 %v30
  %v122 = vunpack.c.l.b16 %v31
  %v123 = vunpack.c.l.b16 %v32
  %v124 = vunpack.c.l.b16 %v33
  %v125 = vunpack.c.l.b16 %v34
  %v126 = vunpack.c.l.b16 %v35
  %v127 = vunpack.c.l.b16 %v36
  %v128 = vunpack.c.l.b16 %v37
  %v129 = vunpack.c.l.b16 %v38
  %v130 = vunpack.c.l.b16 %v39
  %v131 = vunpack.c.l.b16 %v40
  %v132 = vunpack.c.l.b16 %v41
  %v133 = vunpack.c.l.b16 %v42
  %v134 = vunpack.c.l.b16 %v43
  %v135 = vunpack.c.l.b16 %v44
  %v136 = vunpack.c.l.b16 %v45
  %v137 = vunpack.c.l.b16 %v46
  %v138 = vunpack.c.l.b16 %v47
  %v139 = vunpack.c.l.b16 %v48
  %v140 = vunpack.c.l.b16 %v49
  %v141 = vunpack.c.l.b16 %v50
  %v142 = vpack.c.b16 %v111, %v110
  %v143 = vpack.c.b16 %v113, %v112
  %v144 = vpack.c.b16 %v115, %v114
  %v145 = vpack.c.b16 %v117, %v116
  %v146 = vpack.c.b16 %v119, %v118
  %v147 = vpack.c.b16 %v121, %v120
  %v148 = vpack.c.b16 %v123, %v122
  %v149 = vpack.c.b16 %v125, %v124
  %v150 = vpack.c.b16 %v127, %v126
  %v151 = vpack.c.b16 %v129, %v128
  %v152 = vpack.c.b16 %v131, %v130
  %v153 = vpack.c.b16 %v133, %v132
  %v154 = vpack.c.b16 %v135, %v134
  %v155 = vpack.c.b16 %v137, %v136
  %v156 = vpack.c.b16 %v139, %v138
  %v157 = vpack.c.b16 %v141, %v140
  %174 = vmatprep.subr.bf16.mxu0 0
  %175 = vmatpush1.bf16.msra.mxu0 %v149
  %176 = vmatprep.subr.bf16.mxu0 0
  %177 = vmatpush1.bf16.msra.mxu0 %v148
  %178 = vmatprep.subr.bf16.mxu0 0
  %179 = vmatpush1.bf16.msra.mxu0 %v147
  %180 = vmatprep.subr.bf16.mxu0 0
  %181 = vmatpush1.bf16.msra.mxu0 %v146
  %182 = vmatprep.subr.bf16.mxu0 0
  %183 = vmatpush1.bf16.msra.mxu0 %v145
  %184 = vmatprep.subr.bf16.mxu0 0
  %185 = vmatpush1.bf16.msra.mxu0 %v144
  %186 = vmatprep.subr.bf16.mxu0 0
  %187 = vmatpush1.bf16.msra.mxu0 %v143
  %188 = vmatprep.subr.bf16.mxu0 0
  %189 = vmatpush1.bf16.msra.mxu0 %v142
  %190 = vmatprep.subr.bf16.mxu0 0
  %191 = vmatpush2.bf16.msra.mxu0 %v157
  %192 = vmatprep.subr.bf16.mxu0 0
  %193 = vmatpush2.bf16.msra.mxu0 %v156
  %194 = vmatprep.subr.bf16.mxu0 0
  %195 = vmatpush2.bf16.msra.mxu0 %v155
  %196 = vmatprep.subr.bf16.mxu0 0
  %197 = vmatpush2.bf16.msra.mxu0 %v154
  %198 = vmatprep.subr.bf16.mxu0 0
  %199 = vmatpush2.bf16.msra.mxu0 %v153
  %200 = vmatprep.subr.bf16.mxu0 0
  %201 = vmatpush2.bf16.msra.mxu0 %v152
  %202 = vmatprep.subr.bf16.mxu0 0
  %203 = vmatpush2.bf16.msra.mxu0 %v151
  %204 = vmatprep.subr.bf16.mxu0 0
  %205 = vmatpush2.bf16.msra.mxu0 %v150
  %206 = vmatprep.mubr.bf16.mxu0 %v71
  %207 = vmatmul.mubr.bf16.gmra.mxu0 %v70
  %v208 = vpop.f32.mrf.mxu0
  %v209 = vadd.f32 %v56, %v208
  %v210 = vpop.f32.mrf.mxu0
  %v211 = vpop.f32.mrf.mxu0
  %v212 = vadd.f32 %v56, %v211
  %v213 = vpop.f32.mrf.mxu0
  %214 = vmatprep.mubr.bf16.mxu0 %v73
  %215 = vmatmul.mubr.bf16.gmra.mxu0 %v72
  %v216 = vpop.f32.mrf.mxu0
  %v217 = vadd.f32 %v56, %v216
  %v218 = vpop.f32.mrf.mxu0
  %v219 = vpop.f32.mrf.mxu0
  %v220 = vadd.f32 %v56, %v219
  %v221 = vpop.f32.mrf.mxu0
  %222 = vdwg.mxu0
  %223 = vst [vmem:[%s3] sm:$0xff] %v209
  %224 = vst [vmem:[%s3 + $0x8] sm:$0xff] %v212
  %225 = vst [vmem:[%s3 + $0x10] sm:$0xff] %v217
  %226 = vst [vmem:[%s3 + $0x18] sm:$0xff] %v220
  // Predicated region
  $region14: #{shared_net_forward.22} parent=0 // pred_check
    _
  $region15: #{shared_net_forward.22} parent=0 // pred_check_branch
    %228 = sbr.rel (0) target = $region17
  $region16: #{shared_net_forward.22} parent=0 // pred_region
    _
  $region17: #{shared_net_forward.22} parent=0 // pred_fallthru
    _
  // Predicated region
  $region18: #{shared_net_forward.22} parent=0 // pred_check
    _
  $region19: #{shared_net_forward.22} parent=0 // pred_check_branch
    %230 = sbr.rel (0) target = $region21
  $region20: #{shared_net_forward.22} parent=0 // pred_region
    _
  $region21: #{shared_net_forward.22} parent=0 // pred_fallthru
    _

// kernel: shared_net_forward.23
$region0: #{shared_net_forward.23}
  #allocation0 [shape = 'u32[]', space=smem, size = 0x4, offset = 0x4, fixed_abs, tag = 'smem constant byte address 0x4 - core index']
  #allocation1 [shape = 'u32[144,128]{1,0:T(1,128)}', space=vmem, size = 0x12000, scoped, tag = 'internal scratch']
  %s0 = inlined_call_operand.vmem [shape: bf16[128,128], index: 0, kind: input, shape index: {}]
  %s1 = inlined_call_operand.vmem [shape: bf16[128,128], index: 1, kind: input, shape index: {}]
  %s2 = inlined_call_operand.vmem [shape: f32[1,128], index: 2, kind: input, shape index: {}]
  %s3 = inlined_call_operand.vmem [shape: f32[128,128], index: 3, kind: output, shape index: {}]
  %s4 = sld [smem:[#allocation0]]
  $region22: #{shared_net_forward.23} parent=0
    _
  %s6 = ssub.s32 1, %s4
  %s7 = scalar_select 0, %s6, %s4
  // Predicated region
  $region2: #{shared_net_forward.23} parent=0 // pred_check
    _
  $region3: #{shared_net_forward.23} parent=0 // pred_check_branch
    %9 = sbr.rel (0) target = $region5
  $region4: #{shared_net_forward.23} parent=0 // pred_region
    _
  $region5: #{shared_net_forward.23} parent=0 // pred_fallthru
    _
  // Predicated region
  $region6: #{shared_net_forward.23} parent=0 // pred_check
    _
  $region7: #{shared_net_forward.23} parent=0 // pred_check_branch
    %11 = sbr.rel (0) target = $region9
  $region8: #{shared_net_forward.23} parent=0 // pred_region
    _
  $region9: #{shared_net_forward.23} parent=0 // pred_fallthru
    _
  // Predicated region
  $region10: #{shared_net_forward.23} parent=0 // pred_check
    _
  $region11: #{shared_net_forward.23} parent=0 // pred_check_branch
    %13 = sbr.rel (0) target = $region13
  $region12: #{shared_net_forward.23} parent=0 // pred_region
    _
  $region13: #{shared_net_forward.23} parent=0 // pred_fallthru
    _
  %v15 = vld [vmem:[%s0] sm:$0xf]
  %v16 = vld [vmem:[%s0 + $0x4] sm:$0xf]
  %v17 = vld [vmem:[%s0 + $0x8] sm:$0xf]
  %v18 = vld [vmem:[%s0 + $0xc] sm:$0xf]
  %v19 = vld [vmem:[%s0 + $0x10] sm:$0xf]
  %v20 = vld [vmem:[%s0 + $0x14] sm:$0xf]
  %v21 = vld [vmem:[%s0 + $0x18] sm:$0xf]
  %v22 = vld [vmem:[%s0 + $0x1c] sm:$0xf]
  %v23 = vld [vmem:[%s0 + $0x20] sm:$0xf]
  %v24 = vld [vmem:[%s0 + $0x24] sm:$0xf]
  %v25 = vld [vmem:[%s0 + $0x28] sm:$0xf]
  %v26 = vld [vmem:[%s0 + $0x2c] sm:$0xf]
  %v27 = vld [vmem:[%s0 + $0x30] sm:$0xf]
  %v28 = vld [vmem:[%s0 + $0x34] sm:$0xf]
  %v29 = vld [vmem:[%s0 + $0x38] sm:$0xf]
  %v30 = vld [vmem:[%s0 + $0x3c] sm:$0xf]
  %v31 = vld [vmem:[%s1] sm:$0xf]
  %v32 = vld [vmem:[%s1 + $0x4] sm:$0xf]
  %v33 = vld [vmem:[%s1 + $0x8] sm:$0xf]
  %v34 = vld [vmem:[%s1 + $0xc] sm:$0xf]
  %v35 = vld [vmem:[%s1 + $0x10] sm:$0xf]
  %v36 = vld [vmem:[%s1 + $0x14] sm:$0xf]
  %v37 = vld [vmem:[%s1 + $0x18] sm:$0xf]
  %v38 = vld [vmem:[%s1 + $0x1c] sm:$0xf]
  %v39 = vld [vmem:[%s1 + $0x20] sm:$0xf]
  %v40 = vld [vmem:[%s1 + $0x24] sm:$0xf]
  %v41 = vld [vmem:[%s1 + $0x28] sm:$0xf]
  %v42 = vld [vmem:[%s1 + $0x2c] sm:$0xf]
  %v43 = vld [vmem:[%s1 + $0x30] sm:$0xf]
  %v44 = vld [vmem:[%s1 + $0x34] sm:$0xf]
  %v45 = vld [vmem:[%s1 + $0x38] sm:$0xf]
  %v46 = vld [vmem:[%s1 + $0x3c] sm:$0xf]
  %v47 = vld [vmem:[%s2] sm:$0x1]
  %v49 = vlaneseq
  %v50 = vshrl.u32 %v49, 7
  %v51 = vsub.s32 0, %v50
  %v52 = vrot.slane %v47, %v51
  %v70 = vunpack.c.l.b16 %v15
  %v71 = vunpack.c.l.b16 %v16
  %v72 = vunpack.c.l.b16 %v17
  %v73 = vunpack.c.l.b16 %v18
  %v74 = vunpack.c.l.b16 %v19
  %v75 = vunpack.c.l.b16 %v20
  %v76 = vunpack.c.l.b16 %v21
  %v77 = vunpack.c.l.b16 %v22
  %v78 = vunpack.c.l.b16 %v23
  %v79 = vunpack.c.l.b16 %v24
  %v80 = vunpack.c.l.b16 %v25
  %v81 = vunpack.c.l.b16 %v26
  %v82 = vunpack.c.l.b16 %v27
  %v83 = vunpack.c.l.b16 %v28
  %v84 = vunpack.c.l.b16 %v29
  %v85 = vunpack.c.l.b16 %v30
  %v86 = vpack.c.b16 %v71, %v70
  %v87 = vpack.c.b16 %v73, %v72
  %v88 = vpack.c.b16 %v75, %v74
  %v89 = vpack.c.b16 %v77, %v76
  %v90 = vpack.c.b16 %v79, %v78
  %v91 = vpack.c.b16 %v81, %v80
  %v92 = vpack.c.b16 %v83, %v82
  %v93 = vpack.c.b16 %v85, %v84
  %v118 = vunpack.c.l.b16 %v31
  %v119 = vunpack.c.l.b16 %v32
  %v120 = vunpack.c.l.b16 %v33
  %v121 = vunpack.c.l.b16 %v34
  %v122 = vunpack.c.l.b16 %v35
  %v123 = vunpack.c.l.b16 %v36
  %v124 = vunpack.c.l.b16 %v37
  %v125 = vunpack.c.l.b16 %v38
  %v126 = vunpack.c.l.b16 %v39
  %v127 = vunpack.c.l.b16 %v40
  %v128 = vunpack.c.l.b16 %v41
  %v129 = vunpack.c.l.b16 %v42
  %v130 = vunpack.c.l.b16 %v43
  %v131 = vunpack.c.l.b16 %v44
  %v132 = vunpack.c.l.b16 %v45
  %v133 = vunpack.c.l.b16 %v46
  %v134 = vpack.c.b16 %v119, %v118
  %v135 = vpack.c.b16 %v121, %v120
  %v136 = vpack.c.b16 %v123, %v122
  %v137 = vpack.c.b16 %v125, %v124
  %v138 = vpack.c.b16 %v127, %v126
  %v139 = vpack.c.b16 %v129, %v128
  %v140 = vpack.c.b16 %v131, %v130
  %v141 = vpack.c.b16 %v133, %v132
  %150 = vmatprep.subr.bf16.mxu0 0
  %151 = vmatpush1.bf16.msra.mxu0 %v141
  %152 = vmatprep.subr.bf16.mxu0 0
  %153 = vmatpush1.bf16.msra.mxu0 %v140
  %154 = vmatprep.subr.bf16.mxu0 0
  %155 = vmatpush1.bf16.msra.mxu0 %v139
  %156 = vmatprep.subr.bf16.mxu0 0
  %157 = vmatpush1.bf16.msra.mxu0 %v138
  %158 = vmatprep.subr.bf16.mxu0 0
  %159 = vmatpush1.bf16.msra.mxu0 %v137
  %160 = vmatprep.subr.bf16.mxu0 0
  %161 = vmatpush1.bf16.msra.mxu0 %v136
  %162 = vmatprep.subr.bf16.mxu0 0
  %163 = vmatpush1.bf16.msra.mxu0 %v135
  %164 = vmatprep.subr.bf16.mxu0 0
  %165 = vmatpush1.bf16.msra.mxu0 %v134
  %166 = vmatprep.subr.bf16.mxu0 0
  %167 = vmatpush2.bf16.msra.mxu0 0
  %168 = vmatprep.subr.bf16.mxu0 0
  %169 = vmatpush2.bf16.msra.mxu0 0
  %170 = vmatprep.subr.bf16.mxu0 0
  %171 = vmatpush2.bf16.msra.mxu0 0
  %172 = vmatprep.subr.bf16.mxu0 0
  %173 = vmatpush2.bf16.msra.mxu0 0
  %174 = vmatprep.subr.bf16.mxu0 0
  %175 = vmatpush2.bf16.msra.mxu0 0
  %176 = vmatprep.subr.bf16.mxu0 0
  %177 = vmatpush2.bf16.msra.mxu0 0
  %178 = vmatprep.subr.bf16.mxu0 0
  %179 = vmatpush2.bf16.msra.mxu0 0
  %180 = vmatprep.subr.bf16.mxu0 0
  %181 = vmatpush2.bf16.msra.mxu0 0
  %182 = vmatprep.mubr.bf16.mxu0 0
  %183 = vmatmul.mubr.bf16.gmra.mxu0 %v86
  %v184 = vpop.f32.mrf.mxu0
  %v185 = vadd.f32 %v52, %v184
  %v186 = vpop.f32.mrf.mxu0
  %v187 = vpop.f32.mrf.mxu0
  %v188 = vadd.f32 %v52, %v187
  %v189 = vpop.f32.mrf.mxu0
  %190 = vmatprep.mubr.bf16.mxu0 0
  %191 = vmatmul.mubr.bf16.gmra.mxu0 %v87
  %v192 = vpop.f32.mrf.mxu0
  %v193 = vadd.f32 %v52, %v192
  %v194 = vpop.f32.mrf.mxu0
  %v195 = vpop.f32.mrf.mxu0
  %v196 = vadd.f32 %v52, %v195
  %v197 = vpop.f32.mrf.mxu0
  %198 = vmatprep.mubr.bf16.mxu0 0
  %199 = vmatmul.mubr.bf16.gmra.mxu0 %v88
  %v200 = vpop.f32.mrf.mxu0
  %v201 = vadd.f32 %v52, %v200
  %v202 = vpop.f32.mrf.mxu0
  %v203 = vpop.f32.mrf.mxu0
  %v204 = vadd.f32 %v52, %v203
  %v205 = vpop.f32.mrf.mxu0
  %206 = vmatprep.mubr.bf16.mxu0 0
  %207 = vmatmul.mubr.bf16.gmra.mxu0 %v89
  %v208 = vpop.f32.mrf.mxu0
  %v209 = vadd.f32 %v52, %v208
  %v210 = vpop.f32.mrf.mxu0
  %v211 = vpop.f32.mrf.mxu0
  %v212 = vadd.f32 %v52, %v211
  %v213 = vpop.f32.mrf.mxu0
  %214 = vmatprep.mubr.bf16.mxu0 0
  %215 = vmatmul.mubr.bf16.gmra.mxu0 %v90
  %v216 = vpop.f32.mrf.mxu0
  %v217 = vadd.f32 %v52, %v216
  %v218 = vpop.f32.mrf.mxu0
  %v219 = vpop.f32.mrf.mxu0
  %v220 = vadd.f32 %v52, %v219
  %v221 = vpop.f32.mrf.mxu0
  %222 = vmatprep.mubr.bf16.mxu0 0
  %223 = vmatmul.mubr.bf16.gmra.mxu0 %v91
  %v224 = vpop.f32.mrf.mxu0
  %v225 = vadd.f32 %v52, %v224
  %v226 = vpop.f32.mrf.mxu0
  %v227 = vpop.f32.mrf.mxu0
  %v228 = vadd.f32 %v52, %v227
  %v229 = vpop.f32.mrf.mxu0
  %230 = vmatprep.mubr.bf16.mxu0 0
  %231 = vmatmul.mubr.bf16.gmra.mxu0 %v92
  %v232 = vpop.f32.mrf.mxu0
  %v233 = vadd.f32 %v52, %v232
  %v234 = vpop.f32.mrf.mxu0
  %v235 = vpop.f32.mrf.mxu0
  %v236 = vadd.f32 %v52, %v235
  %v237 = vpop.f32.mrf.mxu0
  %238 = vmatprep.mubr.bf16.mxu0 0
  %239 = vmatmul.mubr.bf16.gmra.mxu0 %v93
  %v240 = vpop.f32.mrf.mxu0
  %v241 = vadd.f32 %v52, %v240
  %v242 = vpop.f32.mrf.mxu0
  %v243 = vpop.f32.mrf.mxu0
  %v244 = vadd.f32 %v52, %v243
  %v245 = vpop.f32.mrf.mxu0
  %246 = vdwg.mxu0
  %247 = vst [vmem:[%s3] sm:$0xff] %v185
  %248 = vst [vmem:[%s3 + $0x8] sm:$0xff] %v188
  %249 = vst [vmem:[%s3 + $0x10] sm:$0xff] %v193
  %250 = vst [vmem:[%s3 + $0x18] sm:$0xff] %v196
  %251 = vst [vmem:[%s3 + $0x20] sm:$0xff] %v201
  %252 = vst [vmem:[%s3 + $0x28] sm:$0xff] %v204
  %253 = vst [vmem:[%s3 + $0x30] sm:$0xff] %v209
  %254 = vst [vmem:[%s3 + $0x38] sm:$0xff] %v212
  %255 = vst [vmem:[%s3 + $0x40] sm:$0xff] %v217
  %256 = vst [vmem:[%s3 + $0x48] sm:$0xff] %v220
  %257 = vst [vmem:[%s3 + $0x50] sm:$0xff] %v225
  %258 = vst [vmem:[%s3 + $0x58] sm:$0xff] %v228
  %259 = vst [vmem:[%s3 + $0x60] sm:$0xff] %v233
  %260 = vst [vmem:[%s3 + $0x68] sm:$0xff] %v236
  %261 = vst [vmem:[%s3 + $0x70] sm:$0xff] %v241
  %262 = vst [vmem:[%s3 + $0x78] sm:$0xff] %v244
  // Predicated region
  $region14: #{shared_net_forward.23} parent=0 // pred_check
    _
  $region15: #{shared_net_forward.23} parent=0 // pred_check_branch
    %264 = sbr.rel (0) target = $region17
  $region16: #{shared_net_forward.23} parent=0 // pred_region
    _
  $region17: #{shared_net_forward.23} parent=0 // pred_fallthru
    _
  // Predicated region
  $region18: #{shared_net_forward.23} parent=0 // pred_check
    _
  $region19: #{shared_net_forward.23} parent=0 // pred_check_branch
    %266 = sbr.rel (0) target = $region21
  $region20: #{shared_net_forward.23} parent=0 // pred_region
    _
  $region21: #{shared_net_forward.23} parent=0 // pred_fallthru
    _

</llo_original>
